<compile_context>
chip_gen: v7x
topology: tpu7x:2x2x1
jax: 0.10.0
libtpu: 0.0.40
codegen_flags: <defaults>
</compile_context>

<pallas_src>
import jax
import jax.numpy as jnp
from jax import lax
from jax.experimental import pallas as pl
from jax.experimental.pallas import tpu as pltpu

K_WAVE = 1000.0                       # Helmholtz wavenumber k
_K2 = K_WAVE * K_WAVE
_INV_TWO_PI = 1.0 / (2.0 * jnp.pi)
_TWO_OVER_PI = 0.636619772


# ----------------------------------------------------------------------------
# Bessel J0 (Numerical-Recipes rational approximation).
# ----------------------------------------------------------------------------
def _j0_small_polys(y):
    p1 = (57568490574.0 + y * (-13362590354.0 + y * (651619640.7
          + y * (-11214424.18 + y * (77392.33017 + y * (-184.9052456))))))
    p2 = (57568490411.0 + y * (1029532985.0 + y * (9494680.718
          + y * (59272.64853 + y * (267.8532712 + y * 1.0)))))
    return p1, p2


def _j0_large_polys(yy):
    q1 = (1.0 + yy * (-0.1098628627e-2 + yy * (0.2734510407e-4
          + yy * (-0.2073370639e-5 + yy * 0.2093887211e-6))))
    q2 = (-0.1562499995e-1 + yy * (0.1430488765e-3
          + yy * (-0.6911147651e-5 + yy * (0.7621095161e-6
          + yy * (-0.934935152e-7)))))
    return q1, q2


def _bessel_j0_sq_in_kernel(y):
    """J0(sqrt(y)) for y = (k*r)^2 >= 0, minimizing EUP (transcendental) work.

    The small-argument branch needs only y (no sqrt); the asymptotic branch
    derives everything from a single rsqrt(y).
    """
    # --- small-argument branch: ax < 8  <=>  y < 64 -------------------------
    y_s = jnp.minimum(y, 64.0)                  # clamp so dead branch is finite
    p1, p2 = _j0_small_polys(y_s)
    small = p1 * pl.reciprocal(p2, approx=True)

    # --- asymptotic branch: ax >= 8  <=>  y >= 64 ----------------------------
    y_l = jnp.maximum(y, 64.0)                  # clamp so dead branch is finite
    inv_ax = lax.rsqrt(y_l)                     # 1/ax, reused three times
    ax_l = y_l * inv_ax                         # sqrt(y_l) without a sqrt op
    z = 8.0 * inv_ax
    yy = z * z
    xx = ax_l - 0.785398164
    q1, q2 = _j0_large_polys(yy)
    amp = jnp.sqrt(_TWO_OVER_PI * inv_ax)       # sqrt(2/(pi*ax))
    large = amp * (jnp.cos(xx) * q1 - z * jnp.sin(xx) * q2)

    return jnp.where(y < 64.0, small, large)


def _bessel_j0_ref(ax):
    """Same math with exact divides/sqrt (pure-JAX reference)."""
    y = ax * ax
    y_s = jnp.minimum(y, 64.0)
    p1, p2 = _j0_small_polys(y_s)
    small = p1 / p2
    ax_l = jnp.maximum(ax, 8.0)
    z = 8.0 / ax_l
    yy = z * z
    xx = ax_l - 0.785398164
    q1, q2 = _j0_large_polys(yy)
    large = jnp.sqrt(_TWO_OVER_PI / ax_l) * (jnp.cos(xx) * q1
                                             - z * jnp.sin(xx) * q2)
    return jnp.where(ax < 8.0, small, large)


# ----------------------------------------------------------------------------
# Pallas kernel
# ----------------------------------------------------------------------------
def _pikf_kernel(px_ref, py_ref, sx_ref, sy_ref, o_ref):
    # (TN,1) - (1,TM) -> (TN,TM) pairwise differences
    dx = px_ref[...] - sx_ref[...]
    dy = py_ref[...] - sy_ref[...]
    y = _K2 * (dx * dx + dy * dy)               # (k*r)^2, no sqrt needed here
    val = _bessel_j0_sq_in_kernel(y) * _INV_TWO_PI
    o_ref[...] = val.astype(o_ref.dtype)


def _round_up(x, m):
    return ((x + m - 1) // m) * m


def pikf_layer(p, source_nodes, *, tn=512, tm=2048):
    """Pallas forward of PIKF_layer.

    p:            (N, 2) float-like
    source_nodes: (M, 2) float-like
    returns:      (N, M) float32
    """
    N = p.shape[0]
    M = source_nodes.shape[0]

    # Shrink tiles for small problems, keep (8,128) alignment.
    tn_eff = min(tn, _round_up(N, 8))
    tm_eff = min(tm, _round_up(M, 128))
    Np = _round_up(N, tn_eff)
    Mp = _round_up(M, tm_eff)

    # glue: split coordinates into sublane-major / lane-major vectors
    px = p[:, 0:1].astype(jnp.float32)                          # (N, 1)
    py = p[:, 1:2].astype(jnp.float32)                          # (N, 1)
    sx = source_nodes[:, 0].reshape(1, M).astype(jnp.float32)   # (1, M)
    sy = source_nodes[:, 1].reshape(1, M).astype(jnp.float32)   # (1, M)

    if Np != N:
        px = jnp.pad(px, ((0, Np - N), (0, 0)))
        py = jnp.pad(py, ((0, Np - N), (0, 0)))
    if Mp != M:
        sx = jnp.pad(sx, ((0, 0), (0, Mp - M)))
        sy = jnp.pad(sy, ((0, 0), (0, Mp - M)))

    grid = (Np // tn_eff, Mp // tm_eff)

    out = pl.pallas_call(
        _pikf_kernel,
        out_shape=jax.ShapeDtypeStruct((Np, Mp), jnp.float32),
        grid_spec=pltpu.PrefetchScalarGridSpec(
            num_scalar_prefetch=0,
            grid=grid,
            in_specs=[
                pl.BlockSpec((tn_eff, 1), lambda i, j: (i, 0)),   # px
                pl.BlockSpec((tn_eff, 1), lambda i, j: (i, 0)),   # py
                pl.BlockSpec((1, tm_eff), lambda i, j: (0, j)),   # sx
                pl.BlockSpec((1, tm_eff), lambda i, j: (0, j)),   # sy
            ],
            out_specs=pl.BlockSpec((tn_eff, tm_eff), lambda i, j: (i, j)),
        ),
        compiler_params=pltpu.CompilerParams(
            dimension_semantics=("parallel", "parallel")),
    )(px, py, sx, sy)

    if (Np, Mp) != (N, M):
        out = out[:N, :M]
    return out


def pikf_layer_ref(p, source_nodes):
    """Pure-JAX reference (exact divides/sqrt) for a sanity check."""
    a = (p[:, None, :].astype(jnp.float32)
         - source_nodes[None, :, :].astype(jnp.float32))        # (N, M, 2)
    r = jnp.sqrt(a[..., 0] ** 2 + a[..., 1] ** 2)               # (N, M)
    return _bessel_j0_ref(K_WAVE * r) / (2.0 * jnp.pi)


if __name__ == "__main__":
    key = jax.random.PRNGKey(0)
    k_src, k_pts, k_src2, k_pts2 = jax.random.split(key, 4)

    # small synthetic shapes (original: 5000 sources); deterministic init
    num_sources = 256
    num_points = 64

    # QuadrangleCollocator([[-2.5,2.5],[-2.5,2.5]]) ~ points in the square
    source_nodes = jax.random.uniform(
        k_src, (num_sources, 2), minval=-2.5, maxval=2.5, dtype=jnp.float32)
    p = jax.random.uniform(
        k_pts, (num_points, 2), minval=-2.5, maxval=2.5, dtype=jnp.float32)

    out = jax.block_until_ready(pikf_layer(p, source_nodes))
    ref = pikf_layer_ref(p, source_nodes)
    assert out.shape == (num_points, num_sources)
    assert bool(jnp.all(jnp.isfinite(out)))
    assert float(jnp.max(jnp.abs(out - ref))) < 1e-3

    # non-tile-aligned shapes (exercises the padding / slicing path)
    src2 = jax.random.uniform(
        k_src2, (200, 2), minval=-2.5, maxval=2.5, dtype=jnp.float32)
    p2 = jax.random.uniform(
        k_pts2, (50, 2), minval=-2.5, maxval=2.5, dtype=jnp.float32)
    out2 = jax.block_until_ready(pikf_layer(p2, src2))
    ref2 = pikf_layer_ref(p2, src2)
    assert out2.shape == (50, 200)
    assert bool(jnp.all(jnp.isfinite(out2)))
    assert float(jnp.max(jnp.abs(out2 - ref2))) < 1e-3

    print("KERNEL_OK")
</pallas_src>

<mosaic_0001>
module attributes {stable_mosaic.version = 11 : i64} {
  func.func @_pikf_kernel(%arg0: i32, %arg1: i32, %arg2: memref<64x1xf32, #tpu.memory_space<vmem>>, %arg3: memref<64x1xf32, #tpu.memory_space<vmem>>, %arg4: memref<1x256xf32, #tpu.memory_space<vmem>>, %arg5: memref<1x256xf32, #tpu.memory_space<vmem>>, %arg6: memref<64x256xf32, #tpu.memory_space<vmem>>) attributes {dimension_semantics = [#tpu.dimension_semantics<parallel>, #tpu.dimension_semantics<parallel>], iteration_bounds = array<i64: 1, 1>, scalar_prefetch = 0 : i64, scratch_operands = 0 : i64, tpu.core_type = #tpu.core_type<tc>, window_params = [{transform_indices = @transform_0, window_bounds = array<i64: 64, 1>}, {transform_indices = @transform_1, window_bounds = array<i64: 64, 1>}, {transform_indices = @transform_2, window_bounds = array<i64: 1, 256>}, {transform_indices = @transform_3, window_bounds = array<i64: 1, 256>}, {transform_indices = @transform_4, window_bounds = array<i64: 64, 256>}]} {
    %c0 = arith.constant 0 : index
    %c0_0 = arith.constant 0 : index
    %0 = vector.load %arg2[%c0, %c0_0] : memref<64x1xf32, #tpu.memory_space<vmem>>, vector<64x1xf32>
    %c0_1 = arith.constant 0 : index
    %c0_2 = arith.constant 0 : index
    %1 = vector.load %arg4[%c0_1, %c0_2] : memref<1x256xf32, #tpu.memory_space<vmem>>, vector<1x256xf32>
    %2 = vector.broadcast %0 : vector<64x1xf32> to vector<64x256xf32>
    %3 = vector.broadcast %1 : vector<1x256xf32> to vector<64x256xf32>
    %4 = arith.subf %2, %3 : vector<64x256xf32>
    %c0_3 = arith.constant 0 : index
    %c0_4 = arith.constant 0 : index
    %5 = vector.load %arg3[%c0_3, %c0_4] : memref<64x1xf32, #tpu.memory_space<vmem>>, vector<64x1xf32>
    %c0_5 = arith.constant 0 : index
    %c0_6 = arith.constant 0 : index
    %6 = vector.load %arg5[%c0_5, %c0_6] : memref<1x256xf32, #tpu.memory_space<vmem>>, vector<1x256xf32>
    %7 = vector.broadcast %5 : vector<64x1xf32> to vector<64x256xf32>
    %8 = vector.broadcast %6 : vector<1x256xf32> to vector<64x256xf32>
    %9 = arith.subf %7, %8 : vector<64x256xf32>
    %10 = arith.mulf %4, %4 : vector<64x256xf32>
    %11 = arith.mulf %9, %9 : vector<64x256xf32>
    %12 = arith.addf %10, %11 : vector<64x256xf32>
    %cst = arith.constant 1.000000e+06 : f32
    %13 = vector.broadcast %cst : f32 to vector<64x256xf32>
    %14 = arith.mulf %13, %12 : vector<64x256xf32>
    %cst_7 = arith.constant 6.400000e+01 : f32
    %15 = vector.broadcast %cst_7 : f32 to vector<64x256xf32>
    %16 = arith.minimumf %14, %15 : vector<64x256xf32>
    %cst_8 = arith.constant -184.905243 : f32
    %17 = vector.broadcast %cst_8 : f32 to vector<64x256xf32>
    %18 = arith.mulf %16, %17 : vector<64x256xf32>
    %cst_9 = arith.constant 77392.3281 : f32
    %19 = vector.broadcast %cst_9 : f32 to vector<64x256xf32>
    %20 = arith.addf %19, %18 : vector<64x256xf32>
    %21 = arith.mulf %16, %20 : vector<64x256xf32>
    %cst_10 = arith.constant 0xCB2B1E58 : f32
    %22 = vector.broadcast %cst_10 : f32 to vector<64x256xf32>
    %23 = arith.addf %22, %21 : vector<64x256xf32>
    %24 = arith.mulf %16, %23 : vector<64x256xf32>
    %cst_11 = arith.constant 0x4E1B5BB5 : f32
    %25 = vector.broadcast %cst_11 : f32 to vector<64x256xf32>
    %26 = arith.addf %25, %24 : vector<64x256xf32>
    %27 = arith.mulf %16, %26 : vector<64x256xf32>
    %cst_12 = arith.constant -1.33625907E+10 : f32
    %28 = vector.broadcast %cst_12 : f32 to vector<64x256xf32>
    %29 = arith.addf %28, %27 : vector<64x256xf32>
    %30 = arith.mulf %16, %29 : vector<64x256xf32>
    %cst_13 = arith.constant 5.75684895E+10 : f32
    %31 = vector.broadcast %cst_13 : f32 to vector<64x256xf32>
    %32 = arith.addf %31, %30 : vector<64x256xf32>
    %cst_14 = arith.constant 1.000000e+00 : f32
    %33 = vector.broadcast %cst_14 : f32 to vector<64x256xf32>
    %34 = arith.mulf %16, %33 : vector<64x256xf32>
    %cst_15 = arith.constant 267.853271 : f32
    %35 = vector.broadcast %cst_15 : f32 to vector<64x256xf32>
    %36 = arith.addf %35, %34 : vector<64x256xf32>
    %37 = arith.mulf %16, %36 : vector<64x256xf32>
    %cst_16 = arith.constant 59272.6484 : f32
    %38 = vector.broadcast %cst_16 : f32 to vector<64x256xf32>
    %39 = arith.addf %38, %37 : vector<64x256xf32>
    %40 = arith.mulf %16, %39 : vector<64x256xf32>
    %cst_17 = arith.constant 0x4B10E099 : f32
    %41 = vector.broadcast %cst_17 : f32 to vector<64x256xf32>
    %42 = arith.addf %41, %40 : vector<64x256xf32>
    %43 = arith.mulf %16, %42 : vector<64x256xf32>
    %cst_18 = arith.constant 1.02953299E+9 : f32
    %44 = vector.broadcast %cst_18 : f32 to vector<64x256xf32>
    %45 = arith.addf %44, %43 : vector<64x256xf32>
    %46 = arith.mulf %16, %45 : vector<64x256xf32>
    %cst_19 = arith.constant 5.75684895E+10 : f32
    %47 = vector.broadcast %cst_19 : f32 to vector<64x256xf32>
    %48 = arith.addf %47, %46 : vector<64x256xf32>
    %49 = tpu.reciprocal %48 {approx = true} : vector<64x256xf32> -> vector<64x256xf32>
    %50 = arith.mulf %32, %49 : vector<64x256xf32>
    %cst_20 = arith.constant 6.400000e+01 : f32
    %51 = vector.broadcast %cst_20 : f32 to vector<64x256xf32>
    %52 = arith.maximumf %14, %51 : vector<64x256xf32>
    %53 = math.rsqrt %52 : vector<64x256xf32>
    %54 = arith.mulf %52, %53 : vector<64x256xf32>
    %cst_21 = arith.constant 8.000000e+00 : f32
    %55 = vector.broadcast %cst_21 : f32 to vector<64x256xf32>
    %56 = arith.mulf %55, %53 : vector<64x256xf32>
    %57 = arith.mulf %56, %56 : vector<64x256xf32>
    %cst_22 = arith.constant 0.785398185 : f32
    %58 = vector.broadcast %cst_22 : f32 to vector<64x256xf32>
    %59 = arith.subf %54, %58 : vector<64x256xf32>
    %cst_23 = arith.constant 2.09388716E-7 : f32
    %60 = vector.broadcast %cst_23 : f32 to vector<64x256xf32>
    %61 = arith.mulf %57, %60 : vector<64x256xf32>
    %cst_24 = arith.constant -2.07337075E-6 : f32
    %62 = vector.broadcast %cst_24 : f32 to vector<64x256xf32>
    %63 = arith.addf %62, %61 : vector<64x256xf32>
    %64 = arith.mulf %57, %63 : vector<64x256xf32>
    %cst_25 = arith.constant 2.73451042E-5 : f32
    %65 = vector.broadcast %cst_25 : f32 to vector<64x256xf32>
    %66 = arith.addf %65, %64 : vector<64x256xf32>
    %67 = arith.mulf %57, %66 : vector<64x256xf32>
    %cst_26 = arith.constant -0.00109862862 : f32
    %68 = vector.broadcast %cst_26 : f32 to vector<64x256xf32>
    %69 = arith.addf %68, %67 : vector<64x256xf32>
    %70 = arith.mulf %57, %69 : vector<64x256xf32>
    %cst_27 = arith.constant 1.000000e+00 : f32
    %71 = vector.broadcast %cst_27 : f32 to vector<64x256xf32>
    %72 = arith.addf %71, %70 : vector<64x256xf32>
    %cst_28 = arith.constant -9.34935187E-8 : f32
    %73 = vector.broadcast %cst_28 : f32 to vector<64x256xf32>
    %74 = arith.mulf %57, %73 : vector<64x256xf32>
    %cst_29 = arith.constant 7.62109493E-7 : f32
    %75 = vector.broadcast %cst_29 : f32 to vector<64x256xf32>
    %76 = arith.addf %75, %74 : vector<64x256xf32>
    %77 = arith.mulf %57, %76 : vector<64x256xf32>
    %cst_30 = arith.constant -6.91114747E-6 : f32
    %78 = vector.broadcast %cst_30 : f32 to vector<64x256xf32>
    %79 = arith.addf %78, %77 : vector<64x256xf32>
    %80 = arith.mulf %57, %79 : vector<64x256xf32>
    %cst_31 = arith.constant 1.43048877E-4 : f32
    %81 = vector.broadcast %cst_31 : f32 to vector<64x256xf32>
    %82 = arith.addf %81, %80 : vector<64x256xf32>
    %83 = arith.mulf %57, %82 : vector<64x256xf32>
    %cst_32 = arith.constant -1.562500e-02 : f32
    %84 = vector.broadcast %cst_32 : f32 to vector<64x256xf32>
    %85 = arith.addf %84, %83 : vector<64x256xf32>
    %cst_33 = arith.constant 0.636619746 : f32
    %86 = vector.broadcast %cst_33 : f32 to vector<64x256xf32>
    %87 = arith.mulf %86, %53 : vector<64x256xf32>
    %88 = math.sqrt %87 : vector<64x256xf32>
    %89 = math.cos %59 : vector<64x256xf32>
    %90 = arith.mulf %89, %72 : vector<64x256xf32>
    %91 = math.sin %59 : vector<64x256xf32>
    %92 = arith.mulf %56, %91 : vector<64x256xf32>
    %93 = arith.mulf %92, %85 : vector<64x256xf32>
    %94 = arith.subf %90, %93 : vector<64x256xf32>
    %95 = arith.mulf %88, %94 : vector<64x256xf32>
    %cst_34 = arith.constant 6.400000e+01 : f32
    %96 = vector.broadcast %cst_34 : f32 to vector<64x256xf32>
    %97 = arith.cmpf olt, %14, %96 : vector<64x256xf32>
    %98 = arith.select %97, %50, %95 : vector<64x256xi1>, vector<64x256xf32>
    %cst_35 = arith.constant 0.159154937 : f32
    %99 = vector.broadcast %cst_35 : f32 to vector<64x256xf32>
    %100 = arith.mulf %98, %99 : vector<64x256xf32>
    %c0_36 = arith.constant 0 : index
    %c0_37 = arith.constant 0 : index
    %101 = vector.load %arg6[%c0_36, %c0_37] : memref<64x256xf32, #tpu.memory_space<vmem>>, vector<64x256xf32>
    tpu.vector_store %arg6[%c0_36, %c0_37], %100 {strides = array<i32>} : memref<64x256xf32, #tpu.memory_space<vmem>>, vector<64x256xf32>,
    return
  }
  func.func @transform_0(%arg0: i32, %arg1: i32) -> (i32, i32) {
    %c0_i32 = arith.constant 0 : i32
    %c0_i32_0 = arith.constant 0 : i32
    return %arg0, %c0_i32 : i32, i32
  }
  func.func @transform_1(%arg0: i32, %arg1: i32) -> (i32, i32) {
    %c0_i32 = arith.constant 0 : i32
    %c0_i32_0 = arith.constant 0 : i32
    return %arg0, %c0_i32 : i32, i32
  }
  func.func @transform_2(%arg0: i32, %arg1: i32) -> (i32, i32) {
    %c0_i32 = arith.constant 0 : i32
    %c0_i32_0 = arith.constant 0 : i32
    return %c0_i32, %arg1 : i32, i32
  }
  func.func @transform_3(%arg0: i32, %arg1: i32) -> (i32, i32) {
    %c0_i32 = arith.constant 0 : i32
    %c0_i32_0 = arith.constant 0 : i32
    return %c0_i32, %arg1 : i32, i32
  }
  func.func @transform_4(%arg0: i32, %arg1: i32) -> (i32, i32) {
    %c0_i32 = arith.constant 0 : i32
    return %arg0, %arg1 : i32, i32
  }
}

</mosaic_0001>

<llo_original>
// kernel: tpu_custom_call.1
$region0: #{tpu_custom_call.1}
  #allocation0 [shape = 'u32[]', space=smem, size = 0x4, offset = 0x4, fixed_abs, tag = 'smem constant byte address 0x4 - core index']
  #allocation1 [shape = 'u32[144,128]{1,0:T(1,128)}', space=vmem, size = 0x12000, scoped, tag = 'internal scratch']
  %s0 = inlined_call_operand.vmem [shape: f32[64,1], index: 0, kind: input, shape index: {}]
  %s1 = inlined_call_operand.vmem [shape: f32[64,1], index: 1, kind: input, shape index: {}]
  %s2 = inlined_call_operand.vmem [shape: f32[1,256], index: 2, kind: input, shape index: {}]
  %s3 = inlined_call_operand.vmem [shape: f32[1,256], index: 3, kind: input, shape index: {}]
  %s4 = inlined_call_operand.hbm [shape: f32[64,256], index: 4, kind: output, shape index: {}]
  %s5 = sld [smem:[#allocation0]]
  $region26: #{tpu_custom_call.1} parent=0
    _
  %s7 = ssub.s32 1, %s5
  %s8 = scalar_select 0, %s7, %s5
  $region1: #{tpu_custom_call.1} parent=0
    #allocation2 [shape = 'u8[65536]{0}', space=vmem, size = 0x10000, scoped, tag = 'output window, operand 0, single buffered']
    #allocation3 [shape = 's32[1]{0}', space=sflag, size = 0x4, scoped, tag = 'scoped memory for tpu_custom_call.1']
    %9 = vsyncpa [#allocation3], 0
    // Predicated region
    $region2: #{tpu_custom_call.1} parent=1 // pred_check
      _
    $region3: #{tpu_custom_call.1} parent=1 // pred_check_branch
      %11 = sbr.rel (0) target = $region5
    $region4: #{tpu_custom_call.1} parent=1 // pred_region
      _
    $region5: #{tpu_custom_call.1} parent=1 // pred_fallthru
      _
    // Predicated region
    $region6: #{tpu_custom_call.1} parent=1 // pred_check
      _
    $region7: #{tpu_custom_call.1} parent=1 // pred_check_branch
      %13 = sbr.rel (0) target = $region9
    $region8: #{tpu_custom_call.1} parent=1 // pred_region
      _
    $region9: #{tpu_custom_call.1} parent=1 // pred_fallthru
      _
    // Predicated region
    $region10: #{tpu_custom_call.1} parent=1 // pred_check
      _
    $region11: #{tpu_custom_call.1} parent=1 // pred_check_branch
      %15 = sbr.rel (0) target = $region13
    $region12: #{tpu_custom_call.1} parent=1 // pred_region
      _
    $region13: #{tpu_custom_call.1} parent=1 // pred_fallthru
      _
    // Predicated region
    $region14: #{tpu_custom_call.1} parent=1 // pred_check
      _
    $region15: #{tpu_custom_call.1} parent=1 // pred_check_branch
      %17 = sbr.rel (0) target = $region17
    $region16: #{tpu_custom_call.1} parent=1 // pred_region
      _
    $region17: #{tpu_custom_call.1} parent=1 // pred_fallthru
      _
    %v18 = vld [vmem:[%s0] sm:$0xff]
    %v19 = vld [vmem:[%s0 + $0x8] sm:$0xff]
    %v20 = vld [vmem:[%s0 + $0x10] sm:$0xff]
    %v21 = vld [vmem:[%s0 + $0x18] sm:$0xff]
    %v22 = vld [vmem:[%s0 + $0x20] sm:$0xff]
    %v23 = vld [vmem:[%s0 + $0x28] sm:$0xff]
    %v24 = vld [vmem:[%s0 + $0x30] sm:$0xff]
    %v25 = vld [vmem:[%s0 + $0x38] sm:$0xff]
    %v26 = vld [vmem:[%s2] sm:$0x3]
    %28 = vset.pattern.permute.xlu0 0
    %29 = vperm.xlu0 %28, %v18
    %v30 = vpop.permute.xlu0 %29
    %33 = vset.pattern.permute.xlu0 0
    %34 = vperm.xlu0 %33, %v19
    %v35 = vpop.permute.xlu0 %34
    %38 = vset.pattern.permute.xlu0 0
    %39 = vperm.xlu0 %38, %v20
    %v40 = vpop.permute.xlu0 %39
    %43 = vset.pattern.permute.xlu0 0
    %44 = vperm.xlu0 %43, %v21
    %v45 = vpop.permute.xlu0 %44
    %48 = vset.pattern.permute.xlu0 0
    %49 = vperm.xlu0 %48, %v22
    %v50 = vpop.permute.xlu0 %49
    %53 = vset.pattern.permute.xlu0 0
    %54 = vperm.xlu0 %53, %v23
    %v55 = vpop.permute.xlu0 %54
    %58 = vset.pattern.permute.xlu0 0
    %59 = vperm.xlu0 %58, %v24
    %v60 = vpop.permute.xlu0 %59
    %63 = vset.pattern.permute.xlu0 0
    %64 = vperm.xlu0 %63, %v25
    %v65 = vpop.permute.xlu0 %64
    %v68 = vlaneseq
    %v69 = vshrl.u32 %v68, 7
    %v70 = vsub.s32 0, %v69
    %v71 = vrot.slane %v26, %v70
    %v72 = vlaneseq
    %v73 = vshrl.u32 %v72, 7
    %v74 = vsub.s32 1, %v73
    %v75 = vrot.slane %v26, %v74
    %v78 = vsub.f32 %v30, %v71
    %v79 = vsub.f32 %v30, %v75
    %v80 = vsub.f32 %v35, %v71
    %v81 = vsub.f32 %v35, %v75
    %v82 = vsub.f32 %v40, %v71
    %v83 = vsub.f32 %v40, %v75
    %v84 = vsub.f32 %v45, %v71
    %v85 = vsub.f32 %v45, %v75
    %v86 = vsub.f32 %v50, %v71
    %v87 = vsub.f32 %v50, %v75
    %v88 = vsub.f32 %v55, %v71
    %v89 = vsub.f32 %v55, %v75
    %v90 = vsub.f32 %v60, %v71
    %v91 = vsub.f32 %v60, %v75
    %v92 = vsub.f32 %v65, %v71
    %v93 = vsub.f32 %v65, %v75
    %v94 = vld [vmem:[%s1] sm:$0xff]
    %v95 = vld [vmem:[%s1 + $0x8] sm:$0xff]
    %v96 = vld [vmem:[%s1 + $0x10] sm:$0xff]
    %v97 = vld [vmem:[%s1 + $0x18] sm:$0xff]
    %v98 = vld [vmem:[%s1 + $0x20] sm:$0xff]
    %v99 = vld [vmem:[%s1 + $0x28] sm:$0xff]
    %v100 = vld [vmem:[%s1 + $0x30] sm:$0xff]
    %v101 = vld [vmem:[%s1 + $0x38] sm:$0xff]
    %v102 = vld [vmem:[%s3] sm:$0x3]
    %104 = vset.pattern.permute.xlu0 0
    %105 = vperm.xlu0 %104, %v94
    %v106 = vpop.permute.xlu0 %105
    %109 = vset.pattern.permute.xlu0 0
    %110 = vperm.xlu0 %109, %v95
    %v111 = vpop.permute.xlu0 %110
    %114 = vset.pattern.permute.xlu0 0
    %115 = vperm.xlu0 %114, %v96
    %v116 = vpop.permute.xlu0 %115
    %119 = vset.pattern.permute.xlu0 0
    %120 = vperm.xlu0 %119, %v97
    %v121 = vpop.permute.xlu0 %120
    %124 = vset.pattern.permute.xlu0 0
    %125 = vperm.xlu0 %124, %v98
    %v126 = vpop.permute.xlu0 %125
    %129 = vset.pattern.permute.xlu0 0
    %130 = vperm.xlu0 %129, %v99
    %v131 = vpop.permute.xlu0 %130
    %134 = vset.pattern.permute.xlu0 0
    %135 = vperm.xlu0 %134, %v100
    %v136 = vpop.permute.xlu0 %135
    %139 = vset.pattern.permute.xlu0 0
    %140 = vperm.xlu0 %139, %v101
    %v141 = vpop.permute.xlu0 %140
    %v144 = vlaneseq
    %v145 = vshrl.u32 %v144, 7
    %v146 = vsub.s32 0, %v145
    %v147 = vrot.slane %v102, %v146
    %v148 = vlaneseq
    %v149 = vshrl.u32 %v148, 7
    %v150 = vsub.s32 1, %v149
    %v151 = vrot.slane %v102, %v150
    %v154 = vsub.f32 %v106, %v147
    %v155 = vsub.f32 %v106, %v151
    %v156 = vsub.f32 %v111, %v147
    %v157 = vsub.f32 %v111, %v151
    %v158 = vsub.f32 %v116, %v147
    %v159 = vsub.f32 %v116, %v151
    %v160 = vsub.f32 %v121, %v147
    %v161 = vsub.f32 %v121, %v151
    %v162 = vsub.f32 %v126, %v147
    %v163 = vsub.f32 %v126, %v151
    %v164 = vsub.f32 %v131, %v147
    %v165 = vsub.f32 %v131, %v151
    %v166 = vsub.f32 %v136, %v147
    %v167 = vsub.f32 %v136, %v151
    %v168 = vsub.f32 %v141, %v147
    %v169 = vsub.f32 %v141, %v151
    %v170 = vmul.f32 %v78, %v78
    %v171 = vmul.f32 %v79, %v79
    %v172 = vmul.f32 %v80, %v80
    %v173 = vmul.f32 %v81, %v81
    %v174 = vmul.f32 %v82, %v82
    %v175 = vmul.f32 %v83, %v83
    %v176 = vmul.f32 %v84, %v84
    %v177 = vmul.f32 %v85, %v85
    %v178 = vmul.f32 %v86, %v86
    %v179 = vmul.f32 %v87, %v87
    %v180 = vmul.f32 %v88, %v88
    %v181 = vmul.f32 %v89, %v89
    %v182 = vmul.f32 %v90, %v90
    %v183 = vmul.f32 %v91, %v91
    %v184 = vmul.f32 %v92, %v92
    %v185 = vmul.f32 %v93, %v93
    %v186 = vmul.f32 %v154, %v154
    %v187 = vmul.f32 %v155, %v155
    %v188 = vmul.f32 %v156, %v156
    %v189 = vmul.f32 %v157, %v157
    %v190 = vmul.f32 %v158, %v158
    %v191 = vmul.f32 %v159, %v159
    %v192 = vmul.f32 %v160, %v160
    %v193 = vmul.f32 %v161, %v161
    %v194 = vmul.f32 %v162, %v162
    %v195 = vmul.f32 %v163, %v163
    %v196 = vmul.f32 %v164, %v164
    %v197 = vmul.f32 %v165, %v165
    %v198 = vmul.f32 %v166, %v166
    %v199 = vmul.f32 %v167, %v167
    %v200 = vmul.f32 %v168, %v168
    %v201 = vmul.f32 %v169, %v169
    %v202 = vadd.f32 %v170, %v186
    %v203 = vadd.f32 %v171, %v187
    %v204 = vadd.f32 %v172, %v188
    %v205 = vadd.f32 %v173, %v189
    %v206 = vadd.f32 %v174, %v190
    %v207 = vadd.f32 %v175, %v191
    %v208 = vadd.f32 %v176, %v192
    %v209 = vadd.f32 %v177, %v193
    %v210 = vadd.f32 %v178, %v194
    %v211 = vadd.f32 %v179, %v195
    %v212 = vadd.f32 %v180, %v196
    %v213 = vadd.f32 %v181, %v197
    %v214 = vadd.f32 %v182, %v198
    %v215 = vadd.f32 %v183, %v199
    %v216 = vadd.f32 %v184, %v200
    %v217 = vadd.f32 %v185, %v201
    %v218 = vmul.f32 %v202, 1000000.0
    %v219 = vmul.f32 %v203, 1000000.0
    %v220 = vmul.f32 %v204, 1000000.0
    %v221 = vmul.f32 %v205, 1000000.0
    %v222 = vmul.f32 %v206, 1000000.0
    %v223 = vmul.f32 %v207, 1000000.0
    %v224 = vmul.f32 %v208, 1000000.0
    %v225 = vmul.f32 %v209, 1000000.0
    %v226 = vmul.f32 %v210, 1000000.0
    %v227 = vmul.f32 %v211, 1000000.0
    %v228 = vmul.f32 %v212, 1000000.0
    %v229 = vmul.f32 %v213, 1000000.0
    %v230 = vmul.f32 %v214, 1000000.0
    %v231 = vmul.f32 %v215, 1000000.0
    %v232 = vmul.f32 %v216, 1000000.0
    %v233 = vmul.f32 %v217, 1000000.0
    %v234 = vmin.f32 %v218, 64.0
    %v235 = vmin.f32 %v219, 64.0
    %v236 = vmin.f32 %v220, 64.0
    %v237 = vmin.f32 %v221, 64.0
    %v238 = vmin.f32 %v222, 64.0
    %v239 = vmin.f32 %v223, 64.0
    %v240 = vmin.f32 %v224, 64.0
    %v241 = vmin.f32 %v225, 64.0
    %v242 = vmin.f32 %v226, 64.0
    %v243 = vmin.f32 %v227, 64.0
    %v244 = vmin.f32 %v228, 64.0
    %v245 = vmin.f32 %v229, 64.0
    %v246 = vmin.f32 %v230, 64.0
    %v247 = vmin.f32 %v231, 64.0
    %v248 = vmin.f32 %v232, 64.0
    %v249 = vmin.f32 %v233, 64.0
    %v250 = vmul.f32 %v234, -184.90524
    %v251 = vmul.f32 %v235, -184.90524
    %v252 = vmul.f32 %v236, -184.90524
    %v253 = vmul.f32 %v237, -184.90524
    %v254 = vmul.f32 %v238, -184.90524
    %v255 = vmul.f32 %v239, -184.90524
    %v256 = vmul.f32 %v240, -184.90524
    %v257 = vmul.f32 %v241, -184.90524
    %v258 = vmul.f32 %v242, -184.90524
    %v259 = vmul.f32 %v243, -184.90524
    %v260 = vmul.f32 %v244, -184.90524
    %v261 = vmul.f32 %v245, -184.90524
    %v262 = vmul.f32 %v246, -184.90524
    %v263 = vmul.f32 %v247, -184.90524
    %v264 = vmul.f32 %v248, -184.90524
    %v265 = vmul.f32 %v249, -184.90524
    %v266 = vadd.f32 %v250, 77392.33
    %v267 = vadd.f32 %v251, 77392.33
    %v268 = vadd.f32 %v252, 77392.33
    %v269 = vadd.f32 %v253, 77392.33
    %v270 = vadd.f32 %v254, 77392.33
    %v271 = vadd.f32 %v255, 77392.33
    %v272 = vadd.f32 %v256, 77392.33
    %v273 = vadd.f32 %v257, 77392.33
    %v274 = vadd.f32 %v258, 77392.33
    %v275 = vadd.f32 %v259, 77392.33
    %v276 = vadd.f32 %v260, 77392.33
    %v277 = vadd.f32 %v261, 77392.33
    %v278 = vadd.f32 %v262, 77392.33
    %v279 = vadd.f32 %v263, 77392.33
    %v280 = vadd.f32 %v264, 77392.33
    %v281 = vadd.f32 %v265, 77392.33
    %v282 = vmul.f32 %v234, %v266
    %v283 = vmul.f32 %v235, %v267
    %v284 = vmul.f32 %v236, %v268
    %v285 = vmul.f32 %v237, %v269
    %v286 = vmul.f32 %v238, %v270
    %v287 = vmul.f32 %v239, %v271
    %v288 = vmul.f32 %v240, %v272
    %v289 = vmul.f32 %v241, %v273
    %v290 = vmul.f32 %v242, %v274
    %v291 = vmul.f32 %v243, %v275
    %v292 = vmul.f32 %v244, %v276
    %v293 = vmul.f32 %v245, %v277
    %v294 = vmul.f32 %v246, %v278
    %v295 = vmul.f32 %v247, %v279
    %v296 = vmul.f32 %v248, %v280
    %v297 = vmul.f32 %v249, %v281
    %v298 = vadd.f32 %v282, -11214424.0
    %v299 = vadd.f32 %v283, -11214424.0
    %v300 = vadd.f32 %v284, -11214424.0
    %v301 = vadd.f32 %v285, -11214424.0
    %v302 = vadd.f32 %v286, -11214424.0
    %v303 = vadd.f32 %v287, -11214424.0
    %v304 = vadd.f32 %v288, -11214424.0
    %v305 = vadd.f32 %v289, -11214424.0
    %v306 = vadd.f32 %v290, -11214424.0
    %v307 = vadd.f32 %v291, -11214424.0
    %v308 = vadd.f32 %v292, -11214424.0
    %v309 = vadd.f32 %v293, -11214424.0
    %v310 = vadd.f32 %v294, -11214424.0
    %v311 = vadd.f32 %v295, -11214424.0
    %v312 = vadd.f32 %v296, -11214424.0
    %v313 = vadd.f32 %v297, -11214424.0
    %v314 = vmul.f32 %v234, %v298
    %v315 = vmul.f32 %v235, %v299
    %v316 = vmul.f32 %v236, %v300
    %v317 = vmul.f32 %v237, %v301
    %v318 = vmul.f32 %v238, %v302
    %v319 = vmul.f32 %v239, %v303
    %v320 = vmul.f32 %v240, %v304
    %v321 = vmul.f32 %v241, %v305
    %v322 = vmul.f32 %v242, %v306
    %v323 = vmul.f32 %v243, %v307
    %v324 = vmul.f32 %v244, %v308
    %v325 = vmul.f32 %v245, %v309
    %v326 = vmul.f32 %v246, %v310
    %v327 = vmul.f32 %v247, %v311
    %v328 = vmul.f32 %v248, %v312
    %v329 = vmul.f32 %v249, %v313
    %v330 = vadd.f32 %v314, 6.5161965e+08
    %v331 = vadd.f32 %v315, 6.5161965e+08
    %v332 = vadd.f32 %v316, 6.5161965e+08
    %v333 = vadd.f32 %v317, 6.5161965e+08
    %v334 = vadd.f32 %v318, 6.5161965e+08
    %v335 = vadd.f32 %v319, 6.5161965e+08
    %v336 = vadd.f32 %v320, 6.5161965e+08
    %v337 = vadd.f32 %v321, 6.5161965e+08
    %v338 = vadd.f32 %v322, 6.5161965e+08
    %v339 = vadd.f32 %v323, 6.5161965e+08
    %v340 = vadd.f32 %v324, 6.5161965e+08
    %v341 = vadd.f32 %v325, 6.5161965e+08
    %v342 = vadd.f32 %v326, 6.5161965e+08
    %v343 = vadd.f32 %v327, 6.5161965e+08
    %v344 = vadd.f32 %v328, 6.5161965e+08
    %v345 = vadd.f32 %v329, 6.5161965e+08
    %v346 = vmul.f32 %v234, %v330
    %v347 = vmul.f32 %v235, %v331
    %v348 = vmul.f32 %v236, %v332
    %v349 = vmul.f32 %v237, %v333
    %v350 = vmul.f32 %v238, %v334
    %v351 = vmul.f32 %v239, %v335
    %v352 = vmul.f32 %v240, %v336
    %v353 = vmul.f32 %v241, %v337
    %v354 = vmul.f32 %v242, %v338
    %v355 = vmul.f32 %v243, %v339
    %v356 = vmul.f32 %v244, %v340
    %v357 = vmul.f32 %v245, %v341
    %v358 = vmul.f32 %v246, %v342
    %v359 = vmul.f32 %v247, %v343
    %v360 = vmul.f32 %v248, %v344
    %v361 = vmul.f32 %v249, %v345
    %v362 = vadd.f32 %v346, -1.3362591e+10
    %v363 = vadd.f32 %v347, -1.3362591e+10
    %v364 = vadd.f32 %v348, -1.3362591e+10
    %v365 = vadd.f32 %v349, -1.3362591e+10
    %v366 = vadd.f32 %v350, -1.3362591e+10
    %v367 = vadd.f32 %v351, -1.3362591e+10
    %v368 = vadd.f32 %v352, -1.3362591e+10
    %v369 = vadd.f32 %v353, -1.3362591e+10
    %v370 = vadd.f32 %v354, -1.3362591e+10
    %v371 = vadd.f32 %v355, -1.3362591e+10
    %v372 = vadd.f32 %v356, -1.3362591e+10
    %v373 = vadd.f32 %v357, -1.3362591e+10
    %v374 = vadd.f32 %v358, -1.3362591e+10
    %v375 = vadd.f32 %v359, -1.3362591e+10
    %v376 = vadd.f32 %v360, -1.3362591e+10
    %v377 = vadd.f32 %v361, -1.3362591e+10
    %v378 = vmul.f32 %v234, %v362
    %v379 = vmul.f32 %v235, %v363
    %v380 = vmul.f32 %v236, %v364
    %v381 = vmul.f32 %v237, %v365
    %v382 = vmul.f32 %v238, %v366
    %v383 = vmul.f32 %v239, %v367
    %v384 = vmul.f32 %v240, %v368
    %v385 = vmul.f32 %v241, %v369
    %v386 = vmul.f32 %v242, %v370
    %v387 = vmul.f32 %v243, %v371
    %v388 = vmul.f32 %v244, %v372
    %v389 = vmul.f32 %v245, %v373
    %v390 = vmul.f32 %v246, %v374
    %v391 = vmul.f32 %v247, %v375
    %v392 = vmul.f32 %v248, %v376
    %v393 = vmul.f32 %v249, %v377
    %v394 = vadd.f32 %v378, 5.756849e+10
    %v395 = vadd.f32 %v379, 5.756849e+10
    %v396 = vadd.f32 %v380, 5.756849e+10
    %v397 = vadd.f32 %v381, 5.756849e+10
    %v398 = vadd.f32 %v382, 5.756849e+10
    %v399 = vadd.f32 %v383, 5.756849e+10
    %v400 = vadd.f32 %v384, 5.756849e+10
    %v401 = vadd.f32 %v385, 5.756849e+10
    %v402 = vadd.f32 %v386, 5.756849e+10
    %v403 = vadd.f32 %v387, 5.756849e+10
    %v404 = vadd.f32 %v388, 5.756849e+10
    %v405 = vadd.f32 %v389, 5.756849e+10
    %v406 = vadd.f32 %v390, 5.756849e+10
    %v407 = vadd.f32 %v391, 5.756849e+10
    %v408 = vadd.f32 %v392, 5.756849e+10
    %v409 = vadd.f32 %v393, 5.756849e+10
    %v410 = vadd.f32 %v234, 267.85327
    %v411 = vadd.f32 %v235, 267.85327
    %v412 = vadd.f32 %v236, 267.85327
    %v413 = vadd.f32 %v237, 267.85327
    %v414 = vadd.f32 %v238, 267.85327
    %v415 = vadd.f32 %v239, 267.85327
    %v416 = vadd.f32 %v240, 267.85327
    %v417 = vadd.f32 %v241, 267.85327
    %v418 = vadd.f32 %v242, 267.85327
    %v419 = vadd.f32 %v243, 267.85327
    %v420 = vadd.f32 %v244, 267.85327
    %v421 = vadd.f32 %v245, 267.85327
    %v422 = vadd.f32 %v246, 267.85327
    %v423 = vadd.f32 %v247, 267.85327
    %v424 = vadd.f32 %v248, 267.85327
    %v425 = vadd.f32 %v249, 267.85327
    %v426 = vmul.f32 %v234, %v410
    %v427 = vmul.f32 %v235, %v411
    %v428 = vmul.f32 %v236, %v412
    %v429 = vmul.f32 %v237, %v413
    %v430 = vmul.f32 %v238, %v414
    %v431 = vmul.f32 %v239, %v415
    %v432 = vmul.f32 %v240, %v416
    %v433 = vmul.f32 %v241, %v417
    %v434 = vmul.f32 %v242, %v418
    %v435 = vmul.f32 %v243, %v419
    %v436 = vmul.f32 %v244, %v420
    %v437 = vmul.f32 %v245, %v421
    %v438 = vmul.f32 %v246, %v422
    %v439 = vmul.f32 %v247, %v423
    %v440 = vmul.f32 %v248, %v424
    %v441 = vmul.f32 %v249, %v425
    %v442 = vadd.f32 %v426, 59272.65
    %v443 = vadd.f32 %v427, 59272.65
    %v444 = vadd.f32 %v428, 59272.65
    %v445 = vadd.f32 %v429, 59272.65
    %v446 = vadd.f32 %v430, 59272.65
    %v447 = vadd.f32 %v431, 59272.65
    %v448 = vadd.f32 %v432, 59272.65
    %v449 = vadd.f32 %v433, 59272.65
    %v450 = vadd.f32 %v434, 59272.65
    %v451 = vadd.f32 %v435, 59272.65
    %v452 = vadd.f32 %v436, 59272.65
    %v453 = vadd.f32 %v437, 59272.65
    %v454 = vadd.f32 %v438, 59272.65
    %v455 = vadd.f32 %v439, 59272.65
    %v456 = vadd.f32 %v440, 59272.65
    %v457 = vadd.f32 %v441, 59272.65
    %v458 = vmul.f32 %v234, %v442
    %v459 = vmul.f32 %v235, %v443
    %v460 = vmul.f32 %v236, %v444
    %v461 = vmul.f32 %v237, %v445
    %v462 = vmul.f32 %v238, %v446
    %v463 = vmul.f32 %v239, %v447
    %v464 = vmul.f32 %v240, %v448
    %v465 = vmul.f32 %v241, %v449
    %v466 = vmul.f32 %v242, %v450
    %v467 = vmul.f32 %v243, %v451
    %v468 = vmul.f32 %v244, %v452
    %v469 = vmul.f32 %v245, %v453
    %v470 = vmul.f32 %v246, %v454
    %v471 = vmul.f32 %v247, %v455
    %v472 = vmul.f32 %v248, %v456
    %v473 = vmul.f32 %v249, %v457
    %v474 = vadd.f32 %v458, 9494681.0
    %v475 = vadd.f32 %v459, 9494681.0
    %v476 = vadd.f32 %v460, 9494681.0
    %v477 = vadd.f32 %v461, 9494681.0
    %v478 = vadd.f32 %v462, 9494681.0
    %v479 = vadd.f32 %v463, 9494681.0
    %v480 = vadd.f32 %v464, 9494681.0
    %v481 = vadd.f32 %v465, 9494681.0
    %v482 = vadd.f32 %v466, 9494681.0
    %v483 = vadd.f32 %v467, 9494681.0
    %v484 = vadd.f32 %v468, 9494681.0
    %v485 = vadd.f32 %v469, 9494681.0
    %v486 = vadd.f32 %v470, 9494681.0
    %v487 = vadd.f32 %v471, 9494681.0
    %v488 = vadd.f32 %v472, 9494681.0
    %v489 = vadd.f32 %v473, 9494681.0
    %v490 = vmul.f32 %v234, %v474
    %v491 = vmul.f32 %v235, %v475
    %v492 = vmul.f32 %v236, %v476
    %v493 = vmul.f32 %v237, %v477
    %v494 = vmul.f32 %v238, %v478
    %v495 = vmul.f32 %v239, %v479
    %v496 = vmul.f32 %v240, %v480
    %v497 = vmul.f32 %v241, %v481
    %v498 = vmul.f32 %v242, %v482
    %v499 = vmul.f32 %v243, %v483
    %v500 = vmul.f32 %v244, %v484
    %v501 = vmul.f32 %v245, %v485
    %v502 = vmul.f32 %v246, %v486
    %v503 = vmul.f32 %v247, %v487
    %v504 = vmul.f32 %v248, %v488
    %v505 = vmul.f32 %v249, %v489
    %v506 = vadd.f32 %v490, 1.029533e+09
    %v507 = vadd.f32 %v491, 1.029533e+09
    %v508 = vadd.f32 %v492, 1.029533e+09
    %v509 = vadd.f32 %v493, 1.029533e+09
    %v510 = vadd.f32 %v494, 1.029533e+09
    %v511 = vadd.f32 %v495, 1.029533e+09
    %v512 = vadd.f32 %v496, 1.029533e+09
    %v513 = vadd.f32 %v497, 1.029533e+09
    %v514 = vadd.f32 %v498, 1.029533e+09
    %v515 = vadd.f32 %v499, 1.029533e+09
    %v516 = vadd.f32 %v500, 1.029533e+09
    %v517 = vadd.f32 %v501, 1.029533e+09
    %v518 = vadd.f32 %v502, 1.029533e+09
    %v519 = vadd.f32 %v503, 1.029533e+09
    %v520 = vadd.f32 %v504, 1.029533e+09
    %v521 = vadd.f32 %v505, 1.029533e+09
    %v522 = vmul.f32 %v234, %v506
    %v523 = vmul.f32 %v235, %v507
    %v524 = vmul.f32 %v236, %v508
    %v525 = vmul.f32 %v237, %v509
    %v526 = vmul.f32 %v238, %v510
    %v527 = vmul.f32 %v239, %v511
    %v528 = vmul.f32 %v240, %v512
    %v529 = vmul.f32 %v241, %v513
    %v530 = vmul.f32 %v242, %v514
    %v531 = vmul.f32 %v243, %v515
    %v532 = vmul.f32 %v244, %v516
    %v533 = vmul.f32 %v245, %v517
    %v534 = vmul.f32 %v246, %v518
    %v535 = vmul.f32 %v247, %v519
    %v536 = vmul.f32 %v248, %v520
    %v537 = vmul.f32 %v249, %v521
    %v538 = vadd.f32 %v522, 5.756849e+10
    %v539 = vadd.f32 %v523, 5.756849e+10
    %v540 = vadd.f32 %v524, 5.756849e+10
    %v541 = vadd.f32 %v525, 5.756849e+10
    %v542 = vadd.f32 %v526, 5.756849e+10
    %v543 = vadd.f32 %v527, 5.756849e+10
    %v544 = vadd.f32 %v528, 5.756849e+10
    %v545 = vadd.f32 %v529, 5.756849e+10
    %v546 = vadd.f32 %v530, 5.756849e+10
    %v547 = vadd.f32 %v531, 5.756849e+10
    %v548 = vadd.f32 %v532, 5.756849e+10
    %v549 = vadd.f32 %v533, 5.756849e+10
    %v550 = vadd.f32 %v534, 5.756849e+10
    %v551 = vadd.f32 %v535, 5.756849e+10
    %v552 = vadd.f32 %v536, 5.756849e+10
    %v553 = vadd.f32 %v537, 5.756849e+10
    %v554 = vrcp.pop %v538
    %v555 = vrcp.pop %v539
    %v556 = vrcp.pop %v540
    %v557 = vrcp.pop %v541
    %v558 = vrcp.pop %v542
    %v559 = vrcp.pop %v543
    %v560 = vrcp.pop %v544
    %v561 = vrcp.pop %v545
    %v562 = vrcp.pop %v546
    %v563 = vrcp.pop %v547
    %v564 = vrcp.pop %v548
    %v565 = vrcp.pop %v549
    %v566 = vrcp.pop %v550
    %v567 = vrcp.pop %v551
    %v568 = vrcp.pop %v552
    %v569 = vrcp.pop %v553
    %v570 = vmul.f32 %v394, %v554
    %v571 = vmul.f32 %v395, %v555
    %v572 = vmul.f32 %v396, %v556
    %v573 = vmul.f32 %v397, %v557
    %v574 = vmul.f32 %v398, %v558
    %v575 = vmul.f32 %v399, %v559
    %v576 = vmul.f32 %v400, %v560
    %v577 = vmul.f32 %v401, %v561
    %v578 = vmul.f32 %v402, %v562
    %v579 = vmul.f32 %v403, %v563
    %v580 = vmul.f32 %v404, %v564
    %v581 = vmul.f32 %v405, %v565
    %v582 = vmul.f32 %v406, %v566
    %v583 = vmul.f32 %v407, %v567
    %v584 = vmul.f32 %v408, %v568
    %v585 = vmul.f32 %v409, %v569
    %v586 = vmax.f32 %v218, 64.0
    %v587 = vmax.f32 %v219, 64.0
    %v588 = vmax.f32 %v220, 64.0
    %v589 = vmax.f32 %v221, 64.0
    %v590 = vmax.f32 %v222, 64.0
    %v591 = vmax.f32 %v223, 64.0
    %v592 = vmax.f32 %v224, 64.0
    %v593 = vmax.f32 %v225, 64.0
    %v594 = vmax.f32 %v226, 64.0
    %v595 = vmax.f32 %v227, 64.0
    %v596 = vmax.f32 %v228, 64.0
    %v597 = vmax.f32 %v229, 64.0
    %v598 = vmax.f32 %v230, 64.0
    %v599 = vmax.f32 %v231, 64.0
    %v600 = vmax.f32 %v232, 64.0
    %v601 = vmax.f32 %v233, 64.0
    %v602 = vrsqrt.pop %v586
    %v603 = vrsqrt.pop %v587
    %v604 = vrsqrt.pop %v588
    %v605 = vrsqrt.pop %v589
    %v606 = vrsqrt.pop %v590
    %v607 = vrsqrt.pop %v591
    %v608 = vrsqrt.pop %v592
    %v609 = vrsqrt.pop %v593
    %v610 = vrsqrt.pop %v594
    %v611 = vrsqrt.pop %v595
    %v612 = vrsqrt.pop %v596
    %v613 = vrsqrt.pop %v597
    %v614 = vrsqrt.pop %v598
    %v615 = vrsqrt.pop %v599
    %v616 = vrsqrt.pop %v600
    %v617 = vrsqrt.pop %v601
    %v618 = vmul.f32 %v586, %v602
    %v619 = vmul.f32 %v587, %v603
    %v620 = vmul.f32 %v588, %v604
    %v621 = vmul.f32 %v589, %v605
    %v622 = vmul.f32 %v590, %v606
    %v623 = vmul.f32 %v591, %v607
    %v624 = vmul.f32 %v592, %v608
    %v625 = vmul.f32 %v593, %v609
    %v626 = vmul.f32 %v594, %v610
    %v627 = vmul.f32 %v595, %v611
    %v628 = vmul.f32 %v596, %v612
    %v629 = vmul.f32 %v597, %v613
    %v630 = vmul.f32 %v598, %v614
    %v631 = vmul.f32 %v599, %v615
    %v632 = vmul.f32 %v600, %v616
    %v633 = vmul.f32 %v601, %v617
    %v634 = vmul.f32 %v602, 8.0
    %v635 = vmul.f32 %v603, 8.0
    %v636 = vmul.f32 %v604, 8.0
    %v637 = vmul.f32 %v605, 8.0
    %v638 = vmul.f32 %v606, 8.0
    %v639 = vmul.f32 %v607, 8.0
    %v640 = vmul.f32 %v608, 8.0
    %v641 = vmul.f32 %v609, 8.0
    %v642 = vmul.f32 %v610, 8.0
    %v643 = vmul.f32 %v611, 8.0
    %v644 = vmul.f32 %v612, 8.0
    %v645 = vmul.f32 %v613, 8.0
    %v646 = vmul.f32 %v614, 8.0
    %v647 = vmul.f32 %v615, 8.0
    %v648 = vmul.f32 %v616, 8.0
    %v649 = vmul.f32 %v617, 8.0
    %v650 = vmul.f32 %v634, %v634
    %v651 = vmul.f32 %v635, %v635
    %v652 = vmul.f32 %v636, %v636
    %v653 = vmul.f32 %v637, %v637
    %v654 = vmul.f32 %v638, %v638
    %v655 = vmul.f32 %v639, %v639
    %v656 = vmul.f32 %v640, %v640
    %v657 = vmul.f32 %v641, %v641
    %v658 = vmul.f32 %v642, %v642
    %v659 = vmul.f32 %v643, %v643
    %v660 = vmul.f32 %v644, %v644
    %v661 = vmul.f32 %v645, %v645
    %v662 = vmul.f32 %v646, %v646
    %v663 = vmul.f32 %v647, %v647
    %v664 = vmul.f32 %v648, %v648
    %v665 = vmul.f32 %v649, %v649
    %v666 = vsub.f32 %v618, 0.7853982
    %v667 = vsub.f32 %v619, 0.7853982
    %v668 = vsub.f32 %v620, 0.7853982
    %v669 = vsub.f32 %v621, 0.7853982
    %v670 = vsub.f32 %v622, 0.7853982
    %v671 = vsub.f32 %v623, 0.7853982
    %v672 = vsub.f32 %v624, 0.7853982
    %v673 = vsub.f32 %v625, 0.7853982
    %v674 = vsub.f32 %v626, 0.7853982
    %v675 = vsub.f32 %v627, 0.7853982
    %v676 = vsub.f32 %v628, 0.7853982
    %v677 = vsub.f32 %v629, 0.7853982
    %v678 = vsub.f32 %v630, 0.7853982
    %v679 = vsub.f32 %v631, 0.7853982
    %v680 = vsub.f32 %v632, 0.7853982
    %v681 = vsub.f32 %v633, 0.7853982
    %v682 = vmul.f32 %v650, 2.0938872e-07
    %v683 = vmul.f32 %v651, 2.0938872e-07
    %v684 = vmul.f32 %v652, 2.0938872e-07
    %v685 = vmul.f32 %v653, 2.0938872e-07
    %v686 = vmul.f32 %v654, 2.0938872e-07
    %v687 = vmul.f32 %v655, 2.0938872e-07
    %v688 = vmul.f32 %v656, 2.0938872e-07
    %v689 = vmul.f32 %v657, 2.0938872e-07
    %v690 = vmul.f32 %v658, 2.0938872e-07
    %v691 = vmul.f32 %v659, 2.0938872e-07
    %v692 = vmul.f32 %v660, 2.0938872e-07
    %v693 = vmul.f32 %v661, 2.0938872e-07
    %v694 = vmul.f32 %v662, 2.0938872e-07
    %v695 = vmul.f32 %v663, 2.0938872e-07
    %v696 = vmul.f32 %v664, 2.0938872e-07
    %v697 = vmul.f32 %v665, 2.0938872e-07
    %v698 = vadd.f32 %v682, -2.0733708e-06
    %v699 = vadd.f32 %v683, -2.0733708e-06
    %v700 = vadd.f32 %v684, -2.0733708e-06
    %v701 = vadd.f32 %v685, -2.0733708e-06
    %v702 = vadd.f32 %v686, -2.0733708e-06
    %v703 = vadd.f32 %v687, -2.0733708e-06
    %v704 = vadd.f32 %v688, -2.0733708e-06
    %v705 = vadd.f32 %v689, -2.0733708e-06
    %v706 = vadd.f32 %v690, -2.0733708e-06
    %v707 = vadd.f32 %v691, -2.0733708e-06
    %v708 = vadd.f32 %v692, -2.0733708e-06
    %v709 = vadd.f32 %v693, -2.0733708e-06
    %v710 = vadd.f32 %v694, -2.0733708e-06
    %v711 = vadd.f32 %v695, -2.0733708e-06
    %v712 = vadd.f32 %v696, -2.0733708e-06
    %v713 = vadd.f32 %v697, -2.0733708e-06
    %v714 = vmul.f32 %v650, %v698
    %v715 = vmul.f32 %v651, %v699
    %v716 = vmul.f32 %v652, %v700
    %v717 = vmul.f32 %v653, %v701
    %v718 = vmul.f32 %v654, %v702
    %v719 = vmul.f32 %v655, %v703
    %v720 = vmul.f32 %v656, %v704
    %v721 = vmul.f32 %v657, %v705
    %v722 = vmul.f32 %v658, %v706
    %v723 = vmul.f32 %v659, %v707
    %v724 = vmul.f32 %v660, %v708
    %v725 = vmul.f32 %v661, %v709
    %v726 = vmul.f32 %v662, %v710
    %v727 = vmul.f32 %v663, %v711
    %v728 = vmul.f32 %v664, %v712
    %v729 = vmul.f32 %v665, %v713
    %v730 = vadd.f32 %v714, 2.7345104e-05
    %v731 = vadd.f32 %v715, 2.7345104e-05
    %v732 = vadd.f32 %v716, 2.7345104e-05
    %v733 = vadd.f32 %v717, 2.7345104e-05
    %v734 = vadd.f32 %v718, 2.7345104e-05
    %v735 = vadd.f32 %v719, 2.7345104e-05
    %v736 = vadd.f32 %v720, 2.7345104e-05
    %v737 = vadd.f32 %v721, 2.7345104e-05
    %v738 = vadd.f32 %v722, 2.7345104e-05
    %v739 = vadd.f32 %v723, 2.7345104e-05
    %v740 = vadd.f32 %v724, 2.7345104e-05
    %v741 = vadd.f32 %v725, 2.7345104e-05
    %v742 = vadd.f32 %v726, 2.7345104e-05
    %v743 = vadd.f32 %v727, 2.7345104e-05
    %v744 = vadd.f32 %v728, 2.7345104e-05
    %v745 = vadd.f32 %v729, 2.7345104e-05
    %v746 = vmul.f32 %v650, %v730
    %v747 = vmul.f32 %v651, %v731
    %v748 = vmul.f32 %v652, %v732
    %v749 = vmul.f32 %v653, %v733
    %v750 = vmul.f32 %v654, %v734
    %v751 = vmul.f32 %v655, %v735
    %v752 = vmul.f32 %v656, %v736
    %v753 = vmul.f32 %v657, %v737
    %v754 = vmul.f32 %v658, %v738
    %v755 = vmul.f32 %v659, %v739
    %v756 = vmul.f32 %v660, %v740
    %v757 = vmul.f32 %v661, %v741
    %v758 = vmul.f32 %v662, %v742
    %v759 = vmul.f32 %v663, %v743
    %v760 = vmul.f32 %v664, %v744
    %v761 = vmul.f32 %v665, %v745
    %v762 = vadd.f32 %v746, -0.0010986286
    %v763 = vadd.f32 %v747, -0.0010986286
    %v764 = vadd.f32 %v748, -0.0010986286
    %v765 = vadd.f32 %v749, -0.0010986286
    %v766 = vadd.f32 %v750, -0.0010986286
    %v767 = vadd.f32 %v751, -0.0010986286
    %v768 = vadd.f32 %v752, -0.0010986286
    %v769 = vadd.f32 %v753, -0.0010986286
    %v770 = vadd.f32 %v754, -0.0010986286
    %v771 = vadd.f32 %v755, -0.0010986286
    %v772 = vadd.f32 %v756, -0.0010986286
    %v773 = vadd.f32 %v757, -0.0010986286
    %v774 = vadd.f32 %v758, -0.0010986286
    %v775 = vadd.f32 %v759, -0.0010986286
    %v776 = vadd.f32 %v760, -0.0010986286
    %v777 = vadd.f32 %v761, -0.0010986286
    %v778 = vmul.f32 %v650, %v762
    %v779 = vmul.f32 %v651, %v763
    %v780 = vmul.f32 %v652, %v764
    %v781 = vmul.f32 %v653, %v765
    %v782 = vmul.f32 %v654, %v766
    %v783 = vmul.f32 %v655, %v767
    %v784 = vmul.f32 %v656, %v768
    %v785 = vmul.f32 %v657, %v769
    %v786 = vmul.f32 %v658, %v770
    %v787 = vmul.f32 %v659, %v771
    %v788 = vmul.f32 %v660, %v772
    %v789 = vmul.f32 %v661, %v773
    %v790 = vmul.f32 %v662, %v774
    %v791 = vmul.f32 %v663, %v775
    %v792 = vmul.f32 %v664, %v776
    %v793 = vmul.f32 %v665, %v777
    %v794 = vadd.f32 %v778, 1.0
    %v795 = vadd.f32 %v779, 1.0
    %v796 = vadd.f32 %v780, 1.0
    %v797 = vadd.f32 %v781, 1.0
    %v798 = vadd.f32 %v782, 1.0
    %v799 = vadd.f32 %v783, 1.0
    %v800 = vadd.f32 %v784, 1.0
    %v801 = vadd.f32 %v785, 1.0
    %v802 = vadd.f32 %v786, 1.0
    %v803 = vadd.f32 %v787, 1.0
    %v804 = vadd.f32 %v788, 1.0
    %v805 = vadd.f32 %v789, 1.0
    %v806 = vadd.f32 %v790, 1.0
    %v807 = vadd.f32 %v791, 1.0
    %v808 = vadd.f32 %v792, 1.0
    %v809 = vadd.f32 %v793, 1.0
    %v810 = vmul.f32 %v650, -9.349352e-08
    %v811 = vmul.f32 %v651, -9.349352e-08
    %v812 = vmul.f32 %v652, -9.349352e-08
    %v813 = vmul.f32 %v653, -9.349352e-08
    %v814 = vmul.f32 %v654, -9.349352e-08
    %v815 = vmul.f32 %v655, -9.349352e-08
    %v816 = vmul.f32 %v656, -9.349352e-08
    %v817 = vmul.f32 %v657, -9.349352e-08
    %v818 = vmul.f32 %v658, -9.349352e-08
    %v819 = vmul.f32 %v659, -9.349352e-08
    %v820 = vmul.f32 %v660, -9.349352e-08
    %v821 = vmul.f32 %v661, -9.349352e-08
    %v822 = vmul.f32 %v662, -9.349352e-08
    %v823 = vmul.f32 %v663, -9.349352e-08
    %v824 = vmul.f32 %v664, -9.349352e-08
    %v825 = vmul.f32 %v665, -9.349352e-08
    %v826 = vadd.f32 %v810, 7.621095e-07
    %v827 = vadd.f32 %v811, 7.621095e-07
    %v828 = vadd.f32 %v812, 7.621095e-07
    %v829 = vadd.f32 %v813, 7.621095e-07
    %v830 = vadd.f32 %v814, 7.621095e-07
    %v831 = vadd.f32 %v815, 7.621095e-07
    %v832 = vadd.f32 %v816, 7.621095e-07
    %v833 = vadd.f32 %v817, 7.621095e-07
    %v834 = vadd.f32 %v818, 7.621095e-07
    %v835 = vadd.f32 %v819, 7.621095e-07
    %v836 = vadd.f32 %v820, 7.621095e-07
    %v837 = vadd.f32 %v821, 7.621095e-07
    %v838 = vadd.f32 %v822, 7.621095e-07
    %v839 = vadd.f32 %v823, 7.621095e-07
    %v840 = vadd.f32 %v824, 7.621095e-07
    %v841 = vadd.f32 %v825, 7.621095e-07
    %v842 = vmul.f32 %v650, %v826
    %v843 = vmul.f32 %v651, %v827
    %v844 = vmul.f32 %v652, %v828
    %v845 = vmul.f32 %v653, %v829
    %v846 = vmul.f32 %v654, %v830
    %v847 = vmul.f32 %v655, %v831
    %v848 = vmul.f32 %v656, %v832
    %v849 = vmul.f32 %v657, %v833
    %v850 = vmul.f32 %v658, %v834
    %v851 = vmul.f32 %v659, %v835
    %v852 = vmul.f32 %v660, %v836
    %v853 = vmul.f32 %v661, %v837
    %v854 = vmul.f32 %v662, %v838
    %v855 = vmul.f32 %v663, %v839
    %v856 = vmul.f32 %v664, %v840
    %v857 = vmul.f32 %v665, %v841
    %v858 = vadd.f32 %v842, -6.9111475e-06
    %v859 = vadd.f32 %v843, -6.9111475e-06
    %v860 = vadd.f32 %v844, -6.9111475e-06
    %v861 = vadd.f32 %v845, -6.9111475e-06
    %v862 = vadd.f32 %v846, -6.9111475e-06
    %v863 = vadd.f32 %v847, -6.9111475e-06
    %v864 = vadd.f32 %v848, -6.9111475e-06
    %v865 = vadd.f32 %v849, -6.9111475e-06
    %v866 = vadd.f32 %v850, -6.9111475e-06
    %v867 = vadd.f32 %v851, -6.9111475e-06
    %v868 = vadd.f32 %v852, -6.9111475e-06
    %v869 = vadd.f32 %v853, -6.9111475e-06
    %v870 = vadd.f32 %v854, -6.9111475e-06
    %v871 = vadd.f32 %v855, -6.9111475e-06
    %v872 = vadd.f32 %v856, -6.9111475e-06
    %v873 = vadd.f32 %v857, -6.9111475e-06
    %v874 = vmul.f32 %v650, %v858
    %v875 = vmul.f32 %v651, %v859
    %v876 = vmul.f32 %v652, %v860
    %v877 = vmul.f32 %v653, %v861
    %v878 = vmul.f32 %v654, %v862
    %v879 = vmul.f32 %v655, %v863
    %v880 = vmul.f32 %v656, %v864
    %v881 = vmul.f32 %v657, %v865
    %v882 = vmul.f32 %v658, %v866
    %v883 = vmul.f32 %v659, %v867
    %v884 = vmul.f32 %v660, %v868
    %v885 = vmul.f32 %v661, %v869
    %v886 = vmul.f32 %v662, %v870
    %v887 = vmul.f32 %v663, %v871
    %v888 = vmul.f32 %v664, %v872
    %v889 = vmul.f32 %v665, %v873
    %v890 = vadd.f32 %v874, 0.00014304888
    %v891 = vadd.f32 %v875, 0.00014304888
    %v892 = vadd.f32 %v876, 0.00014304888
    %v893 = vadd.f32 %v877, 0.00014304888
    %v894 = vadd.f32 %v878, 0.00014304888
    %v895 = vadd.f32 %v879, 0.00014304888
    %v896 = vadd.f32 %v880, 0.00014304888
    %v897 = vadd.f32 %v881, 0.00014304888
    %v898 = vadd.f32 %v882, 0.00014304888
    %v899 = vadd.f32 %v883, 0.00014304888
    %v900 = vadd.f32 %v884, 0.00014304888
    %v901 = vadd.f32 %v885, 0.00014304888
    %v902 = vadd.f32 %v886, 0.00014304888
    %v903 = vadd.f32 %v887, 0.00014304888
    %v904 = vadd.f32 %v888, 0.00014304888
    %v905 = vadd.f32 %v889, 0.00014304888
    %v906 = vmul.f32 %v650, %v890
    %v907 = vmul.f32 %v651, %v891
    %v908 = vmul.f32 %v652, %v892
    %v909 = vmul.f32 %v653, %v893
    %v910 = vmul.f32 %v654, %v894
    %v911 = vmul.f32 %v655, %v895
    %v912 = vmul.f32 %v656, %v896
    %v913 = vmul.f32 %v657, %v897
    %v914 = vmul.f32 %v658, %v898
    %v915 = vmul.f32 %v659, %v899
    %v916 = vmul.f32 %v660, %v900
    %v917 = vmul.f32 %v661, %v901
    %v918 = vmul.f32 %v662, %v902
    %v919 = vmul.f32 %v663, %v903
    %v920 = vmul.f32 %v664, %v904
    %v921 = vmul.f32 %v665, %v905
    %v922 = vadd.f32 %v906, -0.015625
    %v923 = vadd.f32 %v907, -0.015625
    %v924 = vadd.f32 %v908, -0.015625
    %v925 = vadd.f32 %v909, -0.015625
    %v926 = vadd.f32 %v910, -0.015625
    %v927 = vadd.f32 %v911, -0.015625
    %v928 = vadd.f32 %v912, -0.015625
    %v929 = vadd.f32 %v913, -0.015625
    %v930 = vadd.f32 %v914, -0.015625
    %v931 = vadd.f32 %v915, -0.015625
    %v932 = vadd.f32 %v916, -0.015625
    %v933 = vadd.f32 %v917, -0.015625
    %v934 = vadd.f32 %v918, -0.015625
    %v935 = vadd.f32 %v919, -0.015625
    %v936 = vadd.f32 %v920, -0.015625
    %v937 = vadd.f32 %v921, -0.015625
    %v938 = vmul.f32 %v602, 0.63661975
    %v939 = vmul.f32 %v603, 0.63661975
    %v940 = vmul.f32 %v604, 0.63661975
    %v941 = vmul.f32 %v605, 0.63661975
    %v942 = vmul.f32 %v606, 0.63661975
    %v943 = vmul.f32 %v607, 0.63661975
    %v944 = vmul.f32 %v608, 0.63661975
    %v945 = vmul.f32 %v609, 0.63661975
    %v946 = vmul.f32 %v610, 0.63661975
    %v947 = vmul.f32 %v611, 0.63661975
    %v948 = vmul.f32 %v612, 0.63661975
    %v949 = vmul.f32 %v613, 0.63661975
    %v950 = vmul.f32 %v614, 0.63661975
    %v951 = vmul.f32 %v615, 0.63661975
    %v952 = vmul.f32 %v616, 0.63661975
    %v953 = vmul.f32 %v617, 0.63661975
    %v954 = vrsqrt.pop %v938
    %v955 = vmul.f32 %v938, %v954
    %vm956 = vcmp.eq.f32.partialorder %v938, inf
    %v957 = vsel %vm956, %v938, %v955
    %vm958 = vcmp.eq.f32.partialorder %v938, 0.0
    %v959 = vand.u32 %v938, 2147483648
    %v960 = vsel %vm958, %v959, %v957
    %v961 = vrsqrt.pop %v939
    %v962 = vmul.f32 %v939, %v961
    %vm963 = vcmp.eq.f32.partialorder %v939, inf
    %v964 = vsel %vm963, %v939, %v962
    %vm965 = vcmp.eq.f32.partialorder %v939, 0.0
    %v966 = vand.u32 %v939, 2147483648
    %v967 = vsel %vm965, %v966, %v964
    %v968 = vrsqrt.pop %v940
    %v969 = vmul.f32 %v940, %v968
    %vm970 = vcmp.eq.f32.partialorder %v940, inf
    %v971 = vsel %vm970, %v940, %v969
    %vm972 = vcmp.eq.f32.partialorder %v940, 0.0
    %v973 = vand.u32 %v940, 2147483648
    %v974 = vsel %vm972, %v973, %v971
    %v975 = vrsqrt.pop %v941
    %v976 = vmul.f32 %v941, %v975
    %vm977 = vcmp.eq.f32.partialorder %v941, inf
    %v978 = vsel %vm977, %v941, %v976
    %vm979 = vcmp.eq.f32.partialorder %v941, 0.0
    %v980 = vand.u32 %v941, 2147483648
    %v981 = vsel %vm979, %v980, %v978
    %v982 = vrsqrt.pop %v942
    %v983 = vmul.f32 %v942, %v982
    %vm984 = vcmp.eq.f32.partialorder %v942, inf
    %v985 = vsel %vm984, %v942, %v983
    %vm986 = vcmp.eq.f32.partialorder %v942, 0.0
    %v987 = vand.u32 %v942, 2147483648
    %v988 = vsel %vm986, %v987, %v985
    %v989 = vrsqrt.pop %v943
    %v990 = vmul.f32 %v943, %v989
    %vm991 = vcmp.eq.f32.partialorder %v943, inf
    %v992 = vsel %vm991, %v943, %v990
    %vm993 = vcmp.eq.f32.partialorder %v943, 0.0
    %v994 = vand.u32 %v943, 2147483648
    %v995 = vsel %vm993, %v994, %v992
    %v996 = vrsqrt.pop %v944
    %v997 = vmul.f32 %v944, %v996
    %vm998 = vcmp.eq.f32.partialorder %v944, inf
    %v999 = vsel %vm998, %v944, %v997
    %vm1000 = vcmp.eq.f32.partialorder %v944, 0.0
    %v1001 = vand.u32 %v944, 2147483648
    %v1002 = vsel %vm1000, %v1001, %v999
    %v1003 = vrsqrt.pop %v945
    %v1004 = vmul.f32 %v945, %v1003
    %vm1005 = vcmp.eq.f32.partialorder %v945, inf
    %v1006 = vsel %vm1005, %v945, %v1004
    %vm1007 = vcmp.eq.f32.partialorder %v945, 0.0
    %v1008 = vand.u32 %v945, 2147483648
    %v1009 = vsel %vm1007, %v1008, %v1006
    %v1010 = vrsqrt.pop %v946
    %v1011 = vmul.f32 %v946, %v1010
    %vm1012 = vcmp.eq.f32.partialorder %v946, inf
    %v1013 = vsel %vm1012, %v946, %v1011
    %vm1014 = vcmp.eq.f32.partialorder %v946, 0.0
    %v1015 = vand.u32 %v946, 2147483648
    %v1016 = vsel %vm1014, %v1015, %v1013
    %v1017 = vrsqrt.pop %v947
    %v1018 = vmul.f32 %v947, %v1017
    %vm1019 = vcmp.eq.f32.partialorder %v947, inf
    %v1020 = vsel %vm1019, %v947, %v1018
    %vm1021 = vcmp.eq.f32.partialorder %v947, 0.0
    %v1022 = vand.u32 %v947, 2147483648
    %v1023 = vsel %vm1021, %v1022, %v1020
    %v1024 = vrsqrt.pop %v948
    %v1025 = vmul.f32 %v948, %v1024
    %vm1026 = vcmp.eq.f32.partialorder %v948, inf
    %v1027 = vsel %vm1026, %v948, %v1025
    %vm1028 = vcmp.eq.f32.partialorder %v948, 0.0
    %v1029 = vand.u32 %v948, 2147483648
    %v1030 = vsel %vm1028, %v1029, %v1027
    %v1031 = vrsqrt.pop %v949
    %v1032 = vmul.f32 %v949, %v1031
    %vm1033 = vcmp.eq.f32.partialorder %v949, inf
    %v1034 = vsel %vm1033, %v949, %v1032
    %vm1035 = vcmp.eq.f32.partialorder %v949, 0.0
    %v1036 = vand.u32 %v949, 2147483648
    %v1037 = vsel %vm1035, %v1036, %v1034
    %v1038 = vrsqrt.pop %v950
    %v1039 = vmul.f32 %v950, %v1038
    %vm1040 = vcmp.eq.f32.partialorder %v950, inf
    %v1041 = vsel %vm1040, %v950, %v1039
    %vm1042 = vcmp.eq.f32.partialorder %v950, 0.0
    %v1043 = vand.u32 %v950, 2147483648
    %v1044 = vsel %vm1042, %v1043, %v1041
    %v1045 = vrsqrt.pop %v951
    %v1046 = vmul.f32 %v951, %v1045
    %vm1047 = vcmp.eq.f32.partialorder %v951, inf
    %v1048 = vsel %vm1047, %v951, %v1046
    %vm1049 = vcmp.eq.f32.partialorder %v951, 0.0
    %v1050 = vand.u32 %v951, 2147483648
    %v1051 = vsel %vm1049, %v1050, %v1048
    %v1052 = vrsqrt.pop %v952
    %v1053 = vmul.f32 %v952, %v1052
    %vm1054 = vcmp.eq.f32.partialorder %v952, inf
    %v1055 = vsel %vm1054, %v952, %v1053
    %vm1056 = vcmp.eq.f32.partialorder %v952, 0.0
    %v1057 = vand.u32 %v952, 2147483648
    %v1058 = vsel %vm1056, %v1057, %v1055
    %v1059 = vrsqrt.pop %v953
    %v1060 = vmul.f32 %v953, %v1059
    %vm1061 = vcmp.eq.f32.partialorder %v953, inf
    %v1062 = vsel %vm1061, %v953, %v1060
    %vm1063 = vcmp.eq.f32.partialorder %v953, 0.0
    %v1064 = vand.u32 %v953, 2147483648
    %v1065 = vsel %vm1063, %v1064, %v1062
    %v1066 = vand.u32 2147483647, %v666
    %vm1067 = vcmp.le.f32.partialorder %v1066, 0.7853982
    %vm1068 = vcmp.lt.s32.totalorder %v666, 0
    %v1069 = vand.u32 %v666, 2139095040
    %v1070 = vshrl.u32 %v1069, 23
    %v1071 = vsub.s32 %v1070, 127
    %v1072 = vand.u32 2147483647, %v666
    %v1073 = vand.u32 %v1072, 8388607
    %v1074 = vor.u32 %v1073, 8388608
    %v1075 = vsub.s32 0, %v1074
    %v1076 = vadd.s32 %v1071, 1
    %vm1077 = vcmp.gt.s32.totalorder %v1076, 0
    %v1078 = vsel %vm1077, %v1076, 0
    %v1079 = vshrl.u32 %v1078, 5
    %v1080 = vand.u32 %v1078, 31
    %v1081 = vsub.s32 32, %v1080
    %v1082 = vshrl.u32 683565275, %v1081
    %v1083 = vshll.u32 683565275, %v1080
    %v1084 = vshrl.u32 2475754826, %v1081
    %v1085 = vor.u32 %v1083, %v1084
    %v1086 = vshll.u32 2475754826, %v1080
    %v1087 = vshrl.u32 2131351028, %v1081
    %v1088 = vor.u32 %v1086, %v1087
    %v1089 = vshll.u32 2131351028, %v1080
    %v1090 = vshrl.u32 2102212464, %v1081
    %v1091 = vor.u32 %v1089, %v1090
    %v1092 = vshll.u32 2102212464, %v1080
    %v1093 = vshrl.u32 920167782, %v1081
    %v1094 = vor.u32 %v1092, %v1093
    %v1095 = vshll.u32 920167782, %v1080
    %v1096 = vshrl.u32 1326507024, %v1081
    %v1097 = vor.u32 %v1095, %v1096
    %vm1098 = vcmp.lt.s32.totalorder %v1079, 1
    %vm1099 = vcmp.lt.s32.totalorder %v1079, 2
    %vm1100 = vcmp.lt.s32.totalorder %v1079, 3
    %vm1101 = vcmp.lt.s32.totalorder %v1079, 4
    %v1102 = vsel %vm1098, %v1082, %v1085
    %v1103 = vsel %vm1101, %v1091, 2102212464
    %v1104 = vsel %vm1100, %v1088, %v1103
    %v1105 = vsel %vm1099, %v1102, %v1104
    %v1106 = vsel %vm1098, %v1085, %v1088
    %v1107 = vsel %vm1101, %v1094, 920167782
    %v1108 = vsel %vm1100, %v1091, %v1107
    %v1109 = vsel %vm1099, %v1106, %v1108
    %v1110 = vsel %vm1098, %v1088, %v1091
    %v1111 = vsel %vm1101, %v1097, 1326507024
    %v1112 = vsel %vm1100, %v1094, %v1111
    %v1113 = vsel %vm1099, %v1110, %v1112
    %v1114 = vshll.u32 %v1074, 8
    %v1115 = vmul.u32.u64.compose %v1114, %v1113
    %v1116 = vextract.low.u32 %v1115
    %v1117 = vextract.high.u32 %v1115
    %v1118 = vmul.u32.u64.compose %v1114, %v1109
    %v1119 = vextract.low.u32 %v1118
    %v1120 = vextract.high.u32 %v1118
    %v1121 = vmul.u32 %v1114, %v1105
    %v1122 = vadd.s32 %v1117, %v1119
    %vm1123 = vc.u32 %v1117, %v1119
    %v1124 = vadd.s32 %v1120, 1
    %v1125 = vsel %vm1123, %v1124, %v1120
    %v1126 = vadd.s32 %v1121, %v1125
    %v1127 = vadd.s32 %v1126, 536870912
    %v1128 = vshrl.u32 %v1127, 30
    %v1129 = vshll.u32 %v1128, 30
    %v1130 = vsub.s32 %v1126, %v1129
    %vm1131 = vcmp.lt.s32.totalorder %v1130, 0
    %v1132 = vsub.s32 0, %v1130
    %v1133 = vsel %vm1131, %v1132, %v1130
    %v1134 = vclz %v1133
    %v1135 = vsub.s32 %v1134, 2
    %vm1136 = vcmp.gt.s32.totalorder 0, %v1135
    %v1137 = vsel %vm1136, 0, %v1135
    %v1138 = vsub.s32 32, %v1137
    %v1139 = vshll.u32 %v1130, %v1137
    %v1140 = vshrl.u32 %v1122, %v1138
    %v1141 = vor.u32 %v1139, %v1140
    %v1142 = vsub.s32 4294967266, %v1137
    %v1143 = vadd.s32 %v1142, 127
    %v1144 = vshll.u32 %v1143, 23
    %v1145 = vor.u32 4788187, %v1144
    %v1146 = vand.u32 2147483647, %v1145
    %v1148 = vcvt.s32.f32 %v1141
    %v1149 = vmul.f32 %v1148, %v1146
    %v1150 = vxor.u32 %v1149, 2147483648
    %v1151 = vsel %vm1068, %v1150, %v1149
    %v1152 = vsub.s32 4, %v1128
    %v1153 = vsel %vm1068, %v1152, %v1128
    %v1154 = vsel %vm1067, %v666, %v1151
    %v1155 = vsel %vm1067, 0, %v1153
    %v1156 = vcosq.f32.pop %v1154
    %v1157 = vsinq.f32.pop %v1154
    %vm1158 = vweird.f32 %v666
    %v1159 = vand.u32 %v1155, 3
    %vm1160 = vcmp.lt.s32.totalorder %v1159, 2
    %vm1161 = vcmp.eq.s32.totalorder %v1159, 0
    %v1162 = vxor.u32 %v1157, 2147483648
    %v1163 = vsel %vm1161, %v1156, %v1162
    %vm1164 = vcmp.eq.s32.totalorder %v1159, 2
    %v1165 = vxor.u32 %v1156, 2147483648
    %v1166 = vsel %vm1164, %v1165, %v1157
    %v1167 = vsel %vm1160, %v1163, %v1166
    %v1168 = vsel %vm1158, nan, %v1167
    %v1169 = vand.u32 2147483647, %v667
    %vm1170 = vcmp.le.f32.partialorder %v1169, 0.7853982
    %vm1171 = vcmp.lt.s32.totalorder %v667, 0
    %v1172 = vand.u32 %v667, 2139095040
    %v1173 = vshrl.u32 %v1172, 23
    %v1174 = vsub.s32 %v1173, 127
    %v1175 = vand.u32 2147483647, %v667
    %v1176 = vand.u32 %v1175, 8388607
    %v1177 = vor.u32 %v1176, 8388608
    %v1178 = vsub.s32 0, %v1177
    %v1179 = vadd.s32 %v1174, 1
    %vm1180 = vcmp.gt.s32.totalorder %v1179, 0
    %v1181 = vsel %vm1180, %v1179, 0
    %v1182 = vshrl.u32 %v1181, 5
    %v1183 = vand.u32 %v1181, 31
    %v1184 = vsub.s32 32, %v1183
    %v1185 = vshrl.u32 683565275, %v1184
    %v1186 = vshll.u32 683565275, %v1183
    %v1187 = vshrl.u32 2475754826, %v1184
    %v1188 = vor.u32 %v1186, %v1187
    %v1189 = vshll.u32 2475754826, %v1183
    %v1190 = vshrl.u32 2131351028, %v1184
    %v1191 = vor.u32 %v1189, %v1190
    %v1192 = vshll.u32 2131351028, %v1183
    %v1193 = vshrl.u32 2102212464, %v1184
    %v1194 = vor.u32 %v1192, %v1193
    %v1195 = vshll.u32 2102212464, %v1183
    %v1196 = vshrl.u32 920167782, %v1184
    %v1197 = vor.u32 %v1195, %v1196
    %v1198 = vshll.u32 920167782, %v1183
    %v1199 = vshrl.u32 1326507024, %v1184
    %v1200 = vor.u32 %v1198, %v1199
    %vm1201 = vcmp.lt.s32.totalorder %v1182, 1
    %vm1202 = vcmp.lt.s32.totalorder %v1182, 2
    %vm1203 = vcmp.lt.s32.totalorder %v1182, 3
    %vm1204 = vcmp.lt.s32.totalorder %v1182, 4
    %v1205 = vsel %vm1201, %v1185, %v1188
    %v1206 = vsel %vm1204, %v1194, 2102212464
    %v1207 = vsel %vm1203, %v1191, %v1206
    %v1208 = vsel %vm1202, %v1205, %v1207
    %v1209 = vsel %vm1201, %v1188, %v1191
    %v1210 = vsel %vm1204, %v1197, 920167782
    %v1211 = vsel %vm1203, %v1194, %v1210
    %v1212 = vsel %vm1202, %v1209, %v1211
    %v1213 = vsel %vm1201, %v1191, %v1194
    %v1214 = vsel %vm1204, %v1200, 1326507024
    %v1215 = vsel %vm1203, %v1197, %v1214
    %v1216 = vsel %vm1202, %v1213, %v1215
    %v1217 = vshll.u32 %v1177, 8
    %v1218 = vmul.u32.u64.compose %v1217, %v1216
    %v1219 = vextract.low.u32 %v1218
    %v1220 = vextract.high.u32 %v1218
    %v1221 = vmul.u32.u64.compose %v1217, %v1212
    %v1222 = vextract.low.u32 %v1221
    %v1223 = vextract.high.u32 %v1221
    %v1224 = vmul.u32 %v1217, %v1208
    %v1225 = vadd.s32 %v1220, %v1222
    %vm1226 = vc.u32 %v1220, %v1222
    %v1227 = vadd.s32 %v1223, 1
    %v1228 = vsel %vm1226, %v1227, %v1223
    %v1229 = vadd.s32 %v1224, %v1228
    %v1230 = vadd.s32 %v1229, 536870912
    %v1231 = vshrl.u32 %v1230, 30
    %v1232 = vshll.u32 %v1231, 30
    %v1233 = vsub.s32 %v1229, %v1232
    %vm1234 = vcmp.lt.s32.totalorder %v1233, 0
    %v1235 = vsub.s32 0, %v1233
    %v1236 = vsel %vm1234, %v1235, %v1233
    %v1237 = vclz %v1236
    %v1238 = vsub.s32 %v1237, 2
    %vm1239 = vcmp.gt.s32.totalorder 0, %v1238
    %v1240 = vsel %vm1239, 0, %v1238
    %v1241 = vsub.s32 32, %v1240
    %v1242 = vshll.u32 %v1233, %v1240
    %v1243 = vshrl.u32 %v1225, %v1241
    %v1244 = vor.u32 %v1242, %v1243
    %v1245 = vsub.s32 4294967266, %v1240
    %v1246 = vadd.s32 %v1245, 127
    %v1247 = vshll.u32 %v1246, 23
    %v1248 = vor.u32 4788187, %v1247
    %v1249 = vand.u32 2147483647, %v1248
    %v1251 = vcvt.s32.f32 %v1244
    %v1252 = vmul.f32 %v1251, %v1249
    %v1253 = vxor.u32 %v1252, 2147483648
    %v1254 = vsel %vm1171, %v1253, %v1252
    %v1255 = vsub.s32 4, %v1231
    %v1256 = vsel %vm1171, %v1255, %v1231
    %v1257 = vsel %vm1170, %v667, %v1254
    %v1258 = vsel %vm1170, 0, %v1256
    %v1259 = vcosq.f32.pop %v1257
    %v1260 = vsinq.f32.pop %v1257
    %vm1261 = vweird.f32 %v667
    %v1262 = vand.u32 %v1258, 3
    %vm1263 = vcmp.lt.s32.totalorder %v1262, 2
    %vm1264 = vcmp.eq.s32.totalorder %v1262, 0
    %v1265 = vxor.u32 %v1260, 2147483648
    %v1266 = vsel %vm1264, %v1259, %v1265
    %vm1267 = vcmp.eq.s32.totalorder %v1262, 2
    %v1268 = vxor.u32 %v1259, 2147483648
    %v1269 = vsel %vm1267, %v1268, %v1260
    %v1270 = vsel %vm1263, %v1266, %v1269
    %v1271 = vsel %vm1261, nan, %v1270
    %v1272 = vand.u32 2147483647, %v668
    %vm1273 = vcmp.le.f32.partialorder %v1272, 0.7853982
    %vm1274 = vcmp.lt.s32.totalorder %v668, 0
    %v1275 = vand.u32 %v668, 2139095040
    %v1276 = vshrl.u32 %v1275, 23
    %v1277 = vsub.s32 %v1276, 127
    %v1278 = vand.u32 2147483647, %v668
    %v1279 = vand.u32 %v1278, 8388607
    %v1280 = vor.u32 %v1279, 8388608
    %v1281 = vsub.s32 0, %v1280
    %v1282 = vadd.s32 %v1277, 1
    %vm1283 = vcmp.gt.s32.totalorder %v1282, 0
    %v1284 = vsel %vm1283, %v1282, 0
    %v1285 = vshrl.u32 %v1284, 5
    %v1286 = vand.u32 %v1284, 31
    %v1287 = vsub.s32 32, %v1286
    %v1288 = vshrl.u32 683565275, %v1287
    %v1289 = vshll.u32 683565275, %v1286
    %v1290 = vshrl.u32 2475754826, %v1287
    %v1291 = vor.u32 %v1289, %v1290
    %v1292 = vshll.u32 2475754826, %v1286
    %v1293 = vshrl.u32 2131351028, %v1287
    %v1294 = vor.u32 %v1292, %v1293
    %v1295 = vshll.u32 2131351028, %v1286
    %v1296 = vshrl.u32 2102212464, %v1287
    %v1297 = vor.u32 %v1295, %v1296
    %v1298 = vshll.u32 2102212464, %v1286
    %v1299 = vshrl.u32 920167782, %v1287
    %v1300 = vor.u32 %v1298, %v1299
    %v1301 = vshll.u32 920167782, %v1286
    %v1302 = vshrl.u32 1326507024, %v1287
    %v1303 = vor.u32 %v1301, %v1302
    %vm1304 = vcmp.lt.s32.totalorder %v1285, 1
    %vm1305 = vcmp.lt.s32.totalorder %v1285, 2
    %vm1306 = vcmp.lt.s32.totalorder %v1285, 3
    %vm1307 = vcmp.lt.s32.totalorder %v1285, 4
    %v1308 = vsel %vm1304, %v1288, %v1291
    %v1309 = vsel %vm1307, %v1297, 2102212464
    %v1310 = vsel %vm1306, %v1294, %v1309
    %v1311 = vsel %vm1305, %v1308, %v1310
    %v1312 = vsel %vm1304, %v1291, %v1294
    %v1313 = vsel %vm1307, %v1300, 920167782
    %v1314 = vsel %vm1306, %v1297, %v1313
    %v1315 = vsel %vm1305, %v1312, %v1314
    %v1316 = vsel %vm1304, %v1294, %v1297
    %v1317 = vsel %vm1307, %v1303, 1326507024
    %v1318 = vsel %vm1306, %v1300, %v1317
    %v1319 = vsel %vm1305, %v1316, %v1318
    %v1320 = vshll.u32 %v1280, 8
    %v1321 = vmul.u32.u64.compose %v1320, %v1319
    %v1322 = vextract.low.u32 %v1321
    %v1323 = vextract.high.u32 %v1321
    %v1324 = vmul.u32.u64.compose %v1320, %v1315
    %v1325 = vextract.low.u32 %v1324
    %v1326 = vextract.high.u32 %v1324
    %v1327 = vmul.u32 %v1320, %v1311
    %v1328 = vadd.s32 %v1323, %v1325
    %vm1329 = vc.u32 %v1323, %v1325
    %v1330 = vadd.s32 %v1326, 1
    %v1331 = vsel %vm1329, %v1330, %v1326
    %v1332 = vadd.s32 %v1327, %v1331
    %v1333 = vadd.s32 %v1332, 536870912
    %v1334 = vshrl.u32 %v1333, 30
    %v1335 = vshll.u32 %v1334, 30
    %v1336 = vsub.s32 %v1332, %v1335
    %vm1337 = vcmp.lt.s32.totalorder %v1336, 0
    %v1338 = vsub.s32 0, %v1336
    %v1339 = vsel %vm1337, %v1338, %v1336
    %v1340 = vclz %v1339
    %v1341 = vsub.s32 %v1340, 2
    %vm1342 = vcmp.gt.s32.totalorder 0, %v1341
    %v1343 = vsel %vm1342, 0, %v1341
    %v1344 = vsub.s32 32, %v1343
    %v1345 = vshll.u32 %v1336, %v1343
    %v1346 = vshrl.u32 %v1328, %v1344
    %v1347 = vor.u32 %v1345, %v1346
    %v1348 = vsub.s32 4294967266, %v1343
    %v1349 = vadd.s32 %v1348, 127
    %v1350 = vshll.u32 %v1349, 23
    %v1351 = vor.u32 4788187, %v1350
    %v1352 = vand.u32 2147483647, %v1351
    %v1354 = vcvt.s32.f32 %v1347
    %v1355 = vmul.f32 %v1354, %v1352
    %v1356 = vxor.u32 %v1355, 2147483648
    %v1357 = vsel %vm1274, %v1356, %v1355
    %v1358 = vsub.s32 4, %v1334
    %v1359 = vsel %vm1274, %v1358, %v1334
    %v1360 = vsel %vm1273, %v668, %v1357
    %v1361 = vsel %vm1273, 0, %v1359
    %v1362 = vcosq.f32.pop %v1360
    %v1363 = vsinq.f32.pop %v1360
    %vm1364 = vweird.f32 %v668
    %v1365 = vand.u32 %v1361, 3
    %vm1366 = vcmp.lt.s32.totalorder %v1365, 2
    %vm1367 = vcmp.eq.s32.totalorder %v1365, 0
    %v1368 = vxor.u32 %v1363, 2147483648
    %v1369 = vsel %vm1367, %v1362, %v1368
    %vm1370 = vcmp.eq.s32.totalorder %v1365, 2
    %v1371 = vxor.u32 %v1362, 2147483648
    %v1372 = vsel %vm1370, %v1371, %v1363
    %v1373 = vsel %vm1366, %v1369, %v1372
    %v1374 = vsel %vm1364, nan, %v1373
    %v1375 = vand.u32 2147483647, %v669
    %vm1376 = vcmp.le.f32.partialorder %v1375, 0.7853982
    %vm1377 = vcmp.lt.s32.totalorder %v669, 0
    %v1378 = vand.u32 %v669, 2139095040
    %v1379 = vshrl.u32 %v1378, 23
    %v1380 = vsub.s32 %v1379, 127
    %v1381 = vand.u32 2147483647, %v669
    %v1382 = vand.u32 %v1381, 8388607
    %v1383 = vor.u32 %v1382, 8388608
    %v1384 = vsub.s32 0, %v1383
    %v1385 = vadd.s32 %v1380, 1
    %vm1386 = vcmp.gt.s32.totalorder %v1385, 0
    %v1387 = vsel %vm1386, %v1385, 0
    %v1388 = vshrl.u32 %v1387, 5
    %v1389 = vand.u32 %v1387, 31
    %v1390 = vsub.s32 32, %v1389
    %v1391 = vshrl.u32 683565275, %v1390
    %v1392 = vshll.u32 683565275, %v1389
    %v1393 = vshrl.u32 2475754826, %v1390
    %v1394 = vor.u32 %v1392, %v1393
    %v1395 = vshll.u32 2475754826, %v1389
    %v1396 = vshrl.u32 2131351028, %v1390
    %v1397 = vor.u32 %v1395, %v1396
    %v1398 = vshll.u32 2131351028, %v1389
    %v1399 = vshrl.u32 2102212464, %v1390
    %v1400 = vor.u32 %v1398, %v1399
    %v1401 = vshll.u32 2102212464, %v1389
    %v1402 = vshrl.u32 920167782, %v1390
    %v1403 = vor.u32 %v1401, %v1402
    %v1404 = vshll.u32 920167782, %v1389
    %v1405 = vshrl.u32 1326507024, %v1390
    %v1406 = vor.u32 %v1404, %v1405
    %vm1407 = vcmp.lt.s32.totalorder %v1388, 1
    %vm1408 = vcmp.lt.s32.totalorder %v1388, 2
    %vm1409 = vcmp.lt.s32.totalorder %v1388, 3
    %vm1410 = vcmp.lt.s32.totalorder %v1388, 4
    %v1411 = vsel %vm1407, %v1391, %v1394
    %v1412 = vsel %vm1410, %v1400, 2102212464
    %v1413 = vsel %vm1409, %v1397, %v1412
    %v1414 = vsel %vm1408, %v1411, %v1413
    %v1415 = vsel %vm1407, %v1394, %v1397
    %v1416 = vsel %vm1410, %v1403, 920167782
    %v1417 = vsel %vm1409, %v1400, %v1416
    %v1418 = vsel %vm1408, %v1415, %v1417
    %v1419 = vsel %vm1407, %v1397, %v1400
    %v1420 = vsel %vm1410, %v1406, 1326507024
    %v1421 = vsel %vm1409, %v1403, %v1420
    %v1422 = vsel %vm1408, %v1419, %v1421
    %v1423 = vshll.u32 %v1383, 8
    %v1424 = vmul.u32.u64.compose %v1423, %v1422
    %v1425 = vextract.low.u32 %v1424
    %v1426 = vextract.high.u32 %v1424
    %v1427 = vmul.u32.u64.compose %v1423, %v1418
    %v1428 = vextract.low.u32 %v1427
    %v1429 = vextract.high.u32 %v1427
    %v1430 = vmul.u32 %v1423, %v1414
    %v1431 = vadd.s32 %v1426, %v1428
    %vm1432 = vc.u32 %v1426, %v1428
    %v1433 = vadd.s32 %v1429, 1
    %v1434 = vsel %vm1432, %v1433, %v1429
    %v1435 = vadd.s32 %v1430, %v1434
    %v1436 = vadd.s32 %v1435, 536870912
    %v1437 = vshrl.u32 %v1436, 30
    %v1438 = vshll.u32 %v1437, 30
    %v1439 = vsub.s32 %v1435, %v1438
    %vm1440 = vcmp.lt.s32.totalorder %v1439, 0
    %v1441 = vsub.s32 0, %v1439
    %v1442 = vsel %vm1440, %v1441, %v1439
    %v1443 = vclz %v1442
    %v1444 = vsub.s32 %v1443, 2
    %vm1445 = vcmp.gt.s32.totalorder 0, %v1444
    %v1446 = vsel %vm1445, 0, %v1444
    %v1447 = vsub.s32 32, %v1446
    %v1448 = vshll.u32 %v1439, %v1446
    %v1449 = vshrl.u32 %v1431, %v1447
    %v1450 = vor.u32 %v1448, %v1449
    %v1451 = vsub.s32 4294967266, %v1446
    %v1452 = vadd.s32 %v1451, 127
    %v1453 = vshll.u32 %v1452, 23
    %v1454 = vor.u32 4788187, %v1453
    %v1455 = vand.u32 2147483647, %v1454
    %v1457 = vcvt.s32.f32 %v1450
    %v1458 = vmul.f32 %v1457, %v1455
    %v1459 = vxor.u32 %v1458, 2147483648
    %v1460 = vsel %vm1377, %v1459, %v1458
    %v1461 = vsub.s32 4, %v1437
    %v1462 = vsel %vm1377, %v1461, %v1437
    %v1463 = vsel %vm1376, %v669, %v1460
    %v1464 = vsel %vm1376, 0, %v1462
    %v1465 = vcosq.f32.pop %v1463
    %v1466 = vsinq.f32.pop %v1463
    %vm1467 = vweird.f32 %v669
    %v1468 = vand.u32 %v1464, 3
    %vm1469 = vcmp.lt.s32.totalorder %v1468, 2
    %vm1470 = vcmp.eq.s32.totalorder %v1468, 0
    %v1471 = vxor.u32 %v1466, 2147483648
    %v1472 = vsel %vm1470, %v1465, %v1471
    %vm1473 = vcmp.eq.s32.totalorder %v1468, 2
    %v1474 = vxor.u32 %v1465, 2147483648
    %v1475 = vsel %vm1473, %v1474, %v1466
    %v1476 = vsel %vm1469, %v1472, %v1475
    %v1477 = vsel %vm1467, nan, %v1476
    %v1478 = vand.u32 2147483647, %v670
    %vm1479 = vcmp.le.f32.partialorder %v1478, 0.7853982
    %vm1480 = vcmp.lt.s32.totalorder %v670, 0
    %v1481 = vand.u32 %v670, 2139095040
    %v1482 = vshrl.u32 %v1481, 23
    %v1483 = vsub.s32 %v1482, 127
    %v1484 = vand.u32 2147483647, %v670
    %v1485 = vand.u32 %v1484, 8388607
    %v1486 = vor.u32 %v1485, 8388608
    %v1487 = vsub.s32 0, %v1486
    %v1488 = vadd.s32 %v1483, 1
    %vm1489 = vcmp.gt.s32.totalorder %v1488, 0
    %v1490 = vsel %vm1489, %v1488, 0
    %v1491 = vshrl.u32 %v1490, 5
    %v1492 = vand.u32 %v1490, 31
    %v1493 = vsub.s32 32, %v1492
    %v1494 = vshrl.u32 683565275, %v1493
    %v1495 = vshll.u32 683565275, %v1492
    %v1496 = vshrl.u32 2475754826, %v1493
    %v1497 = vor.u32 %v1495, %v1496
    %v1498 = vshll.u32 2475754826, %v1492
    %v1499 = vshrl.u32 2131351028, %v1493
    %v1500 = vor.u32 %v1498, %v1499
    %v1501 = vshll.u32 2131351028, %v1492
    %v1502 = vshrl.u32 2102212464, %v1493
    %v1503 = vor.u32 %v1501, %v1502
    %v1504 = vshll.u32 2102212464, %v1492
    %v1505 = vshrl.u32 920167782, %v1493
    %v1506 = vor.u32 %v1504, %v1505
    %v1507 = vshll.u32 920167782, %v1492
    %v1508 = vshrl.u32 1326507024, %v1493
    %v1509 = vor.u32 %v1507, %v1508
    %vm1510 = vcmp.lt.s32.totalorder %v1491, 1
    %vm1511 = vcmp.lt.s32.totalorder %v1491, 2
    %vm1512 = vcmp.lt.s32.totalorder %v1491, 3
    %vm1513 = vcmp.lt.s32.totalorder %v1491, 4
    %v1514 = vsel %vm1510, %v1494, %v1497
    %v1515 = vsel %vm1513, %v1503, 2102212464
    %v1516 = vsel %vm1512, %v1500, %v1515
    %v1517 = vsel %vm1511, %v1514, %v1516
    %v1518 = vsel %vm1510, %v1497, %v1500
    %v1519 = vsel %vm1513, %v1506, 920167782
    %v1520 = vsel %vm1512, %v1503, %v1519
    %v1521 = vsel %vm1511, %v1518, %v1520
    %v1522 = vsel %vm1510, %v1500, %v1503
    %v1523 = vsel %vm1513, %v1509, 1326507024
    %v1524 = vsel %vm1512, %v1506, %v1523
    %v1525 = vsel %vm1511, %v1522, %v1524
    %v1526 = vshll.u32 %v1486, 8
    %v1527 = vmul.u32.u64.compose %v1526, %v1525
    %v1528 = vextract.low.u32 %v1527
    %v1529 = vextract.high.u32 %v1527
    %v1530 = vmul.u32.u64.compose %v1526, %v1521
    %v1531 = vextract.low.u32 %v1530
    %v1532 = vextract.high.u32 %v1530
    %v1533 = vmul.u32 %v1526, %v1517
    %v1534 = vadd.s32 %v1529, %v1531
    %vm1535 = vc.u32 %v1529, %v1531
    %v1536 = vadd.s32 %v1532, 1
    %v1537 = vsel %vm1535, %v1536, %v1532
    %v1538 = vadd.s32 %v1533, %v1537
    %v1539 = vadd.s32 %v1538, 536870912
    %v1540 = vshrl.u32 %v1539, 30
    %v1541 = vshll.u32 %v1540, 30
    %v1542 = vsub.s32 %v1538, %v1541
    %vm1543 = vcmp.lt.s32.totalorder %v1542, 0
    %v1544 = vsub.s32 0, %v1542
    %v1545 = vsel %vm1543, %v1544, %v1542
    %v1546 = vclz %v1545
    %v1547 = vsub.s32 %v1546, 2
    %vm1548 = vcmp.gt.s32.totalorder 0, %v1547
    %v1549 = vsel %vm1548, 0, %v1547
    %v1550 = vsub.s32 32, %v1549
    %v1551 = vshll.u32 %v1542, %v1549
    %v1552 = vshrl.u32 %v1534, %v1550
    %v1553 = vor.u32 %v1551, %v1552
    %v1554 = vsub.s32 4294967266, %v1549
    %v1555 = vadd.s32 %v1554, 127
    %v1556 = vshll.u32 %v1555, 23
    %v1557 = vor.u32 4788187, %v1556
    %v1558 = vand.u32 2147483647, %v1557
    %v1560 = vcvt.s32.f32 %v1553
    %v1561 = vmul.f32 %v1560, %v1558
    %v1562 = vxor.u32 %v1561, 2147483648
    %v1563 = vsel %vm1480, %v1562, %v1561
    %v1564 = vsub.s32 4, %v1540
    %v1565 = vsel %vm1480, %v1564, %v1540
    %v1566 = vsel %vm1479, %v670, %v1563
    %v1567 = vsel %vm1479, 0, %v1565
    %v1568 = vcosq.f32.pop %v1566
    %v1569 = vsinq.f32.pop %v1566
    %vm1570 = vweird.f32 %v670
    %v1571 = vand.u32 %v1567, 3
    %vm1572 = vcmp.lt.s32.totalorder %v1571, 2
    %vm1573 = vcmp.eq.s32.totalorder %v1571, 0
    %v1574 = vxor.u32 %v1569, 2147483648
    %v1575 = vsel %vm1573, %v1568, %v1574
    %vm1576 = vcmp.eq.s32.totalorder %v1571, 2
    %v1577 = vxor.u32 %v1568, 2147483648
    %v1578 = vsel %vm1576, %v1577, %v1569
    %v1579 = vsel %vm1572, %v1575, %v1578
    %v1580 = vsel %vm1570, nan, %v1579
    %v1581 = vand.u32 2147483647, %v671
    %vm1582 = vcmp.le.f32.partialorder %v1581, 0.7853982
    %vm1583 = vcmp.lt.s32.totalorder %v671, 0
    %v1584 = vand.u32 %v671, 2139095040
    %v1585 = vshrl.u32 %v1584, 23
    %v1586 = vsub.s32 %v1585, 127
    %v1587 = vand.u32 2147483647, %v671
    %v1588 = vand.u32 %v1587, 8388607
    %v1589 = vor.u32 %v1588, 8388608
    %v1590 = vsub.s32 0, %v1589
    %v1591 = vadd.s32 %v1586, 1
    %vm1592 = vcmp.gt.s32.totalorder %v1591, 0
    %v1593 = vsel %vm1592, %v1591, 0
    %v1594 = vshrl.u32 %v1593, 5
    %v1595 = vand.u32 %v1593, 31
    %v1596 = vsub.s32 32, %v1595
    %v1597 = vshrl.u32 683565275, %v1596
    %v1598 = vshll.u32 683565275, %v1595
    %v1599 = vshrl.u32 2475754826, %v1596
    %v1600 = vor.u32 %v1598, %v1599
    %v1601 = vshll.u32 2475754826, %v1595
    %v1602 = vshrl.u32 2131351028, %v1596
    %v1603 = vor.u32 %v1601, %v1602
    %v1604 = vshll.u32 2131351028, %v1595
    %v1605 = vshrl.u32 2102212464, %v1596
    %v1606 = vor.u32 %v1604, %v1605
    %v1607 = vshll.u32 2102212464, %v1595
    %v1608 = vshrl.u32 920167782, %v1596
    %v1609 = vor.u32 %v1607, %v1608
    %v1610 = vshll.u32 920167782, %v1595
    %v1611 = vshrl.u32 1326507024, %v1596
    %v1612 = vor.u32 %v1610, %v1611
    %vm1613 = vcmp.lt.s32.totalorder %v1594, 1
    %vm1614 = vcmp.lt.s32.totalorder %v1594, 2
    %vm1615 = vcmp.lt.s32.totalorder %v1594, 3
    %vm1616 = vcmp.lt.s32.totalorder %v1594, 4
    %v1617 = vsel %vm1613, %v1597, %v1600
    %v1618 = vsel %vm1616, %v1606, 2102212464
    %v1619 = vsel %vm1615, %v1603, %v1618
    %v1620 = vsel %vm1614, %v1617, %v1619
    %v1621 = vsel %vm1613, %v1600, %v1603
    %v1622 = vsel %vm1616, %v1609, 920167782
    %v1623 = vsel %vm1615, %v1606, %v1622
    %v1624 = vsel %vm1614, %v1621, %v1623
    %v1625 = vsel %vm1613, %v1603, %v1606
    %v1626 = vsel %vm1616, %v1612, 1326507024
    %v1627 = vsel %vm1615, %v1609, %v1626
    %v1628 = vsel %vm1614, %v1625, %v1627
    %v1629 = vshll.u32 %v1589, 8
    %v1630 = vmul.u32.u64.compose %v1629, %v1628
    %v1631 = vextract.low.u32 %v1630
    %v1632 = vextract.high.u32 %v1630
    %v1633 = vmul.u32.u64.compose %v1629, %v1624
    %v1634 = vextract.low.u32 %v1633
    %v1635 = vextract.high.u32 %v1633
    %v1636 = vmul.u32 %v1629, %v1620
    %v1637 = vadd.s32 %v1632, %v1634
    %vm1638 = vc.u32 %v1632, %v1634
    %v1639 = vadd.s32 %v1635, 1
    %v1640 = vsel %vm1638, %v1639, %v1635
    %v1641 = vadd.s32 %v1636, %v1640
    %v1642 = vadd.s32 %v1641, 536870912
    %v1643 = vshrl.u32 %v1642, 30
    %v1644 = vshll.u32 %v1643, 30
    %v1645 = vsub.s32 %v1641, %v1644
    %vm1646 = vcmp.lt.s32.totalorder %v1645, 0
    %v1647 = vsub.s32 0, %v1645
    %v1648 = vsel %vm1646, %v1647, %v1645
    %v1649 = vclz %v1648
    %v1650 = vsub.s32 %v1649, 2
    %vm1651 = vcmp.gt.s32.totalorder 0, %v1650
    %v1652 = vsel %vm1651, 0, %v1650
    %v1653 = vsub.s32 32, %v1652
    %v1654 = vshll.u32 %v1645, %v1652
    %v1655 = vshrl.u32 %v1637, %v1653
    %v1656 = vor.u32 %v1654, %v1655
    %v1657 = vsub.s32 4294967266, %v1652
    %v1658 = vadd.s32 %v1657, 127
    %v1659 = vshll.u32 %v1658, 23
    %v1660 = vor.u32 4788187, %v1659
    %v1661 = vand.u32 2147483647, %v1660
    %v1663 = vcvt.s32.f32 %v1656
    %v1664 = vmul.f32 %v1663, %v1661
    %v1665 = vxor.u32 %v1664, 2147483648
    %v1666 = vsel %vm1583, %v1665, %v1664
    %v1667 = vsub.s32 4, %v1643
    %v1668 = vsel %vm1583, %v1667, %v1643
    %v1669 = vsel %vm1582, %v671, %v1666
    %v1670 = vsel %vm1582, 0, %v1668
    %v1671 = vcosq.f32.pop %v1669
    %v1672 = vsinq.f32.pop %v1669
    %vm1673 = vweird.f32 %v671
    %v1674 = vand.u32 %v1670, 3
    %vm1675 = vcmp.lt.s32.totalorder %v1674, 2
    %vm1676 = vcmp.eq.s32.totalorder %v1674, 0
    %v1677 = vxor.u32 %v1672, 2147483648
    %v1678 = vsel %vm1676, %v1671, %v1677
    %vm1679 = vcmp.eq.s32.totalorder %v1674, 2
    %v1680 = vxor.u32 %v1671, 2147483648
    %v1681 = vsel %vm1679, %v1680, %v1672
    %v1682 = vsel %vm1675, %v1678, %v1681
    %v1683 = vsel %vm1673, nan, %v1682
    %v1684 = vand.u32 2147483647, %v672
    %vm1685 = vcmp.le.f32.partialorder %v1684, 0.7853982
    %vm1686 = vcmp.lt.s32.totalorder %v672, 0
    %v1687 = vand.u32 %v672, 2139095040
    %v1688 = vshrl.u32 %v1687, 23
    %v1689 = vsub.s32 %v1688, 127
    %v1690 = vand.u32 2147483647, %v672
    %v1691 = vand.u32 %v1690, 8388607
    %v1692 = vor.u32 %v1691, 8388608
    %v1693 = vsub.s32 0, %v1692
    %v1694 = vadd.s32 %v1689, 1
    %vm1695 = vcmp.gt.s32.totalorder %v1694, 0
    %v1696 = vsel %vm1695, %v1694, 0
    %v1697 = vshrl.u32 %v1696, 5
    %v1698 = vand.u32 %v1696, 31
    %v1699 = vsub.s32 32, %v1698
    %v1700 = vshrl.u32 683565275, %v1699
    %v1701 = vshll.u32 683565275, %v1698
    %v1702 = vshrl.u32 2475754826, %v1699
    %v1703 = vor.u32 %v1701, %v1702
    %v1704 = vshll.u32 2475754826, %v1698
    %v1705 = vshrl.u32 2131351028, %v1699
    %v1706 = vor.u32 %v1704, %v1705
    %v1707 = vshll.u32 2131351028, %v1698
    %v1708 = vshrl.u32 2102212464, %v1699
    %v1709 = vor.u32 %v1707, %v1708
    %v1710 = vshll.u32 2102212464, %v1698
    %v1711 = vshrl.u32 920167782, %v1699
    %v1712 = vor.u32 %v1710, %v1711
    %v1713 = vshll.u32 920167782, %v1698
    %v1714 = vshrl.u32 1326507024, %v1699
    %v1715 = vor.u32 %v1713, %v1714
    %vm1716 = vcmp.lt.s32.totalorder %v1697, 1
    %vm1717 = vcmp.lt.s32.totalorder %v1697, 2
    %vm1718 = vcmp.lt.s32.totalorder %v1697, 3
    %vm1719 = vcmp.lt.s32.totalorder %v1697, 4
    %v1720 = vsel %vm1716, %v1700, %v1703
    %v1721 = vsel %vm1719, %v1709, 2102212464
    %v1722 = vsel %vm1718, %v1706, %v1721
    %v1723 = vsel %vm1717, %v1720, %v1722
    %v1724 = vsel %vm1716, %v1703, %v1706
    %v1725 = vsel %vm1719, %v1712, 920167782
    %v1726 = vsel %vm1718, %v1709, %v1725
    %v1727 = vsel %vm1717, %v1724, %v1726
    %v1728 = vsel %vm1716, %v1706, %v1709
    %v1729 = vsel %vm1719, %v1715, 1326507024
    %v1730 = vsel %vm1718, %v1712, %v1729
    %v1731 = vsel %vm1717, %v1728, %v1730
    %v1732 = vshll.u32 %v1692, 8
    %v1733 = vmul.u32.u64.compose %v1732, %v1731
    %v1734 = vextract.low.u32 %v1733
    %v1735 = vextract.high.u32 %v1733
    %v1736 = vmul.u32.u64.compose %v1732, %v1727
    %v1737 = vextract.low.u32 %v1736
    %v1738 = vextract.high.u32 %v1736
    %v1739 = vmul.u32 %v1732, %v1723
    %v1740 = vadd.s32 %v1735, %v1737
    %vm1741 = vc.u32 %v1735, %v1737
    %v1742 = vadd.s32 %v1738, 1
    %v1743 = vsel %vm1741, %v1742, %v1738
    %v1744 = vadd.s32 %v1739, %v1743
    %v1745 = vadd.s32 %v1744, 536870912
    %v1746 = vshrl.u32 %v1745, 30
    %v1747 = vshll.u32 %v1746, 30
    %v1748 = vsub.s32 %v1744, %v1747
    %vm1749 = vcmp.lt.s32.totalorder %v1748, 0
    %v1750 = vsub.s32 0, %v1748
    %v1751 = vsel %vm1749, %v1750, %v1748
    %v1752 = vclz %v1751
    %v1753 = vsub.s32 %v1752, 2
    %vm1754 = vcmp.gt.s32.totalorder 0, %v1753
    %v1755 = vsel %vm1754, 0, %v1753
    %v1756 = vsub.s32 32, %v1755
    %v1757 = vshll.u32 %v1748, %v1755
    %v1758 = vshrl.u32 %v1740, %v1756
    %v1759 = vor.u32 %v1757, %v1758
    %v1760 = vsub.s32 4294967266, %v1755
    %v1761 = vadd.s32 %v1760, 127
    %v1762 = vshll.u32 %v1761, 23
    %v1763 = vor.u32 4788187, %v1762
    %v1764 = vand.u32 2147483647, %v1763
    %v1766 = vcvt.s32.f32 %v1759
    %v1767 = vmul.f32 %v1766, %v1764
    %v1768 = vxor.u32 %v1767, 2147483648
    %v1769 = vsel %vm1686, %v1768, %v1767
    %v1770 = vsub.s32 4, %v1746
    %v1771 = vsel %vm1686, %v1770, %v1746
    %v1772 = vsel %vm1685, %v672, %v1769
    %v1773 = vsel %vm1685, 0, %v1771
    %v1774 = vcosq.f32.pop %v1772
    %v1775 = vsinq.f32.pop %v1772
    %vm1776 = vweird.f32 %v672
    %v1777 = vand.u32 %v1773, 3
    %vm1778 = vcmp.lt.s32.totalorder %v1777, 2
    %vm1779 = vcmp.eq.s32.totalorder %v1777, 0
    %v1780 = vxor.u32 %v1775, 2147483648
    %v1781 = vsel %vm1779, %v1774, %v1780
    %vm1782 = vcmp.eq.s32.totalorder %v1777, 2
    %v1783 = vxor.u32 %v1774, 2147483648
    %v1784 = vsel %vm1782, %v1783, %v1775
    %v1785 = vsel %vm1778, %v1781, %v1784
    %v1786 = vsel %vm1776, nan, %v1785
    %v1787 = vand.u32 2147483647, %v673
    %vm1788 = vcmp.le.f32.partialorder %v1787, 0.7853982
    %vm1789 = vcmp.lt.s32.totalorder %v673, 0
    %v1790 = vand.u32 %v673, 2139095040
    %v1791 = vshrl.u32 %v1790, 23
    %v1792 = vsub.s32 %v1791, 127
    %v1793 = vand.u32 2147483647, %v673
    %v1794 = vand.u32 %v1793, 8388607
    %v1795 = vor.u32 %v1794, 8388608
    %v1796 = vsub.s32 0, %v1795
    %v1797 = vadd.s32 %v1792, 1
    %vm1798 = vcmp.gt.s32.totalorder %v1797, 0
    %v1799 = vsel %vm1798, %v1797, 0
    %v1800 = vshrl.u32 %v1799, 5
    %v1801 = vand.u32 %v1799, 31
    %v1802 = vsub.s32 32, %v1801
    %v1803 = vshrl.u32 683565275, %v1802
    %v1804 = vshll.u32 683565275, %v1801
    %v1805 = vshrl.u32 2475754826, %v1802
    %v1806 = vor.u32 %v1804, %v1805
    %v1807 = vshll.u32 2475754826, %v1801
    %v1808 = vshrl.u32 2131351028, %v1802
    %v1809 = vor.u32 %v1807, %v1808
    %v1810 = vshll.u32 2131351028, %v1801
    %v1811 = vshrl.u32 2102212464, %v1802
    %v1812 = vor.u32 %v1810, %v1811
    %v1813 = vshll.u32 2102212464, %v1801
    %v1814 = vshrl.u32 920167782, %v1802
    %v1815 = vor.u32 %v1813, %v1814
    %v1816 = vshll.u32 920167782, %v1801
    %v1817 = vshrl.u32 1326507024, %v1802
    %v1818 = vor.u32 %v1816, %v1817
    %vm1819 = vcmp.lt.s32.totalorder %v1800, 1
    %vm1820 = vcmp.lt.s32.totalorder %v1800, 2
    %vm1821 = vcmp.lt.s32.totalorder %v1800, 3
    %vm1822 = vcmp.lt.s32.totalorder %v1800, 4
    %v1823 = vsel %vm1819, %v1803, %v1806
    %v1824 = vsel %vm1822, %v1812, 2102212464
    %v1825 = vsel %vm1821, %v1809, %v1824
    %v1826 = vsel %vm1820, %v1823, %v1825
    %v1827 = vsel %vm1819, %v1806, %v1809
    %v1828 = vsel %vm1822, %v1815, 920167782
    %v1829 = vsel %vm1821, %v1812, %v1828
    %v1830 = vsel %vm1820, %v1827, %v1829
    %v1831 = vsel %vm1819, %v1809, %v1812
    %v1832 = vsel %vm1822, %v1818, 1326507024
    %v1833 = vsel %vm1821, %v1815, %v1832
    %v1834 = vsel %vm1820, %v1831, %v1833
    %v1835 = vshll.u32 %v1795, 8
    %v1836 = vmul.u32.u64.compose %v1835, %v1834
    %v1837 = vextract.low.u32 %v1836
    %v1838 = vextract.high.u32 %v1836
    %v1839 = vmul.u32.u64.compose %v1835, %v1830
    %v1840 = vextract.low.u32 %v1839
    %v1841 = vextract.high.u32 %v1839
    %v1842 = vmul.u32 %v1835, %v1826
    %v1843 = vadd.s32 %v1838, %v1840
    %vm1844 = vc.u32 %v1838, %v1840
    %v1845 = vadd.s32 %v1841, 1
    %v1846 = vsel %vm1844, %v1845, %v1841
    %v1847 = vadd.s32 %v1842, %v1846
    %v1848 = vadd.s32 %v1847, 536870912
    %v1849 = vshrl.u32 %v1848, 30
    %v1850 = vshll.u32 %v1849, 30
    %v1851 = vsub.s32 %v1847, %v1850
    %vm1852 = vcmp.lt.s32.totalorder %v1851, 0
    %v1853 = vsub.s32 0, %v1851
    %v1854 = vsel %vm1852, %v1853, %v1851
    %v1855 = vclz %v1854
    %v1856 = vsub.s32 %v1855, 2
    %vm1857 = vcmp.gt.s32.totalorder 0, %v1856
    %v1858 = vsel %vm1857, 0, %v1856
    %v1859 = vsub.s32 32, %v1858
    %v1860 = vshll.u32 %v1851, %v1858
    %v1861 = vshrl.u32 %v1843, %v1859
    %v1862 = vor.u32 %v1860, %v1861
    %v1863 = vsub.s32 4294967266, %v1858
    %v1864 = vadd.s32 %v1863, 127
    %v1865 = vshll.u32 %v1864, 23
    %v1866 = vor.u32 4788187, %v1865
    %v1867 = vand.u32 2147483647, %v1866
    %v1869 = vcvt.s32.f32 %v1862
    %v1870 = vmul.f32 %v1869, %v1867
    %v1871 = vxor.u32 %v1870, 2147483648
    %v1872 = vsel %vm1789, %v1871, %v1870
    %v1873 = vsub.s32 4, %v1849
    %v1874 = vsel %vm1789, %v1873, %v1849
    %v1875 = vsel %vm1788, %v673, %v1872
    %v1876 = vsel %vm1788, 0, %v1874
    %v1877 = vcosq.f32.pop %v1875
    %v1878 = vsinq.f32.pop %v1875
    %vm1879 = vweird.f32 %v673
    %v1880 = vand.u32 %v1876, 3
    %vm1881 = vcmp.lt.s32.totalorder %v1880, 2
    %vm1882 = vcmp.eq.s32.totalorder %v1880, 0
    %v1883 = vxor.u32 %v1878, 2147483648
    %v1884 = vsel %vm1882, %v1877, %v1883
    %vm1885 = vcmp.eq.s32.totalorder %v1880, 2
    %v1886 = vxor.u32 %v1877, 2147483648
    %v1887 = vsel %vm1885, %v1886, %v1878
    %v1888 = vsel %vm1881, %v1884, %v1887
    %v1889 = vsel %vm1879, nan, %v1888
    %v1890 = vand.u32 2147483647, %v674
    %vm1891 = vcmp.le.f32.partialorder %v1890, 0.7853982
    %vm1892 = vcmp.lt.s32.totalorder %v674, 0
    %v1893 = vand.u32 %v674, 2139095040
    %v1894 = vshrl.u32 %v1893, 23
    %v1895 = vsub.s32 %v1894, 127
    %v1896 = vand.u32 2147483647, %v674
    %v1897 = vand.u32 %v1896, 8388607
    %v1898 = vor.u32 %v1897, 8388608
    %v1899 = vsub.s32 0, %v1898
    %v1900 = vadd.s32 %v1895, 1
    %vm1901 = vcmp.gt.s32.totalorder %v1900, 0
    %v1902 = vsel %vm1901, %v1900, 0
    %v1903 = vshrl.u32 %v1902, 5
    %v1904 = vand.u32 %v1902, 31
    %v1905 = vsub.s32 32, %v1904
    %v1906 = vshrl.u32 683565275, %v1905
    %v1907 = vshll.u32 683565275, %v1904
    %v1908 = vshrl.u32 2475754826, %v1905
    %v1909 = vor.u32 %v1907, %v1908
    %v1910 = vshll.u32 2475754826, %v1904
    %v1911 = vshrl.u32 2131351028, %v1905
    %v1912 = vor.u32 %v1910, %v1911
    %v1913 = vshll.u32 2131351028, %v1904
    %v1914 = vshrl.u32 2102212464, %v1905
    %v1915 = vor.u32 %v1913, %v1914
    %v1916 = vshll.u32 2102212464, %v1904
    %v1917 = vshrl.u32 920167782, %v1905
    %v1918 = vor.u32 %v1916, %v1917
    %v1919 = vshll.u32 920167782, %v1904
    %v1920 = vshrl.u32 1326507024, %v1905
    %v1921 = vor.u32 %v1919, %v1920
    %vm1922 = vcmp.lt.s32.totalorder %v1903, 1
    %vm1923 = vcmp.lt.s32.totalorder %v1903, 2
    %vm1924 = vcmp.lt.s32.totalorder %v1903, 3
    %vm1925 = vcmp.lt.s32.totalorder %v1903, 4
    %v1926 = vsel %vm1922, %v1906, %v1909
    %v1927 = vsel %vm1925, %v1915, 2102212464
    %v1928 = vsel %vm1924, %v1912, %v1927
    %v1929 = vsel %vm1923, %v1926, %v1928
    %v1930 = vsel %vm1922, %v1909, %v1912
    %v1931 = vsel %vm1925, %v1918, 920167782
    %v1932 = vsel %vm1924, %v1915, %v1931
    %v1933 = vsel %vm1923, %v1930, %v1932
    %v1934 = vsel %vm1922, %v1912, %v1915
    %v1935 = vsel %vm1925, %v1921, 1326507024
    %v1936 = vsel %vm1924, %v1918, %v1935
    %v1937 = vsel %vm1923, %v1934, %v1936
    %v1938 = vshll.u32 %v1898, 8
    %v1939 = vmul.u32.u64.compose %v1938, %v1937
    %v1940 = vextract.low.u32 %v1939
    %v1941 = vextract.high.u32 %v1939
    %v1942 = vmul.u32.u64.compose %v1938, %v1933
    %v1943 = vextract.low.u32 %v1942
    %v1944 = vextract.high.u32 %v1942
    %v1945 = vmul.u32 %v1938, %v1929
    %v1946 = vadd.s32 %v1941, %v1943
    %vm1947 = vc.u32 %v1941, %v1943
    %v1948 = vadd.s32 %v1944, 1
    %v1949 = vsel %vm1947, %v1948, %v1944
    %v1950 = vadd.s32 %v1945, %v1949
    %v1951 = vadd.s32 %v1950, 536870912
    %v1952 = vshrl.u32 %v1951, 30
    %v1953 = vshll.u32 %v1952, 30
    %v1954 = vsub.s32 %v1950, %v1953
    %vm1955 = vcmp.lt.s32.totalorder %v1954, 0
    %v1956 = vsub.s32 0, %v1954
    %v1957 = vsel %vm1955, %v1956, %v1954
    %v1958 = vclz %v1957
    %v1959 = vsub.s32 %v1958, 2
    %vm1960 = vcmp.gt.s32.totalorder 0, %v1959
    %v1961 = vsel %vm1960, 0, %v1959
    %v1962 = vsub.s32 32, %v1961
    %v1963 = vshll.u32 %v1954, %v1961
    %v1964 = vshrl.u32 %v1946, %v1962
    %v1965 = vor.u32 %v1963, %v1964
    %v1966 = vsub.s32 4294967266, %v1961
    %v1967 = vadd.s32 %v1966, 127
    %v1968 = vshll.u32 %v1967, 23
    %v1969 = vor.u32 4788187, %v1968
    %v1970 = vand.u32 2147483647, %v1969
    %v1972 = vcvt.s32.f32 %v1965
    %v1973 = vmul.f32 %v1972, %v1970
    %v1974 = vxor.u32 %v1973, 2147483648
    %v1975 = vsel %vm1892, %v1974, %v1973
    %v1976 = vsub.s32 4, %v1952
    %v1977 = vsel %vm1892, %v1976, %v1952
    %v1978 = vsel %vm1891, %v674, %v1975
    %v1979 = vsel %vm1891, 0, %v1977
    %v1980 = vcosq.f32.pop %v1978
    %v1981 = vsinq.f32.pop %v1978
    %vm1982 = vweird.f32 %v674
    %v1983 = vand.u32 %v1979, 3
    %vm1984 = vcmp.lt.s32.totalorder %v1983, 2
    %vm1985 = vcmp.eq.s32.totalorder %v1983, 0
    %v1986 = vxor.u32 %v1981, 2147483648
    %v1987 = vsel %vm1985, %v1980, %v1986
    %vm1988 = vcmp.eq.s32.totalorder %v1983, 2
    %v1989 = vxor.u32 %v1980, 2147483648
    %v1990 = vsel %vm1988, %v1989, %v1981
    %v1991 = vsel %vm1984, %v1987, %v1990
    %v1992 = vsel %vm1982, nan, %v1991
    %v1993 = vand.u32 2147483647, %v675
    %vm1994 = vcmp.le.f32.partialorder %v1993, 0.7853982
    %vm1995 = vcmp.lt.s32.totalorder %v675, 0
    %v1996 = vand.u32 %v675, 2139095040
    %v1997 = vshrl.u32 %v1996, 23
    %v1998 = vsub.s32 %v1997, 127
    %v1999 = vand.u32 2147483647, %v675
    %v2000 = vand.u32 %v1999, 8388607
    %v2001 = vor.u32 %v2000, 8388608
    %v2002 = vsub.s32 0, %v2001
    %v2003 = vadd.s32 %v1998, 1
    %vm2004 = vcmp.gt.s32.totalorder %v2003, 0
    %v2005 = vsel %vm2004, %v2003, 0
    %v2006 = vshrl.u32 %v2005, 5
    %v2007 = vand.u32 %v2005, 31
    %v2008 = vsub.s32 32, %v2007
    %v2009 = vshrl.u32 683565275, %v2008
    %v2010 = vshll.u32 683565275, %v2007
    %v2011 = vshrl.u32 2475754826, %v2008
    %v2012 = vor.u32 %v2010, %v2011
    %v2013 = vshll.u32 2475754826, %v2007
    %v2014 = vshrl.u32 2131351028, %v2008
    %v2015 = vor.u32 %v2013, %v2014
    %v2016 = vshll.u32 2131351028, %v2007
    %v2017 = vshrl.u32 2102212464, %v2008
    %v2018 = vor.u32 %v2016, %v2017
    %v2019 = vshll.u32 2102212464, %v2007
    %v2020 = vshrl.u32 920167782, %v2008
    %v2021 = vor.u32 %v2019, %v2020
    %v2022 = vshll.u32 920167782, %v2007
    %v2023 = vshrl.u32 1326507024, %v2008
    %v2024 = vor.u32 %v2022, %v2023
    %vm2025 = vcmp.lt.s32.totalorder %v2006, 1
    %vm2026 = vcmp.lt.s32.totalorder %v2006, 2
    %vm2027 = vcmp.lt.s32.totalorder %v2006, 3
    %vm2028 = vcmp.lt.s32.totalorder %v2006, 4
    %v2029 = vsel %vm2025, %v2009, %v2012
    %v2030 = vsel %vm2028, %v2018, 2102212464
    %v2031 = vsel %vm2027, %v2015, %v2030
    %v2032 = vsel %vm2026, %v2029, %v2031
    %v2033 = vsel %vm2025, %v2012, %v2015
    %v2034 = vsel %vm2028, %v2021, 920167782
    %v2035 = vsel %vm2027, %v2018, %v2034
    %v2036 = vsel %vm2026, %v2033, %v2035
    %v2037 = vsel %vm2025, %v2015, %v2018
    %v2038 = vsel %vm2028, %v2024, 1326507024
    %v2039 = vsel %vm2027, %v2021, %v2038
    %v2040 = vsel %vm2026, %v2037, %v2039
    %v2041 = vshll.u32 %v2001, 8
    %v2042 = vmul.u32.u64.compose %v2041, %v2040
    %v2043 = vextract.low.u32 %v2042
    %v2044 = vextract.high.u32 %v2042
    %v2045 = vmul.u32.u64.compose %v2041, %v2036
    %v2046 = vextract.low.u32 %v2045
    %v2047 = vextract.high.u32 %v2045
    %v2048 = vmul.u32 %v2041, %v2032
    %v2049 = vadd.s32 %v2044, %v2046
    %vm2050 = vc.u32 %v2044, %v2046
    %v2051 = vadd.s32 %v2047, 1
    %v2052 = vsel %vm2050, %v2051, %v2047
    %v2053 = vadd.s32 %v2048, %v2052
    %v2054 = vadd.s32 %v2053, 536870912
    %v2055 = vshrl.u32 %v2054, 30
    %v2056 = vshll.u32 %v2055, 30
    %v2057 = vsub.s32 %v2053, %v2056
    %vm2058 = vcmp.lt.s32.totalorder %v2057, 0
    %v2059 = vsub.s32 0, %v2057
    %v2060 = vsel %vm2058, %v2059, %v2057
    %v2061 = vclz %v2060
    %v2062 = vsub.s32 %v2061, 2
    %vm2063 = vcmp.gt.s32.totalorder 0, %v2062
    %v2064 = vsel %vm2063, 0, %v2062
    %v2065 = vsub.s32 32, %v2064
    %v2066 = vshll.u32 %v2057, %v2064
    %v2067 = vshrl.u32 %v2049, %v2065
    %v2068 = vor.u32 %v2066, %v2067
    %v2069 = vsub.s32 4294967266, %v2064
    %v2070 = vadd.s32 %v2069, 127
    %v2071 = vshll.u32 %v2070, 23
    %v2072 = vor.u32 4788187, %v2071
    %v2073 = vand.u32 2147483647, %v2072
    %v2075 = vcvt.s32.f32 %v2068
    %v2076 = vmul.f32 %v2075, %v2073
    %v2077 = vxor.u32 %v2076, 2147483648
    %v2078 = vsel %vm1995, %v2077, %v2076
    %v2079 = vsub.s32 4, %v2055
    %v2080 = vsel %vm1995, %v2079, %v2055
    %v2081 = vsel %vm1994, %v675, %v2078
    %v2082 = vsel %vm1994, 0, %v2080
    %v2083 = vcosq.f32.pop %v2081
    %v2084 = vsinq.f32.pop %v2081
    %vm2085 = vweird.f32 %v675
    %v2086 = vand.u32 %v2082, 3
    %vm2087 = vcmp.lt.s32.totalorder %v2086, 2
    %vm2088 = vcmp.eq.s32.totalorder %v2086, 0
    %v2089 = vxor.u32 %v2084, 2147483648
    %v2090 = vsel %vm2088, %v2083, %v2089
    %vm2091 = vcmp.eq.s32.totalorder %v2086, 2
    %v2092 = vxor.u32 %v2083, 2147483648
    %v2093 = vsel %vm2091, %v2092, %v2084
    %v2094 = vsel %vm2087, %v2090, %v2093
    %v2095 = vsel %vm2085, nan, %v2094
    %v2096 = vand.u32 2147483647, %v676
    %vm2097 = vcmp.le.f32.partialorder %v2096, 0.7853982
    %vm2098 = vcmp.lt.s32.totalorder %v676, 0
    %v2099 = vand.u32 %v676, 2139095040
    %v2100 = vshrl.u32 %v2099, 23
    %v2101 = vsub.s32 %v2100, 127
    %v2102 = vand.u32 2147483647, %v676
    %v2103 = vand.u32 %v2102, 8388607
    %v2104 = vor.u32 %v2103, 8388608
    %v2105 = vsub.s32 0, %v2104
    %v2106 = vadd.s32 %v2101, 1
    %vm2107 = vcmp.gt.s32.totalorder %v2106, 0
    %v2108 = vsel %vm2107, %v2106, 0
    %v2109 = vshrl.u32 %v2108, 5
    %v2110 = vand.u32 %v2108, 31
    %v2111 = vsub.s32 32, %v2110
    %v2112 = vshrl.u32 683565275, %v2111
    %v2113 = vshll.u32 683565275, %v2110
    %v2114 = vshrl.u32 2475754826, %v2111
    %v2115 = vor.u32 %v2113, %v2114
    %v2116 = vshll.u32 2475754826, %v2110
    %v2117 = vshrl.u32 2131351028, %v2111
    %v2118 = vor.u32 %v2116, %v2117
    %v2119 = vshll.u32 2131351028, %v2110
    %v2120 = vshrl.u32 2102212464, %v2111
    %v2121 = vor.u32 %v2119, %v2120
    %v2122 = vshll.u32 2102212464, %v2110
    %v2123 = vshrl.u32 920167782, %v2111
    %v2124 = vor.u32 %v2122, %v2123
    %v2125 = vshll.u32 920167782, %v2110
    %v2126 = vshrl.u32 1326507024, %v2111
    %v2127 = vor.u32 %v2125, %v2126
    %vm2128 = vcmp.lt.s32.totalorder %v2109, 1
    %vm2129 = vcmp.lt.s32.totalorder %v2109, 2
    %vm2130 = vcmp.lt.s32.totalorder %v2109, 3
    %vm2131 = vcmp.lt.s32.totalorder %v2109, 4
    %v2132 = vsel %vm2128, %v2112, %v2115
    %v2133 = vsel %vm2131, %v2121, 2102212464
    %v2134 = vsel %vm2130, %v2118, %v2133
    %v2135 = vsel %vm2129, %v2132, %v2134
    %v2136 = vsel %vm2128, %v2115, %v2118
    %v2137 = vsel %vm2131, %v2124, 920167782
    %v2138 = vsel %vm2130, %v2121, %v2137
    %v2139 = vsel %vm2129, %v2136, %v2138
    %v2140 = vsel %vm2128, %v2118, %v2121
    %v2141 = vsel %vm2131, %v2127, 1326507024
    %v2142 = vsel %vm2130, %v2124, %v2141
    %v2143 = vsel %vm2129, %v2140, %v2142
    %v2144 = vshll.u32 %v2104, 8
    %v2145 = vmul.u32.u64.compose %v2144, %v2143
    %v2146 = vextract.low.u32 %v2145
    %v2147 = vextract.high.u32 %v2145
    %v2148 = vmul.u32.u64.compose %v2144, %v2139
    %v2149 = vextract.low.u32 %v2148
    %v2150 = vextract.high.u32 %v2148
    %v2151 = vmul.u32 %v2144, %v2135
    %v2152 = vadd.s32 %v2147, %v2149
    %vm2153 = vc.u32 %v2147, %v2149
    %v2154 = vadd.s32 %v2150, 1
    %v2155 = vsel %vm2153, %v2154, %v2150
    %v2156 = vadd.s32 %v2151, %v2155
    %v2157 = vadd.s32 %v2156, 536870912
    %v2158 = vshrl.u32 %v2157, 30
    %v2159 = vshll.u32 %v2158, 30
    %v2160 = vsub.s32 %v2156, %v2159
    %vm2161 = vcmp.lt.s32.totalorder %v2160, 0
    %v2162 = vsub.s32 0, %v2160
    %v2163 = vsel %vm2161, %v2162, %v2160
    %v2164 = vclz %v2163
    %v2165 = vsub.s32 %v2164, 2
    %vm2166 = vcmp.gt.s32.totalorder 0, %v2165
    %v2167 = vsel %vm2166, 0, %v2165
    %v2168 = vsub.s32 32, %v2167
    %v2169 = vshll.u32 %v2160, %v2167
    %v2170 = vshrl.u32 %v2152, %v2168
    %v2171 = vor.u32 %v2169, %v2170
    %v2172 = vsub.s32 4294967266, %v2167
    %v2173 = vadd.s32 %v2172, 127
    %v2174 = vshll.u32 %v2173, 23
    %v2175 = vor.u32 4788187, %v2174
    %v2176 = vand.u32 2147483647, %v2175
    %v2178 = vcvt.s32.f32 %v2171
    %v2179 = vmul.f32 %v2178, %v2176
    %v2180 = vxor.u32 %v2179, 2147483648
    %v2181 = vsel %vm2098, %v2180, %v2179
    %v2182 = vsub.s32 4, %v2158
    %v2183 = vsel %vm2098, %v2182, %v2158
    %v2184 = vsel %vm2097, %v676, %v2181
    %v2185 = vsel %vm2097, 0, %v2183
    %v2186 = vcosq.f32.pop %v2184
    %v2187 = vsinq.f32.pop %v2184
    %vm2188 = vweird.f32 %v676
    %v2189 = vand.u32 %v2185, 3
    %vm2190 = vcmp.lt.s32.totalorder %v2189, 2
    %vm2191 = vcmp.eq.s32.totalorder %v2189, 0
    %v2192 = vxor.u32 %v2187, 2147483648
    %v2193 = vsel %vm2191, %v2186, %v2192
    %vm2194 = vcmp.eq.s32.totalorder %v2189, 2
    %v2195 = vxor.u32 %v2186, 2147483648
    %v2196 = vsel %vm2194, %v2195, %v2187
    %v2197 = vsel %vm2190, %v2193, %v2196
    %v2198 = vsel %vm2188, nan, %v2197
    %v2199 = vand.u32 2147483647, %v677
    %vm2200 = vcmp.le.f32.partialorder %v2199, 0.7853982
    %vm2201 = vcmp.lt.s32.totalorder %v677, 0
    %v2202 = vand.u32 %v677, 2139095040
    %v2203 = vshrl.u32 %v2202, 23
    %v2204 = vsub.s32 %v2203, 127
    %v2205 = vand.u32 2147483647, %v677
    %v2206 = vand.u32 %v2205, 8388607
    %v2207 = vor.u32 %v2206, 8388608
    %v2208 = vsub.s32 0, %v2207
    %v2209 = vadd.s32 %v2204, 1
    %vm2210 = vcmp.gt.s32.totalorder %v2209, 0
    %v2211 = vsel %vm2210, %v2209, 0
    %v2212 = vshrl.u32 %v2211, 5
    %v2213 = vand.u32 %v2211, 31
    %v2214 = vsub.s32 32, %v2213
    %v2215 = vshrl.u32 683565275, %v2214
    %v2216 = vshll.u32 683565275, %v2213
    %v2217 = vshrl.u32 2475754826, %v2214
    %v2218 = vor.u32 %v2216, %v2217
    %v2219 = vshll.u32 2475754826, %v2213
    %v2220 = vshrl.u32 2131351028, %v2214
    %v2221 = vor.u32 %v2219, %v2220
    %v2222 = vshll.u32 2131351028, %v2213
    %v2223 = vshrl.u32 2102212464, %v2214
    %v2224 = vor.u32 %v2222, %v2223
    %v2225 = vshll.u32 2102212464, %v2213
    %v2226 = vshrl.u32 920167782, %v2214
    %v2227 = vor.u32 %v2225, %v2226
    %v2228 = vshll.u32 920167782, %v2213
    %v2229 = vshrl.u32 1326507024, %v2214
    %v2230 = vor.u32 %v2228, %v2229
    %vm2231 = vcmp.lt.s32.totalorder %v2212, 1
    %vm2232 = vcmp.lt.s32.totalorder %v2212, 2
    %vm2233 = vcmp.lt.s32.totalorder %v2212, 3
    %vm2234 = vcmp.lt.s32.totalorder %v2212, 4
    %v2235 = vsel %vm2231, %v2215, %v2218
    %v2236 = vsel %vm2234, %v2224, 2102212464
    %v2237 = vsel %vm2233, %v2221, %v2236
    %v2238 = vsel %vm2232, %v2235, %v2237
    %v2239 = vsel %vm2231, %v2218, %v2221
    %v2240 = vsel %vm2234, %v2227, 920167782
    %v2241 = vsel %vm2233, %v2224, %v2240
    %v2242 = vsel %vm2232, %v2239, %v2241
    %v2243 = vsel %vm2231, %v2221, %v2224
    %v2244 = vsel %vm2234, %v2230, 1326507024
    %v2245 = vsel %vm2233, %v2227, %v2244
    %v2246 = vsel %vm2232, %v2243, %v2245
    %v2247 = vshll.u32 %v2207, 8
    %v2248 = vmul.u32.u64.compose %v2247, %v2246
    %v2249 = vextract.low.u32 %v2248
    %v2250 = vextract.high.u32 %v2248
    %v2251 = vmul.u32.u64.compose %v2247, %v2242
    %v2252 = vextract.low.u32 %v2251
    %v2253 = vextract.high.u32 %v2251
    %v2254 = vmul.u32 %v2247, %v2238
    %v2255 = vadd.s32 %v2250, %v2252
    %vm2256 = vc.u32 %v2250, %v2252
    %v2257 = vadd.s32 %v2253, 1
    %v2258 = vsel %vm2256, %v2257, %v2253
    %v2259 = vadd.s32 %v2254, %v2258
    %v2260 = vadd.s32 %v2259, 536870912
    %v2261 = vshrl.u32 %v2260, 30
    %v2262 = vshll.u32 %v2261, 30
    %v2263 = vsub.s32 %v2259, %v2262
    %vm2264 = vcmp.lt.s32.totalorder %v2263, 0
    %v2265 = vsub.s32 0, %v2263
    %v2266 = vsel %vm2264, %v2265, %v2263
    %v2267 = vclz %v2266
    %v2268 = vsub.s32 %v2267, 2
    %vm2269 = vcmp.gt.s32.totalorder 0, %v2268
    %v2270 = vsel %vm2269, 0, %v2268
    %v2271 = vsub.s32 32, %v2270
    %v2272 = vshll.u32 %v2263, %v2270
    %v2273 = vshrl.u32 %v2255, %v2271
    %v2274 = vor.u32 %v2272, %v2273
    %v2275 = vsub.s32 4294967266, %v2270
    %v2276 = vadd.s32 %v2275, 127
    %v2277 = vshll.u32 %v2276, 23
    %v2278 = vor.u32 4788187, %v2277
    %v2279 = vand.u32 2147483647, %v2278
    %v2281 = vcvt.s32.f32 %v2274
    %v2282 = vmul.f32 %v2281, %v2279
    %v2283 = vxor.u32 %v2282, 2147483648
    %v2284 = vsel %vm2201, %v2283, %v2282
    %v2285 = vsub.s32 4, %v2261
    %v2286 = vsel %vm2201, %v2285, %v2261
    %v2287 = vsel %vm2200, %v677, %v2284
    %v2288 = vsel %vm2200, 0, %v2286
    %v2289 = vcosq.f32.pop %v2287
    %v2290 = vsinq.f32.pop %v2287
    %vm2291 = vweird.f32 %v677
    %v2292 = vand.u32 %v2288, 3
    %vm2293 = vcmp.lt.s32.totalorder %v2292, 2
    %vm2294 = vcmp.eq.s32.totalorder %v2292, 0
    %v2295 = vxor.u32 %v2290, 2147483648
    %v2296 = vsel %vm2294, %v2289, %v2295
    %vm2297 = vcmp.eq.s32.totalorder %v2292, 2
    %v2298 = vxor.u32 %v2289, 2147483648
    %v2299 = vsel %vm2297, %v2298, %v2290
    %v2300 = vsel %vm2293, %v2296, %v2299
    %v2301 = vsel %vm2291, nan, %v2300
    %v2302 = vand.u32 2147483647, %v678
    %vm2303 = vcmp.le.f32.partialorder %v2302, 0.7853982
    %vm2304 = vcmp.lt.s32.totalorder %v678, 0
    %v2305 = vand.u32 %v678, 2139095040
    %v2306 = vshrl.u32 %v2305, 23
    %v2307 = vsub.s32 %v2306, 127
    %v2308 = vand.u32 2147483647, %v678
    %v2309 = vand.u32 %v2308, 8388607
    %v2310 = vor.u32 %v2309, 8388608
    %v2311 = vsub.s32 0, %v2310
    %v2312 = vadd.s32 %v2307, 1
    %vm2313 = vcmp.gt.s32.totalorder %v2312, 0
    %v2314 = vsel %vm2313, %v2312, 0
    %v2315 = vshrl.u32 %v2314, 5
    %v2316 = vand.u32 %v2314, 31
    %v2317 = vsub.s32 32, %v2316
    %v2318 = vshrl.u32 683565275, %v2317
    %v2319 = vshll.u32 683565275, %v2316
    %v2320 = vshrl.u32 2475754826, %v2317
    %v2321 = vor.u32 %v2319, %v2320
    %v2322 = vshll.u32 2475754826, %v2316
    %v2323 = vshrl.u32 2131351028, %v2317
    %v2324 = vor.u32 %v2322, %v2323
    %v2325 = vshll.u32 2131351028, %v2316
    %v2326 = vshrl.u32 2102212464, %v2317
    %v2327 = vor.u32 %v2325, %v2326
    %v2328 = vshll.u32 2102212464, %v2316
    %v2329 = vshrl.u32 920167782, %v2317
    %v2330 = vor.u32 %v2328, %v2329
    %v2331 = vshll.u32 920167782, %v2316
    %v2332 = vshrl.u32 1326507024, %v2317
    %v2333 = vor.u32 %v2331, %v2332
    %vm2334 = vcmp.lt.s32.totalorder %v2315, 1
    %vm2335 = vcmp.lt.s32.totalorder %v2315, 2
    %vm2336 = vcmp.lt.s32.totalorder %v2315, 3
    %vm2337 = vcmp.lt.s32.totalorder %v2315, 4
    %v2338 = vsel %vm2334, %v2318, %v2321
    %v2339 = vsel %vm2337, %v2327, 2102212464
    %v2340 = vsel %vm2336, %v2324, %v2339
    %v2341 = vsel %vm2335, %v2338, %v2340
    %v2342 = vsel %vm2334, %v2321, %v2324
    %v2343 = vsel %vm2337, %v2330, 920167782
    %v2344 = vsel %vm2336, %v2327, %v2343
    %v2345 = vsel %vm2335, %v2342, %v2344
    %v2346 = vsel %vm2334, %v2324, %v2327
    %v2347 = vsel %vm2337, %v2333, 1326507024
    %v2348 = vsel %vm2336, %v2330, %v2347
    %v2349 = vsel %vm2335, %v2346, %v2348
    %v2350 = vshll.u32 %v2310, 8
    %v2351 = vmul.u32.u64.compose %v2350, %v2349
    %v2352 = vextract.low.u32 %v2351
    %v2353 = vextract.high.u32 %v2351
    %v2354 = vmul.u32.u64.compose %v2350, %v2345
    %v2355 = vextract.low.u32 %v2354
    %v2356 = vextract.high.u32 %v2354
    %v2357 = vmul.u32 %v2350, %v2341
    %v2358 = vadd.s32 %v2353, %v2355
    %vm2359 = vc.u32 %v2353, %v2355
    %v2360 = vadd.s32 %v2356, 1
    %v2361 = vsel %vm2359, %v2360, %v2356
    %v2362 = vadd.s32 %v2357, %v2361
    %v2363 = vadd.s32 %v2362, 536870912
    %v2364 = vshrl.u32 %v2363, 30
    %v2365 = vshll.u32 %v2364, 30
    %v2366 = vsub.s32 %v2362, %v2365
    %vm2367 = vcmp.lt.s32.totalorder %v2366, 0
    %v2368 = vsub.s32 0, %v2366
    %v2369 = vsel %vm2367, %v2368, %v2366
    %v2370 = vclz %v2369
    %v2371 = vsub.s32 %v2370, 2
    %vm2372 = vcmp.gt.s32.totalorder 0, %v2371
    %v2373 = vsel %vm2372, 0, %v2371
    %v2374 = vsub.s32 32, %v2373
    %v2375 = vshll.u32 %v2366, %v2373
    %v2376 = vshrl.u32 %v2358, %v2374
    %v2377 = vor.u32 %v2375, %v2376
    %v2378 = vsub.s32 4294967266, %v2373
    %v2379 = vadd.s32 %v2378, 127
    %v2380 = vshll.u32 %v2379, 23
    %v2381 = vor.u32 4788187, %v2380
    %v2382 = vand.u32 2147483647, %v2381
    %v2384 = vcvt.s32.f32 %v2377
    %v2385 = vmul.f32 %v2384, %v2382
    %v2386 = vxor.u32 %v2385, 2147483648
    %v2387 = vsel %vm2304, %v2386, %v2385
    %v2388 = vsub.s32 4, %v2364
    %v2389 = vsel %vm2304, %v2388, %v2364
    %v2390 = vsel %vm2303, %v678, %v2387
    %v2391 = vsel %vm2303, 0, %v2389
    %v2392 = vcosq.f32.pop %v2390
    %v2393 = vsinq.f32.pop %v2390
    %vm2394 = vweird.f32 %v678
    %v2395 = vand.u32 %v2391, 3
    %vm2396 = vcmp.lt.s32.totalorder %v2395, 2
    %vm2397 = vcmp.eq.s32.totalorder %v2395, 0
    %v2398 = vxor.u32 %v2393, 2147483648
    %v2399 = vsel %vm2397, %v2392, %v2398
    %vm2400 = vcmp.eq.s32.totalorder %v2395, 2
    %v2401 = vxor.u32 %v2392, 2147483648
    %v2402 = vsel %vm2400, %v2401, %v2393
    %v2403 = vsel %vm2396, %v2399, %v2402
    %v2404 = vsel %vm2394, nan, %v2403
    %v2405 = vand.u32 2147483647, %v679
    %vm2406 = vcmp.le.f32.partialorder %v2405, 0.7853982
    %vm2407 = vcmp.lt.s32.totalorder %v679, 0
    %v2408 = vand.u32 %v679, 2139095040
    %v2409 = vshrl.u32 %v2408, 23
    %v2410 = vsub.s32 %v2409, 127
    %v2411 = vand.u32 2147483647, %v679
    %v2412 = vand.u32 %v2411, 8388607
    %v2413 = vor.u32 %v2412, 8388608
    %v2414 = vsub.s32 0, %v2413
    %v2415 = vadd.s32 %v2410, 1
    %vm2416 = vcmp.gt.s32.totalorder %v2415, 0
    %v2417 = vsel %vm2416, %v2415, 0
    %v2418 = vshrl.u32 %v2417, 5
    %v2419 = vand.u32 %v2417, 31
    %v2420 = vsub.s32 32, %v2419
    %v2421 = vshrl.u32 683565275, %v2420
    %v2422 = vshll.u32 683565275, %v2419
    %v2423 = vshrl.u32 2475754826, %v2420
    %v2424 = vor.u32 %v2422, %v2423
    %v2425 = vshll.u32 2475754826, %v2419
    %v2426 = vshrl.u32 2131351028, %v2420
    %v2427 = vor.u32 %v2425, %v2426
    %v2428 = vshll.u32 2131351028, %v2419
    %v2429 = vshrl.u32 2102212464, %v2420
    %v2430 = vor.u32 %v2428, %v2429
    %v2431 = vshll.u32 2102212464, %v2419
    %v2432 = vshrl.u32 920167782, %v2420
    %v2433 = vor.u32 %v2431, %v2432
    %v2434 = vshll.u32 920167782, %v2419
    %v2435 = vshrl.u32 1326507024, %v2420
    %v2436 = vor.u32 %v2434, %v2435
    %vm2437 = vcmp.lt.s32.totalorder %v2418, 1
    %vm2438 = vcmp.lt.s32.totalorder %v2418, 2
    %vm2439 = vcmp.lt.s32.totalorder %v2418, 3
    %vm2440 = vcmp.lt.s32.totalorder %v2418, 4
    %v2441 = vsel %vm2437, %v2421, %v2424
    %v2442 = vsel %vm2440, %v2430, 2102212464
    %v2443 = vsel %vm2439, %v2427, %v2442
    %v2444 = vsel %vm2438, %v2441, %v2443
    %v2445 = vsel %vm2437, %v2424, %v2427
    %v2446 = vsel %vm2440, %v2433, 920167782
    %v2447 = vsel %vm2439, %v2430, %v2446
    %v2448 = vsel %vm2438, %v2445, %v2447
    %v2449 = vsel %vm2437, %v2427, %v2430
    %v2450 = vsel %vm2440, %v2436, 1326507024
    %v2451 = vsel %vm2439, %v2433, %v2450
    %v2452 = vsel %vm2438, %v2449, %v2451
    %v2453 = vshll.u32 %v2413, 8
    %v2454 = vmul.u32.u64.compose %v2453, %v2452
    %v2455 = vextract.low.u32 %v2454
    %v2456 = vextract.high.u32 %v2454
    %v2457 = vmul.u32.u64.compose %v2453, %v2448
    %v2458 = vextract.low.u32 %v2457
    %v2459 = vextract.high.u32 %v2457
    %v2460 = vmul.u32 %v2453, %v2444
    %v2461 = vadd.s32 %v2456, %v2458
    %vm2462 = vc.u32 %v2456, %v2458
    %v2463 = vadd.s32 %v2459, 1
    %v2464 = vsel %vm2462, %v2463, %v2459
    %v2465 = vadd.s32 %v2460, %v2464
    %v2466 = vadd.s32 %v2465, 536870912
    %v2467 = vshrl.u32 %v2466, 30
    %v2468 = vshll.u32 %v2467, 30
    %v2469 = vsub.s32 %v2465, %v2468
    %vm2470 = vcmp.lt.s32.totalorder %v2469, 0
    %v2471 = vsub.s32 0, %v2469
    %v2472 = vsel %vm2470, %v2471, %v2469
    %v2473 = vclz %v2472
    %v2474 = vsub.s32 %v2473, 2
    %vm2475 = vcmp.gt.s32.totalorder 0, %v2474
    %v2476 = vsel %vm2475, 0, %v2474
    %v2477 = vsub.s32 32, %v2476
    %v2478 = vshll.u32 %v2469, %v2476
    %v2479 = vshrl.u32 %v2461, %v2477
    %v2480 = vor.u32 %v2478, %v2479
    %v2481 = vsub.s32 4294967266, %v2476
    %v2482 = vadd.s32 %v2481, 127
    %v2483 = vshll.u32 %v2482, 23
    %v2484 = vor.u32 4788187, %v2483
    %v2485 = vand.u32 2147483647, %v2484
    %v2487 = vcvt.s32.f32 %v2480
    %v2488 = vmul.f32 %v2487, %v2485
    %v2489 = vxor.u32 %v2488, 2147483648
    %v2490 = vsel %vm2407, %v2489, %v2488
    %v2491 = vsub.s32 4, %v2467
    %v2492 = vsel %vm2407, %v2491, %v2467
    %v2493 = vsel %vm2406, %v679, %v2490
    %v2494 = vsel %vm2406, 0, %v2492
    %v2495 = vcosq.f32.pop %v2493
    %v2496 = vsinq.f32.pop %v2493
    %vm2497 = vweird.f32 %v679
    %v2498 = vand.u32 %v2494, 3
    %vm2499 = vcmp.lt.s32.totalorder %v2498, 2
    %vm2500 = vcmp.eq.s32.totalorder %v2498, 0
    %v2501 = vxor.u32 %v2496, 2147483648
    %v2502 = vsel %vm2500, %v2495, %v2501
    %vm2503 = vcmp.eq.s32.totalorder %v2498, 2
    %v2504 = vxor.u32 %v2495, 2147483648
    %v2505 = vsel %vm2503, %v2504, %v2496
    %v2506 = vsel %vm2499, %v2502, %v2505
    %v2507 = vsel %vm2497, nan, %v2506
    %v2508 = vand.u32 2147483647, %v680
    %vm2509 = vcmp.le.f32.partialorder %v2508, 0.7853982
    %vm2510 = vcmp.lt.s32.totalorder %v680, 0
    %v2511 = vand.u32 %v680, 2139095040
    %v2512 = vshrl.u32 %v2511, 23
    %v2513 = vsub.s32 %v2512, 127
    %v2514 = vand.u32 2147483647, %v680
    %v2515 = vand.u32 %v2514, 8388607
    %v2516 = vor.u32 %v2515, 8388608
    %v2517 = vsub.s32 0, %v2516
    %v2518 = vadd.s32 %v2513, 1
    %vm2519 = vcmp.gt.s32.totalorder %v2518, 0
    %v2520 = vsel %vm2519, %v2518, 0
    %v2521 = vshrl.u32 %v2520, 5
    %v2522 = vand.u32 %v2520, 31
    %v2523 = vsub.s32 32, %v2522
    %v2524 = vshrl.u32 683565275, %v2523
    %v2525 = vshll.u32 683565275, %v2522
    %v2526 = vshrl.u32 2475754826, %v2523
    %v2527 = vor.u32 %v2525, %v2526
    %v2528 = vshll.u32 2475754826, %v2522
    %v2529 = vshrl.u32 2131351028, %v2523
    %v2530 = vor.u32 %v2528, %v2529
    %v2531 = vshll.u32 2131351028, %v2522
    %v2532 = vshrl.u32 2102212464, %v2523
    %v2533 = vor.u32 %v2531, %v2532
    %v2534 = vshll.u32 2102212464, %v2522
    %v2535 = vshrl.u32 920167782, %v2523
    %v2536 = vor.u32 %v2534, %v2535
    %v2537 = vshll.u32 920167782, %v2522
    %v2538 = vshrl.u32 1326507024, %v2523
    %v2539 = vor.u32 %v2537, %v2538
    %vm2540 = vcmp.lt.s32.totalorder %v2521, 1
    %vm2541 = vcmp.lt.s32.totalorder %v2521, 2
    %vm2542 = vcmp.lt.s32.totalorder %v2521, 3
    %vm2543 = vcmp.lt.s32.totalorder %v2521, 4
    %v2544 = vsel %vm2540, %v2524, %v2527
    %v2545 = vsel %vm2543, %v2533, 2102212464
    %v2546 = vsel %vm2542, %v2530, %v2545
    %v2547 = vsel %vm2541, %v2544, %v2546
    %v2548 = vsel %vm2540, %v2527, %v2530
    %v2549 = vsel %vm2543, %v2536, 920167782
    %v2550 = vsel %vm2542, %v2533, %v2549
    %v2551 = vsel %vm2541, %v2548, %v2550
    %v2552 = vsel %vm2540, %v2530, %v2533
    %v2553 = vsel %vm2543, %v2539, 1326507024
    %v2554 = vsel %vm2542, %v2536, %v2553
    %v2555 = vsel %vm2541, %v2552, %v2554
    %v2556 = vshll.u32 %v2516, 8
    %v2557 = vmul.u32.u64.compose %v2556, %v2555
    %v2558 = vextract.low.u32 %v2557
    %v2559 = vextract.high.u32 %v2557
    %v2560 = vmul.u32.u64.compose %v2556, %v2551
    %v2561 = vextract.low.u32 %v2560
    %v2562 = vextract.high.u32 %v2560
    %v2563 = vmul.u32 %v2556, %v2547
    %v2564 = vadd.s32 %v2559, %v2561
    %vm2565 = vc.u32 %v2559, %v2561
    %v2566 = vadd.s32 %v2562, 1
    %v2567 = vsel %vm2565, %v2566, %v2562
    %v2568 = vadd.s32 %v2563, %v2567
    %v2569 = vadd.s32 %v2568, 536870912
    %v2570 = vshrl.u32 %v2569, 30
    %v2571 = vshll.u32 %v2570, 30
    %v2572 = vsub.s32 %v2568, %v2571
    %vm2573 = vcmp.lt.s32.totalorder %v2572, 0
    %v2574 = vsub.s32 0, %v2572
    %v2575 = vsel %vm2573, %v2574, %v2572
    %v2576 = vclz %v2575
    %v2577 = vsub.s32 %v2576, 2
    %vm2578 = vcmp.gt.s32.totalorder 0, %v2577
    %v2579 = vsel %vm2578, 0, %v2577
    %v2580 = vsub.s32 32, %v2579
    %v2581 = vshll.u32 %v2572, %v2579
    %v2582 = vshrl.u32 %v2564, %v2580
    %v2583 = vor.u32 %v2581, %v2582
    %v2584 = vsub.s32 4294967266, %v2579
    %v2585 = vadd.s32 %v2584, 127
    %v2586 = vshll.u32 %v2585, 23
    %v2587 = vor.u32 4788187, %v2586
    %v2588 = vand.u32 2147483647, %v2587
    %v2590 = vcvt.s32.f32 %v2583
    %v2591 = vmul.f32 %v2590, %v2588
    %v2592 = vxor.u32 %v2591, 2147483648
    %v2593 = vsel %vm2510, %v2592, %v2591
    %v2594 = vsub.s32 4, %v2570
    %v2595 = vsel %vm2510, %v2594, %v2570
    %v2596 = vsel %vm2509, %v680, %v2593
    %v2597 = vsel %vm2509, 0, %v2595
    %v2598 = vcosq.f32.pop %v2596
    %v2599 = vsinq.f32.pop %v2596
    %vm2600 = vweird.f32 %v680
    %v2601 = vand.u32 %v2597, 3
    %vm2602 = vcmp.lt.s32.totalorder %v2601, 2
    %vm2603 = vcmp.eq.s32.totalorder %v2601, 0
    %v2604 = vxor.u32 %v2599, 2147483648
    %v2605 = vsel %vm2603, %v2598, %v2604
    %vm2606 = vcmp.eq.s32.totalorder %v2601, 2
    %v2607 = vxor.u32 %v2598, 2147483648
    %v2608 = vsel %vm2606, %v2607, %v2599
    %v2609 = vsel %vm2602, %v2605, %v2608
    %v2610 = vsel %vm2600, nan, %v2609
    %v2611 = vand.u32 2147483647, %v681
    %vm2612 = vcmp.le.f32.partialorder %v2611, 0.7853982
    %vm2613 = vcmp.lt.s32.totalorder %v681, 0
    %v2614 = vand.u32 %v681, 2139095040
    %v2615 = vshrl.u32 %v2614, 23
    %v2616 = vsub.s32 %v2615, 127
    %v2617 = vand.u32 2147483647, %v681
    %v2618 = vand.u32 %v2617, 8388607
    %v2619 = vor.u32 %v2618, 8388608
    %v2620 = vsub.s32 0, %v2619
    %v2621 = vadd.s32 %v2616, 1
    %vm2622 = vcmp.gt.s32.totalorder %v2621, 0
    %v2623 = vsel %vm2622, %v2621, 0
    %v2624 = vshrl.u32 %v2623, 5
    %v2625 = vand.u32 %v2623, 31
    %v2626 = vsub.s32 32, %v2625
    %v2627 = vshrl.u32 683565275, %v2626
    %v2628 = vshll.u32 683565275, %v2625
    %v2629 = vshrl.u32 2475754826, %v2626
    %v2630 = vor.u32 %v2628, %v2629
    %v2631 = vshll.u32 2475754826, %v2625
    %v2632 = vshrl.u32 2131351028, %v2626
    %v2633 = vor.u32 %v2631, %v2632
    %v2634 = vshll.u32 2131351028, %v2625
    %v2635 = vshrl.u32 2102212464, %v2626
    %v2636 = vor.u32 %v2634, %v2635
    %v2637 = vshll.u32 2102212464, %v2625
    %v2638 = vshrl.u32 920167782, %v2626
    %v2639 = vor.u32 %v2637, %v2638
    %v2640 = vshll.u32 920167782, %v2625
    %v2641 = vshrl.u32 1326507024, %v2626
    %v2642 = vor.u32 %v2640, %v2641
    %vm2643 = vcmp.lt.s32.totalorder %v2624, 1
    %vm2644 = vcmp.lt.s32.totalorder %v2624, 2
    %vm2645 = vcmp.lt.s32.totalorder %v2624, 3
    %vm2646 = vcmp.lt.s32.totalorder %v2624, 4
    %v2647 = vsel %vm2643, %v2627, %v2630
    %v2648 = vsel %vm2646, %v2636, 2102212464
    %v2649 = vsel %vm2645, %v2633, %v2648
    %v2650 = vsel %vm2644, %v2647, %v2649
    %v2651 = vsel %vm2643, %v2630, %v2633
    %v2652 = vsel %vm2646, %v2639, 920167782
    %v2653 = vsel %vm2645, %v2636, %v2652
    %v2654 = vsel %vm2644, %v2651, %v2653
    %v2655 = vsel %vm2643, %v2633, %v2636
    %v2656 = vsel %vm2646, %v2642, 1326507024
    %v2657 = vsel %vm2645, %v2639, %v2656
    %v2658 = vsel %vm2644, %v2655, %v2657
    %v2659 = vshll.u32 %v2619, 8
    %v2660 = vmul.u32.u64.compose %v2659, %v2658
    %v2661 = vextract.low.u32 %v2660
    %v2662 = vextract.high.u32 %v2660
    %v2663 = vmul.u32.u64.compose %v2659, %v2654
    %v2664 = vextract.low.u32 %v2663
    %v2665 = vextract.high.u32 %v2663
    %v2666 = vmul.u32 %v2659, %v2650
    %v2667 = vadd.s32 %v2662, %v2664
    %vm2668 = vc.u32 %v2662, %v2664
    %v2669 = vadd.s32 %v2665, 1
    %v2670 = vsel %vm2668, %v2669, %v2665
    %v2671 = vadd.s32 %v2666, %v2670
    %v2672 = vadd.s32 %v2671, 536870912
    %v2673 = vshrl.u32 %v2672, 30
    %v2674 = vshll.u32 %v2673, 30
    %v2675 = vsub.s32 %v2671, %v2674
    %vm2676 = vcmp.lt.s32.totalorder %v2675, 0
    %v2677 = vsub.s32 0, %v2675
    %v2678 = vsel %vm2676, %v2677, %v2675
    %v2679 = vclz %v2678
    %v2680 = vsub.s32 %v2679, 2
    %vm2681 = vcmp.gt.s32.totalorder 0, %v2680
    %v2682 = vsel %vm2681, 0, %v2680
    %v2683 = vsub.s32 32, %v2682
    %v2684 = vshll.u32 %v2675, %v2682
    %v2685 = vshrl.u32 %v2667, %v2683
    %v2686 = vor.u32 %v2684, %v2685
    %v2687 = vsub.s32 4294967266, %v2682
    %v2688 = vadd.s32 %v2687, 127
    %v2689 = vshll.u32 %v2688, 23
    %v2690 = vor.u32 4788187, %v2689
    %v2691 = vand.u32 2147483647, %v2690
    %v2693 = vcvt.s32.f32 %v2686
    %v2694 = vmul.f32 %v2693, %v2691
    %v2695 = vxor.u32 %v2694, 2147483648
    %v2696 = vsel %vm2613, %v2695, %v2694
    %v2697 = vsub.s32 4, %v2673
    %v2698 = vsel %vm2613, %v2697, %v2673
    %v2699 = vsel %vm2612, %v681, %v2696
    %v2700 = vsel %vm2612, 0, %v2698
    %v2701 = vcosq.f32.pop %v2699
    %v2702 = vsinq.f32.pop %v2699
    %vm2703 = vweird.f32 %v681
    %v2704 = vand.u32 %v2700, 3
    %vm2705 = vcmp.lt.s32.totalorder %v2704, 2
    %vm2706 = vcmp.eq.s32.totalorder %v2704, 0
    %v2707 = vxor.u32 %v2702, 2147483648
    %v2708 = vsel %vm2706, %v2701, %v2707
    %vm2709 = vcmp.eq.s32.totalorder %v2704, 2
    %v2710 = vxor.u32 %v2701, 2147483648
    %v2711 = vsel %vm2709, %v2710, %v2702
    %v2712 = vsel %vm2705, %v2708, %v2711
    %v2713 = vsel %vm2703, nan, %v2712
    %v2714 = vmul.f32 %v1168, %v794
    %v2715 = vmul.f32 %v1271, %v795
    %v2716 = vmul.f32 %v1374, %v796
    %v2717 = vmul.f32 %v1477, %v797
    %v2718 = vmul.f32 %v1580, %v798
    %v2719 = vmul.f32 %v1683, %v799
    %v2720 = vmul.f32 %v1786, %v800
    %v2721 = vmul.f32 %v1889, %v801
    %v2722 = vmul.f32 %v1992, %v802
    %v2723 = vmul.f32 %v2095, %v803
    %v2724 = vmul.f32 %v2198, %v804
    %v2725 = vmul.f32 %v2301, %v805
    %v2726 = vmul.f32 %v2404, %v806
    %v2727 = vmul.f32 %v2507, %v807
    %v2728 = vmul.f32 %v2610, %v808
    %v2729 = vmul.f32 %v2713, %v809
    %v2730 = vand.u32 2147483647, %v666
    %vm2731 = vcmp.le.f32.partialorder %v2730, 0.7853982
    %vm2732 = vcmp.lt.s32.totalorder %v666, 0
    %v2733 = vand.u32 %v666, 2139095040
    %v2734 = vshrl.u32 %v2733, 23
    %v2735 = vsub.s32 %v2734, 127
    %v2736 = vand.u32 2147483647, %v666
    %v2737 = vand.u32 %v2736, 8388607
    %v2738 = vor.u32 %v2737, 8388608
    %v2739 = vsub.s32 0, %v2738
    %v2740 = vadd.s32 %v2735, 1
    %vm2741 = vcmp.gt.s32.totalorder %v2740, 0
    %v2742 = vsel %vm2741, %v2740, 0
    %v2743 = vshrl.u32 %v2742, 5
    %v2744 = vand.u32 %v2742, 31
    %v2745 = vsub.s32 32, %v2744
    %v2746 = vshrl.u32 683565275, %v2745
    %v2747 = vshll.u32 683565275, %v2744
    %v2748 = vshrl.u32 2475754826, %v2745
    %v2749 = vor.u32 %v2747, %v2748
    %v2750 = vshll.u32 2475754826, %v2744
    %v2751 = vshrl.u32 2131351028, %v2745
    %v2752 = vor.u32 %v2750, %v2751
    %v2753 = vshll.u32 2131351028, %v2744
    %v2754 = vshrl.u32 2102212464, %v2745
    %v2755 = vor.u32 %v2753, %v2754
    %v2756 = vshll.u32 2102212464, %v2744
    %v2757 = vshrl.u32 920167782, %v2745
    %v2758 = vor.u32 %v2756, %v2757
    %v2759 = vshll.u32 920167782, %v2744
    %v2760 = vshrl.u32 1326507024, %v2745
    %v2761 = vor.u32 %v2759, %v2760
    %vm2762 = vcmp.lt.s32.totalorder %v2743, 1
    %vm2763 = vcmp.lt.s32.totalorder %v2743, 2
    %vm2764 = vcmp.lt.s32.totalorder %v2743, 3
    %vm2765 = vcmp.lt.s32.totalorder %v2743, 4
    %v2766 = vsel %vm2762, %v2746, %v2749
    %v2767 = vsel %vm2765, %v2755, 2102212464
    %v2768 = vsel %vm2764, %v2752, %v2767
    %v2769 = vsel %vm2763, %v2766, %v2768
    %v2770 = vsel %vm2762, %v2749, %v2752
    %v2771 = vsel %vm2765, %v2758, 920167782
    %v2772 = vsel %vm2764, %v2755, %v2771
    %v2773 = vsel %vm2763, %v2770, %v2772
    %v2774 = vsel %vm2762, %v2752, %v2755
    %v2775 = vsel %vm2765, %v2761, 1326507024
    %v2776 = vsel %vm2764, %v2758, %v2775
    %v2777 = vsel %vm2763, %v2774, %v2776
    %v2778 = vshll.u32 %v2738, 8
    %v2779 = vmul.u32.u64.compose %v2778, %v2777
    %v2780 = vextract.low.u32 %v2779
    %v2781 = vextract.high.u32 %v2779
    %v2782 = vmul.u32.u64.compose %v2778, %v2773
    %v2783 = vextract.low.u32 %v2782
    %v2784 = vextract.high.u32 %v2782
    %v2785 = vmul.u32 %v2778, %v2769
    %v2786 = vadd.s32 %v2781, %v2783
    %vm2787 = vc.u32 %v2781, %v2783
    %v2788 = vadd.s32 %v2784, 1
    %v2789 = vsel %vm2787, %v2788, %v2784
    %v2790 = vadd.s32 %v2785, %v2789
    %v2791 = vadd.s32 %v2790, 536870912
    %v2792 = vshrl.u32 %v2791, 30
    %v2793 = vshll.u32 %v2792, 30
    %v2794 = vsub.s32 %v2790, %v2793
    %vm2795 = vcmp.lt.s32.totalorder %v2794, 0
    %v2796 = vsub.s32 0, %v2794
    %v2797 = vsel %vm2795, %v2796, %v2794
    %v2798 = vclz %v2797
    %v2799 = vsub.s32 %v2798, 2
    %vm2800 = vcmp.gt.s32.totalorder 0, %v2799
    %v2801 = vsel %vm2800, 0, %v2799
    %v2802 = vsub.s32 32, %v2801
    %v2803 = vshll.u32 %v2794, %v2801
    %v2804 = vshrl.u32 %v2786, %v2802
    %v2805 = vor.u32 %v2803, %v2804
    %v2806 = vsub.s32 4294967266, %v2801
    %v2807 = vadd.s32 %v2806, 127
    %v2808 = vshll.u32 %v2807, 23
    %v2809 = vor.u32 4788187, %v2808
    %v2810 = vand.u32 2147483647, %v2809
    %v2812 = vcvt.s32.f32 %v2805
    %v2813 = vmul.f32 %v2812, %v2810
    %v2814 = vxor.u32 %v2813, 2147483648
    %v2815 = vsel %vm2732, %v2814, %v2813
    %v2816 = vsub.s32 4, %v2792
    %v2817 = vsel %vm2732, %v2816, %v2792
    %v2818 = vsel %vm2731, %v666, %v2815
    %v2819 = vsel %vm2731, 0, %v2817
    %v2820 = vcosq.f32.pop %v2818
    %v2821 = vsinq.f32.pop %v2818
    %vm2822 = vweird.f32 %v666
    %v2823 = vadd.s32 %v2819, 3
    %v2824 = vand.u32 %v2823, 3
    %vm2825 = vcmp.lt.s32.totalorder %v2824, 2
    %vm2826 = vcmp.eq.s32.totalorder %v2824, 0
    %v2827 = vxor.u32 %v2821, 2147483648
    %v2828 = vsel %vm2826, %v2820, %v2827
    %vm2829 = vcmp.eq.s32.totalorder %v2824, 2
    %v2830 = vxor.u32 %v2820, 2147483648
    %v2831 = vsel %vm2829, %v2830, %v2821
    %v2832 = vsel %vm2825, %v2828, %v2831
    %v2833 = vsel %vm2822, nan, %v2832
    %v2834 = vand.u32 2147483647, %v667
    %vm2835 = vcmp.le.f32.partialorder %v2834, 0.7853982
    %vm2836 = vcmp.lt.s32.totalorder %v667, 0
    %v2837 = vand.u32 %v667, 2139095040
    %v2838 = vshrl.u32 %v2837, 23
    %v2839 = vsub.s32 %v2838, 127
    %v2840 = vand.u32 2147483647, %v667
    %v2841 = vand.u32 %v2840, 8388607
    %v2842 = vor.u32 %v2841, 8388608
    %v2843 = vsub.s32 0, %v2842
    %v2844 = vadd.s32 %v2839, 1
    %vm2845 = vcmp.gt.s32.totalorder %v2844, 0
    %v2846 = vsel %vm2845, %v2844, 0
    %v2847 = vshrl.u32 %v2846, 5
    %v2848 = vand.u32 %v2846, 31
    %v2849 = vsub.s32 32, %v2848
    %v2850 = vshrl.u32 683565275, %v2849
    %v2851 = vshll.u32 683565275, %v2848
    %v2852 = vshrl.u32 2475754826, %v2849
    %v2853 = vor.u32 %v2851, %v2852
    %v2854 = vshll.u32 2475754826, %v2848
    %v2855 = vshrl.u32 2131351028, %v2849
    %v2856 = vor.u32 %v2854, %v2855
    %v2857 = vshll.u32 2131351028, %v2848
    %v2858 = vshrl.u32 2102212464, %v2849
    %v2859 = vor.u32 %v2857, %v2858
    %v2860 = vshll.u32 2102212464, %v2848
    %v2861 = vshrl.u32 920167782, %v2849
    %v2862 = vor.u32 %v2860, %v2861
    %v2863 = vshll.u32 920167782, %v2848
    %v2864 = vshrl.u32 1326507024, %v2849
    %v2865 = vor.u32 %v2863, %v2864
    %vm2866 = vcmp.lt.s32.totalorder %v2847, 1
    %vm2867 = vcmp.lt.s32.totalorder %v2847, 2
    %vm2868 = vcmp.lt.s32.totalorder %v2847, 3
    %vm2869 = vcmp.lt.s32.totalorder %v2847, 4
    %v2870 = vsel %vm2866, %v2850, %v2853
    %v2871 = vsel %vm2869, %v2859, 2102212464
    %v2872 = vsel %vm2868, %v2856, %v2871
    %v2873 = vsel %vm2867, %v2870, %v2872
    %v2874 = vsel %vm2866, %v2853, %v2856
    %v2875 = vsel %vm2869, %v2862, 920167782
    %v2876 = vsel %vm2868, %v2859, %v2875
    %v2877 = vsel %vm2867, %v2874, %v2876
    %v2878 = vsel %vm2866, %v2856, %v2859
    %v2879 = vsel %vm2869, %v2865, 1326507024
    %v2880 = vsel %vm2868, %v2862, %v2879
    %v2881 = vsel %vm2867, %v2878, %v2880
    %v2882 = vshll.u32 %v2842, 8
    %v2883 = vmul.u32.u64.compose %v2882, %v2881
    %v2884 = vextract.low.u32 %v2883
    %v2885 = vextract.high.u32 %v2883
    %v2886 = vmul.u32.u64.compose %v2882, %v2877
    %v2887 = vextract.low.u32 %v2886
    %v2888 = vextract.high.u32 %v2886
    %v2889 = vmul.u32 %v2882, %v2873
    %v2890 = vadd.s32 %v2885, %v2887
    %vm2891 = vc.u32 %v2885, %v2887
    %v2892 = vadd.s32 %v2888, 1
    %v2893 = vsel %vm2891, %v2892, %v2888
    %v2894 = vadd.s32 %v2889, %v2893
    %v2895 = vadd.s32 %v2894, 536870912
    %v2896 = vshrl.u32 %v2895, 30
    %v2897 = vshll.u32 %v2896, 30
    %v2898 = vsub.s32 %v2894, %v2897
    %vm2899 = vcmp.lt.s32.totalorder %v2898, 0
    %v2900 = vsub.s32 0, %v2898
    %v2901 = vsel %vm2899, %v2900, %v2898
    %v2902 = vclz %v2901
    %v2903 = vsub.s32 %v2902, 2
    %vm2904 = vcmp.gt.s32.totalorder 0, %v2903
    %v2905 = vsel %vm2904, 0, %v2903
    %v2906 = vsub.s32 32, %v2905
    %v2907 = vshll.u32 %v2898, %v2905
    %v2908 = vshrl.u32 %v2890, %v2906
    %v2909 = vor.u32 %v2907, %v2908
    %v2910 = vsub.s32 4294967266, %v2905
    %v2911 = vadd.s32 %v2910, 127
    %v2912 = vshll.u32 %v2911, 23
    %v2913 = vor.u32 4788187, %v2912
    %v2914 = vand.u32 2147483647, %v2913
    %v2916 = vcvt.s32.f32 %v2909
    %v2917 = vmul.f32 %v2916, %v2914
    %v2918 = vxor.u32 %v2917, 2147483648
    %v2919 = vsel %vm2836, %v2918, %v2917
    %v2920 = vsub.s32 4, %v2896
    %v2921 = vsel %vm2836, %v2920, %v2896
    %v2922 = vsel %vm2835, %v667, %v2919
    %v2923 = vsel %vm2835, 0, %v2921
    %v2924 = vcosq.f32.pop %v2922
    %v2925 = vsinq.f32.pop %v2922
    %vm2926 = vweird.f32 %v667
    %v2927 = vadd.s32 %v2923, 3
    %v2928 = vand.u32 %v2927, 3
    %vm2929 = vcmp.lt.s32.totalorder %v2928, 2
    %vm2930 = vcmp.eq.s32.totalorder %v2928, 0
    %v2931 = vxor.u32 %v2925, 2147483648
    %v2932 = vsel %vm2930, %v2924, %v2931
    %vm2933 = vcmp.eq.s32.totalorder %v2928, 2
    %v2934 = vxor.u32 %v2924, 2147483648
    %v2935 = vsel %vm2933, %v2934, %v2925
    %v2936 = vsel %vm2929, %v2932, %v2935
    %v2937 = vsel %vm2926, nan, %v2936
    %v2938 = vand.u32 2147483647, %v668
    %vm2939 = vcmp.le.f32.partialorder %v2938, 0.7853982
    %vm2940 = vcmp.lt.s32.totalorder %v668, 0
    %v2941 = vand.u32 %v668, 2139095040
    %v2942 = vshrl.u32 %v2941, 23
    %v2943 = vsub.s32 %v2942, 127
    %v2944 = vand.u32 2147483647, %v668
    %v2945 = vand.u32 %v2944, 8388607
    %v2946 = vor.u32 %v2945, 8388608
    %v2947 = vsub.s32 0, %v2946
    %v2948 = vadd.s32 %v2943, 1
    %vm2949 = vcmp.gt.s32.totalorder %v2948, 0
    %v2950 = vsel %vm2949, %v2948, 0
    %v2951 = vshrl.u32 %v2950, 5
    %v2952 = vand.u32 %v2950, 31
    %v2953 = vsub.s32 32, %v2952
    %v2954 = vshrl.u32 683565275, %v2953
    %v2955 = vshll.u32 683565275, %v2952
    %v2956 = vshrl.u32 2475754826, %v2953
    %v2957 = vor.u32 %v2955, %v2956
    %v2958 = vshll.u32 2475754826, %v2952
    %v2959 = vshrl.u32 2131351028, %v2953
    %v2960 = vor.u32 %v2958, %v2959
    %v2961 = vshll.u32 2131351028, %v2952
    %v2962 = vshrl.u32 2102212464, %v2953
    %v2963 = vor.u32 %v2961, %v2962
    %v2964 = vshll.u32 2102212464, %v2952
    %v2965 = vshrl.u32 920167782, %v2953
    %v2966 = vor.u32 %v2964, %v2965
    %v2967 = vshll.u32 920167782, %v2952
    %v2968 = vshrl.u32 1326507024, %v2953
    %v2969 = vor.u32 %v2967, %v2968
    %vm2970 = vcmp.lt.s32.totalorder %v2951, 1
    %vm2971 = vcmp.lt.s32.totalorder %v2951, 2
    %vm2972 = vcmp.lt.s32.totalorder %v2951, 3
    %vm2973 = vcmp.lt.s32.totalorder %v2951, 4
    %v2974 = vsel %vm2970, %v2954, %v2957
    %v2975 = vsel %vm2973, %v2963, 2102212464
    %v2976 = vsel %vm2972, %v2960, %v2975
    %v2977 = vsel %vm2971, %v2974, %v2976
    %v2978 = vsel %vm2970, %v2957, %v2960
    %v2979 = vsel %vm2973, %v2966, 920167782
    %v2980 = vsel %vm2972, %v2963, %v2979
    %v2981 = vsel %vm2971, %v2978, %v2980
    %v2982 = vsel %vm2970, %v2960, %v2963
    %v2983 = vsel %vm2973, %v2969, 1326507024
    %v2984 = vsel %vm2972, %v2966, %v2983
    %v2985 = vsel %vm2971, %v2982, %v2984
    %v2986 = vshll.u32 %v2946, 8
    %v2987 = vmul.u32.u64.compose %v2986, %v2985
    %v2988 = vextract.low.u32 %v2987
    %v2989 = vextract.high.u32 %v2987
    %v2990 = vmul.u32.u64.compose %v2986, %v2981
    %v2991 = vextract.low.u32 %v2990
    %v2992 = vextract.high.u32 %v2990
    %v2993 = vmul.u32 %v2986, %v2977
    %v2994 = vadd.s32 %v2989, %v2991
    %vm2995 = vc.u32 %v2989, %v2991
    %v2996 = vadd.s32 %v2992, 1
    %v2997 = vsel %vm2995, %v2996, %v2992
    %v2998 = vadd.s32 %v2993, %v2997
    %v2999 = vadd.s32 %v2998, 536870912
    %v3000 = vshrl.u32 %v2999, 30
    %v3001 = vshll.u32 %v3000, 30
    %v3002 = vsub.s32 %v2998, %v3001
    %vm3003 = vcmp.lt.s32.totalorder %v3002, 0
    %v3004 = vsub.s32 0, %v3002
    %v3005 = vsel %vm3003, %v3004, %v3002
    %v3006 = vclz %v3005
    %v3007 = vsub.s32 %v3006, 2
    %vm3008 = vcmp.gt.s32.totalorder 0, %v3007
    %v3009 = vsel %vm3008, 0, %v3007
    %v3010 = vsub.s32 32, %v3009
    %v3011 = vshll.u32 %v3002, %v3009
    %v3012 = vshrl.u32 %v2994, %v3010
    %v3013 = vor.u32 %v3011, %v3012
    %v3014 = vsub.s32 4294967266, %v3009
    %v3015 = vadd.s32 %v3014, 127
    %v3016 = vshll.u32 %v3015, 23
    %v3017 = vor.u32 4788187, %v3016
    %v3018 = vand.u32 2147483647, %v3017
    %v3020 = vcvt.s32.f32 %v3013
    %v3021 = vmul.f32 %v3020, %v3018
    %v3022 = vxor.u32 %v3021, 2147483648
    %v3023 = vsel %vm2940, %v3022, %v3021
    %v3024 = vsub.s32 4, %v3000
    %v3025 = vsel %vm2940, %v3024, %v3000
    %v3026 = vsel %vm2939, %v668, %v3023
    %v3027 = vsel %vm2939, 0, %v3025
    %v3028 = vcosq.f32.pop %v3026
    %v3029 = vsinq.f32.pop %v3026
    %vm3030 = vweird.f32 %v668
    %v3031 = vadd.s32 %v3027, 3
    %v3032 = vand.u32 %v3031, 3
    %vm3033 = vcmp.lt.s32.totalorder %v3032, 2
    %vm3034 = vcmp.eq.s32.totalorder %v3032, 0
    %v3035 = vxor.u32 %v3029, 2147483648
    %v3036 = vsel %vm3034, %v3028, %v3035
    %vm3037 = vcmp.eq.s32.totalorder %v3032, 2
    %v3038 = vxor.u32 %v3028, 2147483648
    %v3039 = vsel %vm3037, %v3038, %v3029
    %v3040 = vsel %vm3033, %v3036, %v3039
    %v3041 = vsel %vm3030, nan, %v3040
    %v3042 = vand.u32 2147483647, %v669
    %vm3043 = vcmp.le.f32.partialorder %v3042, 0.7853982
    %vm3044 = vcmp.lt.s32.totalorder %v669, 0
    %v3045 = vand.u32 %v669, 2139095040
    %v3046 = vshrl.u32 %v3045, 23
    %v3047 = vsub.s32 %v3046, 127
    %v3048 = vand.u32 2147483647, %v669
    %v3049 = vand.u32 %v3048, 8388607
    %v3050 = vor.u32 %v3049, 8388608
    %v3051 = vsub.s32 0, %v3050
    %v3052 = vadd.s32 %v3047, 1
    %vm3053 = vcmp.gt.s32.totalorder %v3052, 0
    %v3054 = vsel %vm3053, %v3052, 0
    %v3055 = vshrl.u32 %v3054, 5
    %v3056 = vand.u32 %v3054, 31
    %v3057 = vsub.s32 32, %v3056
    %v3058 = vshrl.u32 683565275, %v3057
    %v3059 = vshll.u32 683565275, %v3056
    %v3060 = vshrl.u32 2475754826, %v3057
    %v3061 = vor.u32 %v3059, %v3060
    %v3062 = vshll.u32 2475754826, %v3056
    %v3063 = vshrl.u32 2131351028, %v3057
    %v3064 = vor.u32 %v3062, %v3063
    %v3065 = vshll.u32 2131351028, %v3056
    %v3066 = vshrl.u32 2102212464, %v3057
    %v3067 = vor.u32 %v3065, %v3066
    %v3068 = vshll.u32 2102212464, %v3056
    %v3069 = vshrl.u32 920167782, %v3057
    %v3070 = vor.u32 %v3068, %v3069
    %v3071 = vshll.u32 920167782, %v3056
    %v3072 = vshrl.u32 1326507024, %v3057
    %v3073 = vor.u32 %v3071, %v3072
    %vm3074 = vcmp.lt.s32.totalorder %v3055, 1
    %vm3075 = vcmp.lt.s32.totalorder %v3055, 2
    %vm3076 = vcmp.lt.s32.totalorder %v3055, 3
    %vm3077 = vcmp.lt.s32.totalorder %v3055, 4
    %v3078 = vsel %vm3074, %v3058, %v3061
    %v3079 = vsel %vm3077, %v3067, 2102212464
    %v3080 = vsel %vm3076, %v3064, %v3079
    %v3081 = vsel %vm3075, %v3078, %v3080
    %v3082 = vsel %vm3074, %v3061, %v3064
    %v3083 = vsel %vm3077, %v3070, 920167782
    %v3084 = vsel %vm3076, %v3067, %v3083
    %v3085 = vsel %vm3075, %v3082, %v3084
    %v3086 = vsel %vm3074, %v3064, %v3067
    %v3087 = vsel %vm3077, %v3073, 1326507024
    %v3088 = vsel %vm3076, %v3070, %v3087
    %v3089 = vsel %vm3075, %v3086, %v3088
    %v3090 = vshll.u32 %v3050, 8
    %v3091 = vmul.u32.u64.compose %v3090, %v3089
    %v3092 = vextract.low.u32 %v3091
    %v3093 = vextract.high.u32 %v3091
    %v3094 = vmul.u32.u64.compose %v3090, %v3085
    %v3095 = vextract.low.u32 %v3094
    %v3096 = vextract.high.u32 %v3094
    %v3097 = vmul.u32 %v3090, %v3081
    %v3098 = vadd.s32 %v3093, %v3095
    %vm3099 = vc.u32 %v3093, %v3095
    %v3100 = vadd.s32 %v3096, 1
    %v3101 = vsel %vm3099, %v3100, %v3096
    %v3102 = vadd.s32 %v3097, %v3101
    %v3103 = vadd.s32 %v3102, 536870912
    %v3104 = vshrl.u32 %v3103, 30
    %v3105 = vshll.u32 %v3104, 30
    %v3106 = vsub.s32 %v3102, %v3105
    %vm3107 = vcmp.lt.s32.totalorder %v3106, 0
    %v3108 = vsub.s32 0, %v3106
    %v3109 = vsel %vm3107, %v3108, %v3106
    %v3110 = vclz %v3109
    %v3111 = vsub.s32 %v3110, 2
    %vm3112 = vcmp.gt.s32.totalorder 0, %v3111
    %v3113 = vsel %vm3112, 0, %v3111
    %v3114 = vsub.s32 32, %v3113
    %v3115 = vshll.u32 %v3106, %v3113
    %v3116 = vshrl.u32 %v3098, %v3114
    %v3117 = vor.u32 %v3115, %v3116
    %v3118 = vsub.s32 4294967266, %v3113
    %v3119 = vadd.s32 %v3118, 127
    %v3120 = vshll.u32 %v3119, 23
    %v3121 = vor.u32 4788187, %v3120
    %v3122 = vand.u32 2147483647, %v3121
    %v3124 = vcvt.s32.f32 %v3117
    %v3125 = vmul.f32 %v3124, %v3122
    %v3126 = vxor.u32 %v3125, 2147483648
    %v3127 = vsel %vm3044, %v3126, %v3125
    %v3128 = vsub.s32 4, %v3104
    %v3129 = vsel %vm3044, %v3128, %v3104
    %v3130 = vsel %vm3043, %v669, %v3127
    %v3131 = vsel %vm3043, 0, %v3129
    %v3132 = vcosq.f32.pop %v3130
    %v3133 = vsinq.f32.pop %v3130
    %vm3134 = vweird.f32 %v669
    %v3135 = vadd.s32 %v3131, 3
    %v3136 = vand.u32 %v3135, 3
    %vm3137 = vcmp.lt.s32.totalorder %v3136, 2
    %vm3138 = vcmp.eq.s32.totalorder %v3136, 0
    %v3139 = vxor.u32 %v3133, 2147483648
    %v3140 = vsel %vm3138, %v3132, %v3139
    %vm3141 = vcmp.eq.s32.totalorder %v3136, 2
    %v3142 = vxor.u32 %v3132, 2147483648
    %v3143 = vsel %vm3141, %v3142, %v3133
    %v3144 = vsel %vm3137, %v3140, %v3143
    %v3145 = vsel %vm3134, nan, %v3144
    %v3146 = vand.u32 2147483647, %v670
    %vm3147 = vcmp.le.f32.partialorder %v3146, 0.7853982
    %vm3148 = vcmp.lt.s32.totalorder %v670, 0
    %v3149 = vand.u32 %v670, 2139095040
    %v3150 = vshrl.u32 %v3149, 23
    %v3151 = vsub.s32 %v3150, 127
    %v3152 = vand.u32 2147483647, %v670
    %v3153 = vand.u32 %v3152, 8388607
    %v3154 = vor.u32 %v3153, 8388608
    %v3155 = vsub.s32 0, %v3154
    %v3156 = vadd.s32 %v3151, 1
    %vm3157 = vcmp.gt.s32.totalorder %v3156, 0
    %v3158 = vsel %vm3157, %v3156, 0
    %v3159 = vshrl.u32 %v3158, 5
    %v3160 = vand.u32 %v3158, 31
    %v3161 = vsub.s32 32, %v3160
    %v3162 = vshrl.u32 683565275, %v3161
    %v3163 = vshll.u32 683565275, %v3160
    %v3164 = vshrl.u32 2475754826, %v3161
    %v3165 = vor.u32 %v3163, %v3164
    %v3166 = vshll.u32 2475754826, %v3160
    %v3167 = vshrl.u32 2131351028, %v3161
    %v3168 = vor.u32 %v3166, %v3167
    %v3169 = vshll.u32 2131351028, %v3160
    %v3170 = vshrl.u32 2102212464, %v3161
    %v3171 = vor.u32 %v3169, %v3170
    %v3172 = vshll.u32 2102212464, %v3160
    %v3173 = vshrl.u32 920167782, %v3161
    %v3174 = vor.u32 %v3172, %v3173
    %v3175 = vshll.u32 920167782, %v3160
    %v3176 = vshrl.u32 1326507024, %v3161
    %v3177 = vor.u32 %v3175, %v3176
    %vm3178 = vcmp.lt.s32.totalorder %v3159, 1
    %vm3179 = vcmp.lt.s32.totalorder %v3159, 2
    %vm3180 = vcmp.lt.s32.totalorder %v3159, 3
    %vm3181 = vcmp.lt.s32.totalorder %v3159, 4
    %v3182 = vsel %vm3178, %v3162, %v3165
    %v3183 = vsel %vm3181, %v3171, 2102212464
    %v3184 = vsel %vm3180, %v3168, %v3183
    %v3185 = vsel %vm3179, %v3182, %v3184
    %v3186 = vsel %vm3178, %v3165, %v3168
    %v3187 = vsel %vm3181, %v3174, 920167782
    %v3188 = vsel %vm3180, %v3171, %v3187
    %v3189 = vsel %vm3179, %v3186, %v3188
    %v3190 = vsel %vm3178, %v3168, %v3171
    %v3191 = vsel %vm3181, %v3177, 1326507024
    %v3192 = vsel %vm3180, %v3174, %v3191
    %v3193 = vsel %vm3179, %v3190, %v3192
    %v3194 = vshll.u32 %v3154, 8
    %v3195 = vmul.u32.u64.compose %v3194, %v3193
    %v3196 = vextract.low.u32 %v3195
    %v3197 = vextract.high.u32 %v3195
    %v3198 = vmul.u32.u64.compose %v3194, %v3189
    %v3199 = vextract.low.u32 %v3198
    %v3200 = vextract.high.u32 %v3198
    %v3201 = vmul.u32 %v3194, %v3185
    %v3202 = vadd.s32 %v3197, %v3199
    %vm3203 = vc.u32 %v3197, %v3199
    %v3204 = vadd.s32 %v3200, 1
    %v3205 = vsel %vm3203, %v3204, %v3200
    %v3206 = vadd.s32 %v3201, %v3205
    %v3207 = vadd.s32 %v3206, 536870912
    %v3208 = vshrl.u32 %v3207, 30
    %v3209 = vshll.u32 %v3208, 30
    %v3210 = vsub.s32 %v3206, %v3209
    %vm3211 = vcmp.lt.s32.totalorder %v3210, 0
    %v3212 = vsub.s32 0, %v3210
    %v3213 = vsel %vm3211, %v3212, %v3210
    %v3214 = vclz %v3213
    %v3215 = vsub.s32 %v3214, 2
    %vm3216 = vcmp.gt.s32.totalorder 0, %v3215
    %v3217 = vsel %vm3216, 0, %v3215
    %v3218 = vsub.s32 32, %v3217
    %v3219 = vshll.u32 %v3210, %v3217
    %v3220 = vshrl.u32 %v3202, %v3218
    %v3221 = vor.u32 %v3219, %v3220
    %v3222 = vsub.s32 4294967266, %v3217
    %v3223 = vadd.s32 %v3222, 127
    %v3224 = vshll.u32 %v3223, 23
    %v3225 = vor.u32 4788187, %v3224
    %v3226 = vand.u32 2147483647, %v3225
    %v3228 = vcvt.s32.f32 %v3221
    %v3229 = vmul.f32 %v3228, %v3226
    %v3230 = vxor.u32 %v3229, 2147483648
    %v3231 = vsel %vm3148, %v3230, %v3229
    %v3232 = vsub.s32 4, %v3208
    %v3233 = vsel %vm3148, %v3232, %v3208
    %v3234 = vsel %vm3147, %v670, %v3231
    %v3235 = vsel %vm3147, 0, %v3233
    %v3236 = vcosq.f32.pop %v3234
    %v3237 = vsinq.f32.pop %v3234
    %vm3238 = vweird.f32 %v670
    %v3239 = vadd.s32 %v3235, 3
    %v3240 = vand.u32 %v3239, 3
    %vm3241 = vcmp.lt.s32.totalorder %v3240, 2
    %vm3242 = vcmp.eq.s32.totalorder %v3240, 0
    %v3243 = vxor.u32 %v3237, 2147483648
    %v3244 = vsel %vm3242, %v3236, %v3243
    %vm3245 = vcmp.eq.s32.totalorder %v3240, 2
    %v3246 = vxor.u32 %v3236, 2147483648
    %v3247 = vsel %vm3245, %v3246, %v3237
    %v3248 = vsel %vm3241, %v3244, %v3247
    %v3249 = vsel %vm3238, nan, %v3248
    %v3250 = vand.u32 2147483647, %v671
    %vm3251 = vcmp.le.f32.partialorder %v3250, 0.7853982
    %vm3252 = vcmp.lt.s32.totalorder %v671, 0
    %v3253 = vand.u32 %v671, 2139095040
    %v3254 = vshrl.u32 %v3253, 23
    %v3255 = vsub.s32 %v3254, 127
    %v3256 = vand.u32 2147483647, %v671
    %v3257 = vand.u32 %v3256, 8388607
    %v3258 = vor.u32 %v3257, 8388608
    %v3259 = vsub.s32 0, %v3258
    %v3260 = vadd.s32 %v3255, 1
    %vm3261 = vcmp.gt.s32.totalorder %v3260, 0
    %v3262 = vsel %vm3261, %v3260, 0
    %v3263 = vshrl.u32 %v3262, 5
    %v3264 = vand.u32 %v3262, 31
    %v3265 = vsub.s32 32, %v3264
    %v3266 = vshrl.u32 683565275, %v3265
    %v3267 = vshll.u32 683565275, %v3264
    %v3268 = vshrl.u32 2475754826, %v3265
    %v3269 = vor.u32 %v3267, %v3268
    %v3270 = vshll.u32 2475754826, %v3264
    %v3271 = vshrl.u32 2131351028, %v3265
    %v3272 = vor.u32 %v3270, %v3271
    %v3273 = vshll.u32 2131351028, %v3264
    %v3274 = vshrl.u32 2102212464, %v3265
    %v3275 = vor.u32 %v3273, %v3274
    %v3276 = vshll.u32 2102212464, %v3264
    %v3277 = vshrl.u32 920167782, %v3265
    %v3278 = vor.u32 %v3276, %v3277
    %v3279 = vshll.u32 920167782, %v3264
    %v3280 = vshrl.u32 1326507024, %v3265
    %v3281 = vor.u32 %v3279, %v3280
    %vm3282 = vcmp.lt.s32.totalorder %v3263, 1
    %vm3283 = vcmp.lt.s32.totalorder %v3263, 2
    %vm3284 = vcmp.lt.s32.totalorder %v3263, 3
    %vm3285 = vcmp.lt.s32.totalorder %v3263, 4
    %v3286 = vsel %vm3282, %v3266, %v3269
    %v3287 = vsel %vm3285, %v3275, 2102212464
    %v3288 = vsel %vm3284, %v3272, %v3287
    %v3289 = vsel %vm3283, %v3286, %v3288
    %v3290 = vsel %vm3282, %v3269, %v3272
    %v3291 = vsel %vm3285, %v3278, 920167782
    %v3292 = vsel %vm3284, %v3275, %v3291
    %v3293 = vsel %vm3283, %v3290, %v3292
    %v3294 = vsel %vm3282, %v3272, %v3275
    %v3295 = vsel %vm3285, %v3281, 1326507024
    %v3296 = vsel %vm3284, %v3278, %v3295
    %v3297 = vsel %vm3283, %v3294, %v3296
    %v3298 = vshll.u32 %v3258, 8
    %v3299 = vmul.u32.u64.compose %v3298, %v3297
    %v3300 = vextract.low.u32 %v3299
    %v3301 = vextract.high.u32 %v3299
    %v3302 = vmul.u32.u64.compose %v3298, %v3293
    %v3303 = vextract.low.u32 %v3302
    %v3304 = vextract.high.u32 %v3302
    %v3305 = vmul.u32 %v3298, %v3289
    %v3306 = vadd.s32 %v3301, %v3303
    %vm3307 = vc.u32 %v3301, %v3303
    %v3308 = vadd.s32 %v3304, 1
    %v3309 = vsel %vm3307, %v3308, %v3304
    %v3310 = vadd.s32 %v3305, %v3309
    %v3311 = vadd.s32 %v3310, 536870912
    %v3312 = vshrl.u32 %v3311, 30
    %v3313 = vshll.u32 %v3312, 30
    %v3314 = vsub.s32 %v3310, %v3313
    %vm3315 = vcmp.lt.s32.totalorder %v3314, 0
    %v3316 = vsub.s32 0, %v3314
    %v3317 = vsel %vm3315, %v3316, %v3314
    %v3318 = vclz %v3317
    %v3319 = vsub.s32 %v3318, 2
    %vm3320 = vcmp.gt.s32.totalorder 0, %v3319
    %v3321 = vsel %vm3320, 0, %v3319
    %v3322 = vsub.s32 32, %v3321
    %v3323 = vshll.u32 %v3314, %v3321
    %v3324 = vshrl.u32 %v3306, %v3322
    %v3325 = vor.u32 %v3323, %v3324
    %v3326 = vsub.s32 4294967266, %v3321
    %v3327 = vadd.s32 %v3326, 127
    %v3328 = vshll.u32 %v3327, 23
    %v3329 = vor.u32 4788187, %v3328
    %v3330 = vand.u32 2147483647, %v3329
    %v3332 = vcvt.s32.f32 %v3325
    %v3333 = vmul.f32 %v3332, %v3330
    %v3334 = vxor.u32 %v3333, 2147483648
    %v3335 = vsel %vm3252, %v3334, %v3333
    %v3336 = vsub.s32 4, %v3312
    %v3337 = vsel %vm3252, %v3336, %v3312
    %v3338 = vsel %vm3251, %v671, %v3335
    %v3339 = vsel %vm3251, 0, %v3337
    %v3340 = vcosq.f32.pop %v3338
    %v3341 = vsinq.f32.pop %v3338
    %vm3342 = vweird.f32 %v671
    %v3343 = vadd.s32 %v3339, 3
    %v3344 = vand.u32 %v3343, 3
    %vm3345 = vcmp.lt.s32.totalorder %v3344, 2
    %vm3346 = vcmp.eq.s32.totalorder %v3344, 0
    %v3347 = vxor.u32 %v3341, 2147483648
    %v3348 = vsel %vm3346, %v3340, %v3347
    %vm3349 = vcmp.eq.s32.totalorder %v3344, 2
    %v3350 = vxor.u32 %v3340, 2147483648
    %v3351 = vsel %vm3349, %v3350, %v3341
    %v3352 = vsel %vm3345, %v3348, %v3351
    %v3353 = vsel %vm3342, nan, %v3352
    %v3354 = vand.u32 2147483647, %v672
    %vm3355 = vcmp.le.f32.partialorder %v3354, 0.7853982
    %vm3356 = vcmp.lt.s32.totalorder %v672, 0
    %v3357 = vand.u32 %v672, 2139095040
    %v3358 = vshrl.u32 %v3357, 23
    %v3359 = vsub.s32 %v3358, 127
    %v3360 = vand.u32 2147483647, %v672
    %v3361 = vand.u32 %v3360, 8388607
    %v3362 = vor.u32 %v3361, 8388608
    %v3363 = vsub.s32 0, %v3362
    %v3364 = vadd.s32 %v3359, 1
    %vm3365 = vcmp.gt.s32.totalorder %v3364, 0
    %v3366 = vsel %vm3365, %v3364, 0
    %v3367 = vshrl.u32 %v3366, 5
    %v3368 = vand.u32 %v3366, 31
    %v3369 = vsub.s32 32, %v3368
    %v3370 = vshrl.u32 683565275, %v3369
    %v3371 = vshll.u32 683565275, %v3368
    %v3372 = vshrl.u32 2475754826, %v3369
    %v3373 = vor.u32 %v3371, %v3372
    %v3374 = vshll.u32 2475754826, %v3368
    %v3375 = vshrl.u32 2131351028, %v3369
    %v3376 = vor.u32 %v3374, %v3375
    %v3377 = vshll.u32 2131351028, %v3368
    %v3378 = vshrl.u32 2102212464, %v3369
    %v3379 = vor.u32 %v3377, %v3378
    %v3380 = vshll.u32 2102212464, %v3368
    %v3381 = vshrl.u32 920167782, %v3369
    %v3382 = vor.u32 %v3380, %v3381
    %v3383 = vshll.u32 920167782, %v3368
    %v3384 = vshrl.u32 1326507024, %v3369
    %v3385 = vor.u32 %v3383, %v3384
    %vm3386 = vcmp.lt.s32.totalorder %v3367, 1
    %vm3387 = vcmp.lt.s32.totalorder %v3367, 2
    %vm3388 = vcmp.lt.s32.totalorder %v3367, 3
    %vm3389 = vcmp.lt.s32.totalorder %v3367, 4
    %v3390 = vsel %vm3386, %v3370, %v3373
    %v3391 = vsel %vm3389, %v3379, 2102212464
    %v3392 = vsel %vm3388, %v3376, %v3391
    %v3393 = vsel %vm3387, %v3390, %v3392
    %v3394 = vsel %vm3386, %v3373, %v3376
    %v3395 = vsel %vm3389, %v3382, 920167782
    %v3396 = vsel %vm3388, %v3379, %v3395
    %v3397 = vsel %vm3387, %v3394, %v3396
    %v3398 = vsel %vm3386, %v3376, %v3379
    %v3399 = vsel %vm3389, %v3385, 1326507024
    %v3400 = vsel %vm3388, %v3382, %v3399
    %v3401 = vsel %vm3387, %v3398, %v3400
    %v3402 = vshll.u32 %v3362, 8
    %v3403 = vmul.u32.u64.compose %v3402, %v3401
    %v3404 = vextract.low.u32 %v3403
    %v3405 = vextract.high.u32 %v3403
    %v3406 = vmul.u32.u64.compose %v3402, %v3397
    %v3407 = vextract.low.u32 %v3406
    %v3408 = vextract.high.u32 %v3406
    %v3409 = vmul.u32 %v3402, %v3393
    %v3410 = vadd.s32 %v3405, %v3407
    %vm3411 = vc.u32 %v3405, %v3407
    %v3412 = vadd.s32 %v3408, 1
    %v3413 = vsel %vm3411, %v3412, %v3408
    %v3414 = vadd.s32 %v3409, %v3413
    %v3415 = vadd.s32 %v3414, 536870912
    %v3416 = vshrl.u32 %v3415, 30
    %v3417 = vshll.u32 %v3416, 30
    %v3418 = vsub.s32 %v3414, %v3417
    %vm3419 = vcmp.lt.s32.totalorder %v3418, 0
    %v3420 = vsub.s32 0, %v3418
    %v3421 = vsel %vm3419, %v3420, %v3418
    %v3422 = vclz %v3421
    %v3423 = vsub.s32 %v3422, 2
    %vm3424 = vcmp.gt.s32.totalorder 0, %v3423
    %v3425 = vsel %vm3424, 0, %v3423
    %v3426 = vsub.s32 32, %v3425
    %v3427 = vshll.u32 %v3418, %v3425
    %v3428 = vshrl.u32 %v3410, %v3426
    %v3429 = vor.u32 %v3427, %v3428
    %v3430 = vsub.s32 4294967266, %v3425
    %v3431 = vadd.s32 %v3430, 127
    %v3432 = vshll.u32 %v3431, 23
    %v3433 = vor.u32 4788187, %v3432
    %v3434 = vand.u32 2147483647, %v3433
    %v3436 = vcvt.s32.f32 %v3429
    %v3437 = vmul.f32 %v3436, %v3434
    %v3438 = vxor.u32 %v3437, 2147483648
    %v3439 = vsel %vm3356, %v3438, %v3437
    %v3440 = vsub.s32 4, %v3416
    %v3441 = vsel %vm3356, %v3440, %v3416
    %v3442 = vsel %vm3355, %v672, %v3439
    %v3443 = vsel %vm3355, 0, %v3441
    %v3444 = vcosq.f32.pop %v3442
    %v3445 = vsinq.f32.pop %v3442
    %vm3446 = vweird.f32 %v672
    %v3447 = vadd.s32 %v3443, 3
    %v3448 = vand.u32 %v3447, 3
    %vm3449 = vcmp.lt.s32.totalorder %v3448, 2
    %vm3450 = vcmp.eq.s32.totalorder %v3448, 0
    %v3451 = vxor.u32 %v3445, 2147483648
    %v3452 = vsel %vm3450, %v3444, %v3451
    %vm3453 = vcmp.eq.s32.totalorder %v3448, 2
    %v3454 = vxor.u32 %v3444, 2147483648
    %v3455 = vsel %vm3453, %v3454, %v3445
    %v3456 = vsel %vm3449, %v3452, %v3455
    %v3457 = vsel %vm3446, nan, %v3456
    %v3458 = vand.u32 2147483647, %v673
    %vm3459 = vcmp.le.f32.partialorder %v3458, 0.7853982
    %vm3460 = vcmp.lt.s32.totalorder %v673, 0
    %v3461 = vand.u32 %v673, 2139095040
    %v3462 = vshrl.u32 %v3461, 23
    %v3463 = vsub.s32 %v3462, 127
    %v3464 = vand.u32 2147483647, %v673
    %v3465 = vand.u32 %v3464, 8388607
    %v3466 = vor.u32 %v3465, 8388608
    %v3467 = vsub.s32 0, %v3466
    %v3468 = vadd.s32 %v3463, 1
    %vm3469 = vcmp.gt.s32.totalorder %v3468, 0
    %v3470 = vsel %vm3469, %v3468, 0
    %v3471 = vshrl.u32 %v3470, 5
    %v3472 = vand.u32 %v3470, 31
    %v3473 = vsub.s32 32, %v3472
    %v3474 = vshrl.u32 683565275, %v3473
    %v3475 = vshll.u32 683565275, %v3472
    %v3476 = vshrl.u32 2475754826, %v3473
    %v3477 = vor.u32 %v3475, %v3476
    %v3478 = vshll.u32 2475754826, %v3472
    %v3479 = vshrl.u32 2131351028, %v3473
    %v3480 = vor.u32 %v3478, %v3479
    %v3481 = vshll.u32 2131351028, %v3472
    %v3482 = vshrl.u32 2102212464, %v3473
    %v3483 = vor.u32 %v3481, %v3482
    %v3484 = vshll.u32 2102212464, %v3472
    %v3485 = vshrl.u32 920167782, %v3473
    %v3486 = vor.u32 %v3484, %v3485
    %v3487 = vshll.u32 920167782, %v3472
    %v3488 = vshrl.u32 1326507024, %v3473
    %v3489 = vor.u32 %v3487, %v3488
    %vm3490 = vcmp.lt.s32.totalorder %v3471, 1
    %vm3491 = vcmp.lt.s32.totalorder %v3471, 2
    %vm3492 = vcmp.lt.s32.totalorder %v3471, 3
    %vm3493 = vcmp.lt.s32.totalorder %v3471, 4
    %v3494 = vsel %vm3490, %v3474, %v3477
    %v3495 = vsel %vm3493, %v3483, 2102212464
    %v3496 = vsel %vm3492, %v3480, %v3495
    %v3497 = vsel %vm3491, %v3494, %v3496
    %v3498 = vsel %vm3490, %v3477, %v3480
    %v3499 = vsel %vm3493, %v3486, 920167782
    %v3500 = vsel %vm3492, %v3483, %v3499
    %v3501 = vsel %vm3491, %v3498, %v3500
    %v3502 = vsel %vm3490, %v3480, %v3483
    %v3503 = vsel %vm3493, %v3489, 1326507024
    %v3504 = vsel %vm3492, %v3486, %v3503
    %v3505 = vsel %vm3491, %v3502, %v3504
    %v3506 = vshll.u32 %v3466, 8
    %v3507 = vmul.u32.u64.compose %v3506, %v3505
    %v3508 = vextract.low.u32 %v3507
    %v3509 = vextract.high.u32 %v3507
    %v3510 = vmul.u32.u64.compose %v3506, %v3501
    %v3511 = vextract.low.u32 %v3510
    %v3512 = vextract.high.u32 %v3510
    %v3513 = vmul.u32 %v3506, %v3497
    %v3514 = vadd.s32 %v3509, %v3511
    %vm3515 = vc.u32 %v3509, %v3511
    %v3516 = vadd.s32 %v3512, 1
    %v3517 = vsel %vm3515, %v3516, %v3512
    %v3518 = vadd.s32 %v3513, %v3517
    %v3519 = vadd.s32 %v3518, 536870912
    %v3520 = vshrl.u32 %v3519, 30
    %v3521 = vshll.u32 %v3520, 30
    %v3522 = vsub.s32 %v3518, %v3521
    %vm3523 = vcmp.lt.s32.totalorder %v3522, 0
    %v3524 = vsub.s32 0, %v3522
    %v3525 = vsel %vm3523, %v3524, %v3522
    %v3526 = vclz %v3525
    %v3527 = vsub.s32 %v3526, 2
    %vm3528 = vcmp.gt.s32.totalorder 0, %v3527
    %v3529 = vsel %vm3528, 0, %v3527
    %v3530 = vsub.s32 32, %v3529
    %v3531 = vshll.u32 %v3522, %v3529
    %v3532 = vshrl.u32 %v3514, %v3530
    %v3533 = vor.u32 %v3531, %v3532
    %v3534 = vsub.s32 4294967266, %v3529
    %v3535 = vadd.s32 %v3534, 127
    %v3536 = vshll.u32 %v3535, 23
    %v3537 = vor.u32 4788187, %v3536
    %v3538 = vand.u32 2147483647, %v3537
    %v3540 = vcvt.s32.f32 %v3533
    %v3541 = vmul.f32 %v3540, %v3538
    %v3542 = vxor.u32 %v3541, 2147483648
    %v3543 = vsel %vm3460, %v3542, %v3541
    %v3544 = vsub.s32 4, %v3520
    %v3545 = vsel %vm3460, %v3544, %v3520
    %v3546 = vsel %vm3459, %v673, %v3543
    %v3547 = vsel %vm3459, 0, %v3545
    %v3548 = vcosq.f32.pop %v3546
    %v3549 = vsinq.f32.pop %v3546
    %vm3550 = vweird.f32 %v673
    %v3551 = vadd.s32 %v3547, 3
    %v3552 = vand.u32 %v3551, 3
    %vm3553 = vcmp.lt.s32.totalorder %v3552, 2
    %vm3554 = vcmp.eq.s32.totalorder %v3552, 0
    %v3555 = vxor.u32 %v3549, 2147483648
    %v3556 = vsel %vm3554, %v3548, %v3555
    %vm3557 = vcmp.eq.s32.totalorder %v3552, 2
    %v3558 = vxor.u32 %v3548, 2147483648
    %v3559 = vsel %vm3557, %v3558, %v3549
    %v3560 = vsel %vm3553, %v3556, %v3559
    %v3561 = vsel %vm3550, nan, %v3560
    %v3562 = vand.u32 2147483647, %v674
    %vm3563 = vcmp.le.f32.partialorder %v3562, 0.7853982
    %vm3564 = vcmp.lt.s32.totalorder %v674, 0
    %v3565 = vand.u32 %v674, 2139095040
    %v3566 = vshrl.u32 %v3565, 23
    %v3567 = vsub.s32 %v3566, 127
    %v3568 = vand.u32 2147483647, %v674
    %v3569 = vand.u32 %v3568, 8388607
    %v3570 = vor.u32 %v3569, 8388608
    %v3571 = vsub.s32 0, %v3570
    %v3572 = vadd.s32 %v3567, 1
    %vm3573 = vcmp.gt.s32.totalorder %v3572, 0
    %v3574 = vsel %vm3573, %v3572, 0
    %v3575 = vshrl.u32 %v3574, 5
    %v3576 = vand.u32 %v3574, 31
    %v3577 = vsub.s32 32, %v3576
    %v3578 = vshrl.u32 683565275, %v3577
    %v3579 = vshll.u32 683565275, %v3576
    %v3580 = vshrl.u32 2475754826, %v3577
    %v3581 = vor.u32 %v3579, %v3580
    %v3582 = vshll.u32 2475754826, %v3576
    %v3583 = vshrl.u32 2131351028, %v3577
    %v3584 = vor.u32 %v3582, %v3583
    %v3585 = vshll.u32 2131351028, %v3576
    %v3586 = vshrl.u32 2102212464, %v3577
    %v3587 = vor.u32 %v3585, %v3586
    %v3588 = vshll.u32 2102212464, %v3576
    %v3589 = vshrl.u32 920167782, %v3577
    %v3590 = vor.u32 %v3588, %v3589
    %v3591 = vshll.u32 920167782, %v3576
    %v3592 = vshrl.u32 1326507024, %v3577
    %v3593 = vor.u32 %v3591, %v3592
    %vm3594 = vcmp.lt.s32.totalorder %v3575, 1
    %vm3595 = vcmp.lt.s32.totalorder %v3575, 2
    %vm3596 = vcmp.lt.s32.totalorder %v3575, 3
    %vm3597 = vcmp.lt.s32.totalorder %v3575, 4
    %v3598 = vsel %vm3594, %v3578, %v3581
    %v3599 = vsel %vm3597, %v3587, 2102212464
    %v3600 = vsel %vm3596, %v3584, %v3599
    %v3601 = vsel %vm3595, %v3598, %v3600
    %v3602 = vsel %vm3594, %v3581, %v3584
    %v3603 = vsel %vm3597, %v3590, 920167782
    %v3604 = vsel %vm3596, %v3587, %v3603
    %v3605 = vsel %vm3595, %v3602, %v3604
    %v3606 = vsel %vm3594, %v3584, %v3587
    %v3607 = vsel %vm3597, %v3593, 1326507024
    %v3608 = vsel %vm3596, %v3590, %v3607
    %v3609 = vsel %vm3595, %v3606, %v3608
    %v3610 = vshll.u32 %v3570, 8
    %v3611 = vmul.u32.u64.compose %v3610, %v3609
    %v3612 = vextract.low.u32 %v3611
    %v3613 = vextract.high.u32 %v3611
    %v3614 = vmul.u32.u64.compose %v3610, %v3605
    %v3615 = vextract.low.u32 %v3614
    %v3616 = vextract.high.u32 %v3614
    %v3617 = vmul.u32 %v3610, %v3601
    %v3618 = vadd.s32 %v3613, %v3615
    %vm3619 = vc.u32 %v3613, %v3615
    %v3620 = vadd.s32 %v3616, 1
    %v3621 = vsel %vm3619, %v3620, %v3616
    %v3622 = vadd.s32 %v3617, %v3621
    %v3623 = vadd.s32 %v3622, 536870912
    %v3624 = vshrl.u32 %v3623, 30
    %v3625 = vshll.u32 %v3624, 30
    %v3626 = vsub.s32 %v3622, %v3625
    %vm3627 = vcmp.lt.s32.totalorder %v3626, 0
    %v3628 = vsub.s32 0, %v3626
    %v3629 = vsel %vm3627, %v3628, %v3626
    %v3630 = vclz %v3629
    %v3631 = vsub.s32 %v3630, 2
    %vm3632 = vcmp.gt.s32.totalorder 0, %v3631
    %v3633 = vsel %vm3632, 0, %v3631
    %v3634 = vsub.s32 32, %v3633
    %v3635 = vshll.u32 %v3626, %v3633
    %v3636 = vshrl.u32 %v3618, %v3634
    %v3637 = vor.u32 %v3635, %v3636
    %v3638 = vsub.s32 4294967266, %v3633
    %v3639 = vadd.s32 %v3638, 127
    %v3640 = vshll.u32 %v3639, 23
    %v3641 = vor.u32 4788187, %v3640
    %v3642 = vand.u32 2147483647, %v3641
    %v3644 = vcvt.s32.f32 %v3637
    %v3645 = vmul.f32 %v3644, %v3642
    %v3646 = vxor.u32 %v3645, 2147483648
    %v3647 = vsel %vm3564, %v3646, %v3645
    %v3648 = vsub.s32 4, %v3624
    %v3649 = vsel %vm3564, %v3648, %v3624
    %v3650 = vsel %vm3563, %v674, %v3647
    %v3651 = vsel %vm3563, 0, %v3649
    %v3652 = vcosq.f32.pop %v3650
    %v3653 = vsinq.f32.pop %v3650
    %vm3654 = vweird.f32 %v674
    %v3655 = vadd.s32 %v3651, 3
    %v3656 = vand.u32 %v3655, 3
    %vm3657 = vcmp.lt.s32.totalorder %v3656, 2
    %vm3658 = vcmp.eq.s32.totalorder %v3656, 0
    %v3659 = vxor.u32 %v3653, 2147483648
    %v3660 = vsel %vm3658, %v3652, %v3659
    %vm3661 = vcmp.eq.s32.totalorder %v3656, 2
    %v3662 = vxor.u32 %v3652, 2147483648
    %v3663 = vsel %vm3661, %v3662, %v3653
    %v3664 = vsel %vm3657, %v3660, %v3663
    %v3665 = vsel %vm3654, nan, %v3664
    %v3666 = vand.u32 2147483647, %v675
    %vm3667 = vcmp.le.f32.partialorder %v3666, 0.7853982
    %vm3668 = vcmp.lt.s32.totalorder %v675, 0
    %v3669 = vand.u32 %v675, 2139095040
    %v3670 = vshrl.u32 %v3669, 23
    %v3671 = vsub.s32 %v3670, 127
    %v3672 = vand.u32 2147483647, %v675
    %v3673 = vand.u32 %v3672, 8388607
    %v3674 = vor.u32 %v3673, 8388608
    %v3675 = vsub.s32 0, %v3674
    %v3676 = vadd.s32 %v3671, 1
    %vm3677 = vcmp.gt.s32.totalorder %v3676, 0
    %v3678 = vsel %vm3677, %v3676, 0
    %v3679 = vshrl.u32 %v3678, 5
    %v3680 = vand.u32 %v3678, 31
    %v3681 = vsub.s32 32, %v3680
    %v3682 = vshrl.u32 683565275, %v3681
    %v3683 = vshll.u32 683565275, %v3680
    %v3684 = vshrl.u32 2475754826, %v3681
    %v3685 = vor.u32 %v3683, %v3684
    %v3686 = vshll.u32 2475754826, %v3680
    %v3687 = vshrl.u32 2131351028, %v3681
    %v3688 = vor.u32 %v3686, %v3687
    %v3689 = vshll.u32 2131351028, %v3680
    %v3690 = vshrl.u32 2102212464, %v3681
    %v3691 = vor.u32 %v3689, %v3690
    %v3692 = vshll.u32 2102212464, %v3680
    %v3693 = vshrl.u32 920167782, %v3681
    %v3694 = vor.u32 %v3692, %v3693
    %v3695 = vshll.u32 920167782, %v3680
    %v3696 = vshrl.u32 1326507024, %v3681
    %v3697 = vor.u32 %v3695, %v3696
    %vm3698 = vcmp.lt.s32.totalorder %v3679, 1
    %vm3699 = vcmp.lt.s32.totalorder %v3679, 2
    %vm3700 = vcmp.lt.s32.totalorder %v3679, 3
    %vm3701 = vcmp.lt.s32.totalorder %v3679, 4
    %v3702 = vsel %vm3698, %v3682, %v3685
    %v3703 = vsel %vm3701, %v3691, 2102212464
    %v3704 = vsel %vm3700, %v3688, %v3703
    %v3705 = vsel %vm3699, %v3702, %v3704
    %v3706 = vsel %vm3698, %v3685, %v3688
    %v3707 = vsel %vm3701, %v3694, 920167782
    %v3708 = vsel %vm3700, %v3691, %v3707
    %v3709 = vsel %vm3699, %v3706, %v3708
    %v3710 = vsel %vm3698, %v3688, %v3691
    %v3711 = vsel %vm3701, %v3697, 1326507024
    %v3712 = vsel %vm3700, %v3694, %v3711
    %v3713 = vsel %vm3699, %v3710, %v3712
    %v3714 = vshll.u32 %v3674, 8
    %v3715 = vmul.u32.u64.compose %v3714, %v3713
    %v3716 = vextract.low.u32 %v3715
    %v3717 = vextract.high.u32 %v3715
    %v3718 = vmul.u32.u64.compose %v3714, %v3709
    %v3719 = vextract.low.u32 %v3718
    %v3720 = vextract.high.u32 %v3718
    %v3721 = vmul.u32 %v3714, %v3705
    %v3722 = vadd.s32 %v3717, %v3719
    %vm3723 = vc.u32 %v3717, %v3719
    %v3724 = vadd.s32 %v3720, 1
    %v3725 = vsel %vm3723, %v3724, %v3720
    %v3726 = vadd.s32 %v3721, %v3725
    %v3727 = vadd.s32 %v3726, 536870912
    %v3728 = vshrl.u32 %v3727, 30
    %v3729 = vshll.u32 %v3728, 30
    %v3730 = vsub.s32 %v3726, %v3729
    %vm3731 = vcmp.lt.s32.totalorder %v3730, 0
    %v3732 = vsub.s32 0, %v3730
    %v3733 = vsel %vm3731, %v3732, %v3730
    %v3734 = vclz %v3733
    %v3735 = vsub.s32 %v3734, 2
    %vm3736 = vcmp.gt.s32.totalorder 0, %v3735
    %v3737 = vsel %vm3736, 0, %v3735
    %v3738 = vsub.s32 32, %v3737
    %v3739 = vshll.u32 %v3730, %v3737
    %v3740 = vshrl.u32 %v3722, %v3738
    %v3741 = vor.u32 %v3739, %v3740
    %v3742 = vsub.s32 4294967266, %v3737
    %v3743 = vadd.s32 %v3742, 127
    %v3744 = vshll.u32 %v3743, 23
    %v3745 = vor.u32 4788187, %v3744
    %v3746 = vand.u32 2147483647, %v3745
    %v3748 = vcvt.s32.f32 %v3741
    %v3749 = vmul.f32 %v3748, %v3746
    %v3750 = vxor.u32 %v3749, 2147483648
    %v3751 = vsel %vm3668, %v3750, %v3749
    %v3752 = vsub.s32 4, %v3728
    %v3753 = vsel %vm3668, %v3752, %v3728
    %v3754 = vsel %vm3667, %v675, %v3751
    %v3755 = vsel %vm3667, 0, %v3753
    %v3756 = vcosq.f32.pop %v3754
    %v3757 = vsinq.f32.pop %v3754
    %vm3758 = vweird.f32 %v675
    %v3759 = vadd.s32 %v3755, 3
    %v3760 = vand.u32 %v3759, 3
    %vm3761 = vcmp.lt.s32.totalorder %v3760, 2
    %vm3762 = vcmp.eq.s32.totalorder %v3760, 0
    %v3763 = vxor.u32 %v3757, 2147483648
    %v3764 = vsel %vm3762, %v3756, %v3763
    %vm3765 = vcmp.eq.s32.totalorder %v3760, 2
    %v3766 = vxor.u32 %v3756, 2147483648
    %v3767 = vsel %vm3765, %v3766, %v3757
    %v3768 = vsel %vm3761, %v3764, %v3767
    %v3769 = vsel %vm3758, nan, %v3768
    %v3770 = vand.u32 2147483647, %v676
    %vm3771 = vcmp.le.f32.partialorder %v3770, 0.7853982
    %vm3772 = vcmp.lt.s32.totalorder %v676, 0
    %v3773 = vand.u32 %v676, 2139095040
    %v3774 = vshrl.u32 %v3773, 23
    %v3775 = vsub.s32 %v3774, 127
    %v3776 = vand.u32 2147483647, %v676
    %v3777 = vand.u32 %v3776, 8388607
    %v3778 = vor.u32 %v3777, 8388608
    %v3779 = vsub.s32 0, %v3778
    %v3780 = vadd.s32 %v3775, 1
    %vm3781 = vcmp.gt.s32.totalorder %v3780, 0
    %v3782 = vsel %vm3781, %v3780, 0
    %v3783 = vshrl.u32 %v3782, 5
    %v3784 = vand.u32 %v3782, 31
    %v3785 = vsub.s32 32, %v3784
    %v3786 = vshrl.u32 683565275, %v3785
    %v3787 = vshll.u32 683565275, %v3784
    %v3788 = vshrl.u32 2475754826, %v3785
    %v3789 = vor.u32 %v3787, %v3788
    %v3790 = vshll.u32 2475754826, %v3784
    %v3791 = vshrl.u32 2131351028, %v3785
    %v3792 = vor.u32 %v3790, %v3791
    %v3793 = vshll.u32 2131351028, %v3784
    %v3794 = vshrl.u32 2102212464, %v3785
    %v3795 = vor.u32 %v3793, %v3794
    %v3796 = vshll.u32 2102212464, %v3784
    %v3797 = vshrl.u32 920167782, %v3785
    %v3798 = vor.u32 %v3796, %v3797
    %v3799 = vshll.u32 920167782, %v3784
    %v3800 = vshrl.u32 1326507024, %v3785
    %v3801 = vor.u32 %v3799, %v3800
    %vm3802 = vcmp.lt.s32.totalorder %v3783, 1
    %vm3803 = vcmp.lt.s32.totalorder %v3783, 2
    %vm3804 = vcmp.lt.s32.totalorder %v3783, 3
    %vm3805 = vcmp.lt.s32.totalorder %v3783, 4
    %v3806 = vsel %vm3802, %v3786, %v3789
    %v3807 = vsel %vm3805, %v3795, 2102212464
    %v3808 = vsel %vm3804, %v3792, %v3807
    %v3809 = vsel %vm3803, %v3806, %v3808
    %v3810 = vsel %vm3802, %v3789, %v3792
    %v3811 = vsel %vm3805, %v3798, 920167782
    %v3812 = vsel %vm3804, %v3795, %v3811
    %v3813 = vsel %vm3803, %v3810, %v3812
    %v3814 = vsel %vm3802, %v3792, %v3795
    %v3815 = vsel %vm3805, %v3801, 1326507024
    %v3816 = vsel %vm3804, %v3798, %v3815
    %v3817 = vsel %vm3803, %v3814, %v3816
    %v3818 = vshll.u32 %v3778, 8
    %v3819 = vmul.u32.u64.compose %v3818, %v3817
    %v3820 = vextract.low.u32 %v3819
    %v3821 = vextract.high.u32 %v3819
    %v3822 = vmul.u32.u64.compose %v3818, %v3813
    %v3823 = vextract.low.u32 %v3822
    %v3824 = vextract.high.u32 %v3822
    %v3825 = vmul.u32 %v3818, %v3809
    %v3826 = vadd.s32 %v3821, %v3823
    %vm3827 = vc.u32 %v3821, %v3823
    %v3828 = vadd.s32 %v3824, 1
    %v3829 = vsel %vm3827, %v3828, %v3824
    %v3830 = vadd.s32 %v3825, %v3829
    %v3831 = vadd.s32 %v3830, 536870912
    %v3832 = vshrl.u32 %v3831, 30
    %v3833 = vshll.u32 %v3832, 30
    %v3834 = vsub.s32 %v3830, %v3833
    %vm3835 = vcmp.lt.s32.totalorder %v3834, 0
    %v3836 = vsub.s32 0, %v3834
    %v3837 = vsel %vm3835, %v3836, %v3834
    %v3838 = vclz %v3837
    %v3839 = vsub.s32 %v3838, 2
    %vm3840 = vcmp.gt.s32.totalorder 0, %v3839
    %v3841 = vsel %vm3840, 0, %v3839
    %v3842 = vsub.s32 32, %v3841
    %v3843 = vshll.u32 %v3834, %v3841
    %v3844 = vshrl.u32 %v3826, %v3842
    %v3845 = vor.u32 %v3843, %v3844
    %v3846 = vsub.s32 4294967266, %v3841
    %v3847 = vadd.s32 %v3846, 127
    %v3848 = vshll.u32 %v3847, 23
    %v3849 = vor.u32 4788187, %v3848
    %v3850 = vand.u32 2147483647, %v3849
    %v3852 = vcvt.s32.f32 %v3845
    %v3853 = vmul.f32 %v3852, %v3850
    %v3854 = vxor.u32 %v3853, 2147483648
    %v3855 = vsel %vm3772, %v3854, %v3853
    %v3856 = vsub.s32 4, %v3832
    %v3857 = vsel %vm3772, %v3856, %v3832
    %v3858 = vsel %vm3771, %v676, %v3855
    %v3859 = vsel %vm3771, 0, %v3857
    %v3860 = vcosq.f32.pop %v3858
    %v3861 = vsinq.f32.pop %v3858
    %vm3862 = vweird.f32 %v676
    %v3863 = vadd.s32 %v3859, 3
    %v3864 = vand.u32 %v3863, 3
    %vm3865 = vcmp.lt.s32.totalorder %v3864, 2
    %vm3866 = vcmp.eq.s32.totalorder %v3864, 0
    %v3867 = vxor.u32 %v3861, 2147483648
    %v3868 = vsel %vm3866, %v3860, %v3867
    %vm3869 = vcmp.eq.s32.totalorder %v3864, 2
    %v3870 = vxor.u32 %v3860, 2147483648
    %v3871 = vsel %vm3869, %v3870, %v3861
    %v3872 = vsel %vm3865, %v3868, %v3871
    %v3873 = vsel %vm3862, nan, %v3872
    %v3874 = vand.u32 2147483647, %v677
    %vm3875 = vcmp.le.f32.partialorder %v3874, 0.7853982
    %vm3876 = vcmp.lt.s32.totalorder %v677, 0
    %v3877 = vand.u32 %v677, 2139095040
    %v3878 = vshrl.u32 %v3877, 23
    %v3879 = vsub.s32 %v3878, 127
    %v3880 = vand.u32 2147483647, %v677
    %v3881 = vand.u32 %v3880, 8388607
    %v3882 = vor.u32 %v3881, 8388608
    %v3883 = vsub.s32 0, %v3882
    %v3884 = vadd.s32 %v3879, 1
    %vm3885 = vcmp.gt.s32.totalorder %v3884, 0
    %v3886 = vsel %vm3885, %v3884, 0
    %v3887 = vshrl.u32 %v3886, 5
    %v3888 = vand.u32 %v3886, 31
    %v3889 = vsub.s32 32, %v3888
    %v3890 = vshrl.u32 683565275, %v3889
    %v3891 = vshll.u32 683565275, %v3888
    %v3892 = vshrl.u32 2475754826, %v3889
    %v3893 = vor.u32 %v3891, %v3892
    %v3894 = vshll.u32 2475754826, %v3888
    %v3895 = vshrl.u32 2131351028, %v3889
    %v3896 = vor.u32 %v3894, %v3895
    %v3897 = vshll.u32 2131351028, %v3888
    %v3898 = vshrl.u32 2102212464, %v3889
    %v3899 = vor.u32 %v3897, %v3898
    %v3900 = vshll.u32 2102212464, %v3888
    %v3901 = vshrl.u32 920167782, %v3889
    %v3902 = vor.u32 %v3900, %v3901
    %v3903 = vshll.u32 920167782, %v3888
    %v3904 = vshrl.u32 1326507024, %v3889
    %v3905 = vor.u32 %v3903, %v3904
    %vm3906 = vcmp.lt.s32.totalorder %v3887, 1
    %vm3907 = vcmp.lt.s32.totalorder %v3887, 2
    %vm3908 = vcmp.lt.s32.totalorder %v3887, 3
    %vm3909 = vcmp.lt.s32.totalorder %v3887, 4
    %v3910 = vsel %vm3906, %v3890, %v3893
    %v3911 = vsel %vm3909, %v3899, 2102212464
    %v3912 = vsel %vm3908, %v3896, %v3911
    %v3913 = vsel %vm3907, %v3910, %v3912
    %v3914 = vsel %vm3906, %v3893, %v3896
    %v3915 = vsel %vm3909, %v3902, 920167782
    %v3916 = vsel %vm3908, %v3899, %v3915
    %v3917 = vsel %vm3907, %v3914, %v3916
    %v3918 = vsel %vm3906, %v3896, %v3899
    %v3919 = vsel %vm3909, %v3905, 1326507024
    %v3920 = vsel %vm3908, %v3902, %v3919
    %v3921 = vsel %vm3907, %v3918, %v3920
    %v3922 = vshll.u32 %v3882, 8
    %v3923 = vmul.u32.u64.compose %v3922, %v3921
    %v3924 = vextract.low.u32 %v3923
    %v3925 = vextract.high.u32 %v3923
    %v3926 = vmul.u32.u64.compose %v3922, %v3917
    %v3927 = vextract.low.u32 %v3926
    %v3928 = vextract.high.u32 %v3926
    %v3929 = vmul.u32 %v3922, %v3913
    %v3930 = vadd.s32 %v3925, %v3927
    %vm3931 = vc.u32 %v3925, %v3927
    %v3932 = vadd.s32 %v3928, 1
    %v3933 = vsel %vm3931, %v3932, %v3928
    %v3934 = vadd.s32 %v3929, %v3933
    %v3935 = vadd.s32 %v3934, 536870912
    %v3936 = vshrl.u32 %v3935, 30
    %v3937 = vshll.u32 %v3936, 30
    %v3938 = vsub.s32 %v3934, %v3937
    %vm3939 = vcmp.lt.s32.totalorder %v3938, 0
    %v3940 = vsub.s32 0, %v3938
    %v3941 = vsel %vm3939, %v3940, %v3938
    %v3942 = vclz %v3941
    %v3943 = vsub.s32 %v3942, 2
    %vm3944 = vcmp.gt.s32.totalorder 0, %v3943
    %v3945 = vsel %vm3944, 0, %v3943
    %v3946 = vsub.s32 32, %v3945
    %v3947 = vshll.u32 %v3938, %v3945
    %v3948 = vshrl.u32 %v3930, %v3946
    %v3949 = vor.u32 %v3947, %v3948
    %v3950 = vsub.s32 4294967266, %v3945
    %v3951 = vadd.s32 %v3950, 127
    %v3952 = vshll.u32 %v3951, 23
    %v3953 = vor.u32 4788187, %v3952
    %v3954 = vand.u32 2147483647, %v3953
    %v3956 = vcvt.s32.f32 %v3949
    %v3957 = vmul.f32 %v3956, %v3954
    %v3958 = vxor.u32 %v3957, 2147483648
    %v3959 = vsel %vm3876, %v3958, %v3957
    %v3960 = vsub.s32 4, %v3936
    %v3961 = vsel %vm3876, %v3960, %v3936
    %v3962 = vsel %vm3875, %v677, %v3959
    %v3963 = vsel %vm3875, 0, %v3961
    %v3964 = vcosq.f32.pop %v3962
    %v3965 = vsinq.f32.pop %v3962
    %vm3966 = vweird.f32 %v677
    %v3967 = vadd.s32 %v3963, 3
    %v3968 = vand.u32 %v3967, 3
    %vm3969 = vcmp.lt.s32.totalorder %v3968, 2
    %vm3970 = vcmp.eq.s32.totalorder %v3968, 0
    %v3971 = vxor.u32 %v3965, 2147483648
    %v3972 = vsel %vm3970, %v3964, %v3971
    %vm3973 = vcmp.eq.s32.totalorder %v3968, 2
    %v3974 = vxor.u32 %v3964, 2147483648
    %v3975 = vsel %vm3973, %v3974, %v3965
    %v3976 = vsel %vm3969, %v3972, %v3975
    %v3977 = vsel %vm3966, nan, %v3976
    %v3978 = vand.u32 2147483647, %v678
    %vm3979 = vcmp.le.f32.partialorder %v3978, 0.7853982
    %vm3980 = vcmp.lt.s32.totalorder %v678, 0
    %v3981 = vand.u32 %v678, 2139095040
    %v3982 = vshrl.u32 %v3981, 23
    %v3983 = vsub.s32 %v3982, 127
    %v3984 = vand.u32 2147483647, %v678
    %v3985 = vand.u32 %v3984, 8388607
    %v3986 = vor.u32 %v3985, 8388608
    %v3987 = vsub.s32 0, %v3986
    %v3988 = vadd.s32 %v3983, 1
    %vm3989 = vcmp.gt.s32.totalorder %v3988, 0
    %v3990 = vsel %vm3989, %v3988, 0
    %v3991 = vshrl.u32 %v3990, 5
    %v3992 = vand.u32 %v3990, 31
    %v3993 = vsub.s32 32, %v3992
    %v3994 = vshrl.u32 683565275, %v3993
    %v3995 = vshll.u32 683565275, %v3992
    %v3996 = vshrl.u32 2475754826, %v3993
    %v3997 = vor.u32 %v3995, %v3996
    %v3998 = vshll.u32 2475754826, %v3992
    %v3999 = vshrl.u32 2131351028, %v3993
    %v4000 = vor.u32 %v3998, %v3999
    %v4001 = vshll.u32 2131351028, %v3992
    %v4002 = vshrl.u32 2102212464, %v3993
    %v4003 = vor.u32 %v4001, %v4002
    %v4004 = vshll.u32 2102212464, %v3992
    %v4005 = vshrl.u32 920167782, %v3993
    %v4006 = vor.u32 %v4004, %v4005
    %v4007 = vshll.u32 920167782, %v3992
    %v4008 = vshrl.u32 1326507024, %v3993
    %v4009 = vor.u32 %v4007, %v4008
    %vm4010 = vcmp.lt.s32.totalorder %v3991, 1
    %vm4011 = vcmp.lt.s32.totalorder %v3991, 2
    %vm4012 = vcmp.lt.s32.totalorder %v3991, 3
    %vm4013 = vcmp.lt.s32.totalorder %v3991, 4
    %v4014 = vsel %vm4010, %v3994, %v3997
    %v4015 = vsel %vm4013, %v4003, 2102212464
    %v4016 = vsel %vm4012, %v4000, %v4015
    %v4017 = vsel %vm4011, %v4014, %v4016
    %v4018 = vsel %vm4010, %v3997, %v4000
    %v4019 = vsel %vm4013, %v4006, 920167782
    %v4020 = vsel %vm4012, %v4003, %v4019
    %v4021 = vsel %vm4011, %v4018, %v4020
    %v4022 = vsel %vm4010, %v4000, %v4003
    %v4023 = vsel %vm4013, %v4009, 1326507024
    %v4024 = vsel %vm4012, %v4006, %v4023
    %v4025 = vsel %vm4011, %v4022, %v4024
    %v4026 = vshll.u32 %v3986, 8
    %v4027 = vmul.u32.u64.compose %v4026, %v4025
    %v4028 = vextract.low.u32 %v4027
    %v4029 = vextract.high.u32 %v4027
    %v4030 = vmul.u32.u64.compose %v4026, %v4021
    %v4031 = vextract.low.u32 %v4030
    %v4032 = vextract.high.u32 %v4030
    %v4033 = vmul.u32 %v4026, %v4017
    %v4034 = vadd.s32 %v4029, %v4031
    %vm4035 = vc.u32 %v4029, %v4031
    %v4036 = vadd.s32 %v4032, 1
    %v4037 = vsel %vm4035, %v4036, %v4032
    %v4038 = vadd.s32 %v4033, %v4037
    %v4039 = vadd.s32 %v4038, 536870912
    %v4040 = vshrl.u32 %v4039, 30
    %v4041 = vshll.u32 %v4040, 30
    %v4042 = vsub.s32 %v4038, %v4041
    %vm4043 = vcmp.lt.s32.totalorder %v4042, 0
    %v4044 = vsub.s32 0, %v4042
    %v4045 = vsel %vm4043, %v4044, %v4042
    %v4046 = vclz %v4045
    %v4047 = vsub.s32 %v4046, 2
    %vm4048 = vcmp.gt.s32.totalorder 0, %v4047
    %v4049 = vsel %vm4048, 0, %v4047
    %v4050 = vsub.s32 32, %v4049
    %v4051 = vshll.u32 %v4042, %v4049
    %v4052 = vshrl.u32 %v4034, %v4050
    %v4053 = vor.u32 %v4051, %v4052
    %v4054 = vsub.s32 4294967266, %v4049
    %v4055 = vadd.s32 %v4054, 127
    %v4056 = vshll.u32 %v4055, 23
    %v4057 = vor.u32 4788187, %v4056
    %v4058 = vand.u32 2147483647, %v4057
    %v4060 = vcvt.s32.f32 %v4053
    %v4061 = vmul.f32 %v4060, %v4058
    %v4062 = vxor.u32 %v4061, 2147483648
    %v4063 = vsel %vm3980, %v4062, %v4061
    %v4064 = vsub.s32 4, %v4040
    %v4065 = vsel %vm3980, %v4064, %v4040
    %v4066 = vsel %vm3979, %v678, %v4063
    %v4067 = vsel %vm3979, 0, %v4065
    %v4068 = vcosq.f32.pop %v4066
    %v4069 = vsinq.f32.pop %v4066
    %vm4070 = vweird.f32 %v678
    %v4071 = vadd.s32 %v4067, 3
    %v4072 = vand.u32 %v4071, 3
    %vm4073 = vcmp.lt.s32.totalorder %v4072, 2
    %vm4074 = vcmp.eq.s32.totalorder %v4072, 0
    %v4075 = vxor.u32 %v4069, 2147483648
    %v4076 = vsel %vm4074, %v4068, %v4075
    %vm4077 = vcmp.eq.s32.totalorder %v4072, 2
    %v4078 = vxor.u32 %v4068, 2147483648
    %v4079 = vsel %vm4077, %v4078, %v4069
    %v4080 = vsel %vm4073, %v4076, %v4079
    %v4081 = vsel %vm4070, nan, %v4080
    %v4082 = vand.u32 2147483647, %v679
    %vm4083 = vcmp.le.f32.partialorder %v4082, 0.7853982
    %vm4084 = vcmp.lt.s32.totalorder %v679, 0
    %v4085 = vand.u32 %v679, 2139095040
    %v4086 = vshrl.u32 %v4085, 23
    %v4087 = vsub.s32 %v4086, 127
    %v4088 = vand.u32 2147483647, %v679
    %v4089 = vand.u32 %v4088, 8388607
    %v4090 = vor.u32 %v4089, 8388608
    %v4091 = vsub.s32 0, %v4090
    %v4092 = vadd.s32 %v4087, 1
    %vm4093 = vcmp.gt.s32.totalorder %v4092, 0
    %v4094 = vsel %vm4093, %v4092, 0
    %v4095 = vshrl.u32 %v4094, 5
    %v4096 = vand.u32 %v4094, 31
    %v4097 = vsub.s32 32, %v4096
    %v4098 = vshrl.u32 683565275, %v4097
    %v4099 = vshll.u32 683565275, %v4096
    %v4100 = vshrl.u32 2475754826, %v4097
    %v4101 = vor.u32 %v4099, %v4100
    %v4102 = vshll.u32 2475754826, %v4096
    %v4103 = vshrl.u32 2131351028, %v4097
    %v4104 = vor.u32 %v4102, %v4103
    %v4105 = vshll.u32 2131351028, %v4096
    %v4106 = vshrl.u32 2102212464, %v4097
    %v4107 = vor.u32 %v4105, %v4106
    %v4108 = vshll.u32 2102212464, %v4096
    %v4109 = vshrl.u32 920167782, %v4097
    %v4110 = vor.u32 %v4108, %v4109
    %v4111 = vshll.u32 920167782, %v4096
    %v4112 = vshrl.u32 1326507024, %v4097
    %v4113 = vor.u32 %v4111, %v4112
    %vm4114 = vcmp.lt.s32.totalorder %v4095, 1
    %vm4115 = vcmp.lt.s32.totalorder %v4095, 2
    %vm4116 = vcmp.lt.s32.totalorder %v4095, 3
    %vm4117 = vcmp.lt.s32.totalorder %v4095, 4
    %v4118 = vsel %vm4114, %v4098, %v4101
    %v4119 = vsel %vm4117, %v4107, 2102212464
    %v4120 = vsel %vm4116, %v4104, %v4119
    %v4121 = vsel %vm4115, %v4118, %v4120
    %v4122 = vsel %vm4114, %v4101, %v4104
    %v4123 = vsel %vm4117, %v4110, 920167782
    %v4124 = vsel %vm4116, %v4107, %v4123
    %v4125 = vsel %vm4115, %v4122, %v4124
    %v4126 = vsel %vm4114, %v4104, %v4107
    %v4127 = vsel %vm4117, %v4113, 1326507024
    %v4128 = vsel %vm4116, %v4110, %v4127
    %v4129 = vsel %vm4115, %v4126, %v4128
    %v4130 = vshll.u32 %v4090, 8
    %v4131 = vmul.u32.u64.compose %v4130, %v4129
    %v4132 = vextract.low.u32 %v4131
    %v4133 = vextract.high.u32 %v4131
    %v4134 = vmul.u32.u64.compose %v4130, %v4125
    %v4135 = vextract.low.u32 %v4134
    %v4136 = vextract.high.u32 %v4134
    %v4137 = vmul.u32 %v4130, %v4121
    %v4138 = vadd.s32 %v4133, %v4135
    %vm4139 = vc.u32 %v4133, %v4135
    %v4140 = vadd.s32 %v4136, 1
    %v4141 = vsel %vm4139, %v4140, %v4136
    %v4142 = vadd.s32 %v4137, %v4141
    %v4143 = vadd.s32 %v4142, 536870912
    %v4144 = vshrl.u32 %v4143, 30
    %v4145 = vshll.u32 %v4144, 30
    %v4146 = vsub.s32 %v4142, %v4145
    %vm4147 = vcmp.lt.s32.totalorder %v4146, 0
    %v4148 = vsub.s32 0, %v4146
    %v4149 = vsel %vm4147, %v4148, %v4146
    %v4150 = vclz %v4149
    %v4151 = vsub.s32 %v4150, 2
    %vm4152 = vcmp.gt.s32.totalorder 0, %v4151
    %v4153 = vsel %vm4152, 0, %v4151
    %v4154 = vsub.s32 32, %v4153
    %v4155 = vshll.u32 %v4146, %v4153
    %v4156 = vshrl.u32 %v4138, %v4154
    %v4157 = vor.u32 %v4155, %v4156
    %v4158 = vsub.s32 4294967266, %v4153
    %v4159 = vadd.s32 %v4158, 127
    %v4160 = vshll.u32 %v4159, 23
    %v4161 = vor.u32 4788187, %v4160
    %v4162 = vand.u32 2147483647, %v4161
    %v4164 = vcvt.s32.f32 %v4157
    %v4165 = vmul.f32 %v4164, %v4162
    %v4166 = vxor.u32 %v4165, 2147483648
    %v4167 = vsel %vm4084, %v4166, %v4165
    %v4168 = vsub.s32 4, %v4144
    %v4169 = vsel %vm4084, %v4168, %v4144
    %v4170 = vsel %vm4083, %v679, %v4167
    %v4171 = vsel %vm4083, 0, %v4169
    %v4172 = vcosq.f32.pop %v4170
    %v4173 = vsinq.f32.pop %v4170
    %vm4174 = vweird.f32 %v679
    %v4175 = vadd.s32 %v4171, 3
    %v4176 = vand.u32 %v4175, 3
    %vm4177 = vcmp.lt.s32.totalorder %v4176, 2
    %vm4178 = vcmp.eq.s32.totalorder %v4176, 0
    %v4179 = vxor.u32 %v4173, 2147483648
    %v4180 = vsel %vm4178, %v4172, %v4179
    %vm4181 = vcmp.eq.s32.totalorder %v4176, 2
    %v4182 = vxor.u32 %v4172, 2147483648
    %v4183 = vsel %vm4181, %v4182, %v4173
    %v4184 = vsel %vm4177, %v4180, %v4183
    %v4185 = vsel %vm4174, nan, %v4184
    %v4186 = vand.u32 2147483647, %v680
    %vm4187 = vcmp.le.f32.partialorder %v4186, 0.7853982
    %vm4188 = vcmp.lt.s32.totalorder %v680, 0
    %v4189 = vand.u32 %v680, 2139095040
    %v4190 = vshrl.u32 %v4189, 23
    %v4191 = vsub.s32 %v4190, 127
    %v4192 = vand.u32 2147483647, %v680
    %v4193 = vand.u32 %v4192, 8388607
    %v4194 = vor.u32 %v4193, 8388608
    %v4195 = vsub.s32 0, %v4194
    %v4196 = vadd.s32 %v4191, 1
    %vm4197 = vcmp.gt.s32.totalorder %v4196, 0
    %v4198 = vsel %vm4197, %v4196, 0
    %v4199 = vshrl.u32 %v4198, 5
    %v4200 = vand.u32 %v4198, 31
    %v4201 = vsub.s32 32, %v4200
    %v4202 = vshrl.u32 683565275, %v4201
    %v4203 = vshll.u32 683565275, %v4200
    %v4204 = vshrl.u32 2475754826, %v4201
    %v4205 = vor.u32 %v4203, %v4204
    %v4206 = vshll.u32 2475754826, %v4200
    %v4207 = vshrl.u32 2131351028, %v4201
    %v4208 = vor.u32 %v4206, %v4207
    %v4209 = vshll.u32 2131351028, %v4200
    %v4210 = vshrl.u32 2102212464, %v4201
    %v4211 = vor.u32 %v4209, %v4210
    %v4212 = vshll.u32 2102212464, %v4200
    %v4213 = vshrl.u32 920167782, %v4201
    %v4214 = vor.u32 %v4212, %v4213
    %v4215 = vshll.u32 920167782, %v4200
    %v4216 = vshrl.u32 1326507024, %v4201
    %v4217 = vor.u32 %v4215, %v4216
    %vm4218 = vcmp.lt.s32.totalorder %v4199, 1
    %vm4219 = vcmp.lt.s32.totalorder %v4199, 2
    %vm4220 = vcmp.lt.s32.totalorder %v4199, 3
    %vm4221 = vcmp.lt.s32.totalorder %v4199, 4
    %v4222 = vsel %vm4218, %v4202, %v4205
    %v4223 = vsel %vm4221, %v4211, 2102212464
    %v4224 = vsel %vm4220, %v4208, %v4223
    %v4225 = vsel %vm4219, %v4222, %v4224
    %v4226 = vsel %vm4218, %v4205, %v4208
    %v4227 = vsel %vm4221, %v4214, 920167782
    %v4228 = vsel %vm4220, %v4211, %v4227
    %v4229 = vsel %vm4219, %v4226, %v4228
    %v4230 = vsel %vm4218, %v4208, %v4211
    %v4231 = vsel %vm4221, %v4217, 1326507024
    %v4232 = vsel %vm4220, %v4214, %v4231
    %v4233 = vsel %vm4219, %v4230, %v4232
    %v4234 = vshll.u32 %v4194, 8
    %v4235 = vmul.u32.u64.compose %v4234, %v4233
    %v4236 = vextract.low.u32 %v4235
    %v4237 = vextract.high.u32 %v4235
    %v4238 = vmul.u32.u64.compose %v4234, %v4229
    %v4239 = vextract.low.u32 %v4238
    %v4240 = vextract.high.u32 %v4238
    %v4241 = vmul.u32 %v4234, %v4225
    %v4242 = vadd.s32 %v4237, %v4239
    %vm4243 = vc.u32 %v4237, %v4239
    %v4244 = vadd.s32 %v4240, 1
    %v4245 = vsel %vm4243, %v4244, %v4240
    %v4246 = vadd.s32 %v4241, %v4245
    %v4247 = vadd.s32 %v4246, 536870912
    %v4248 = vshrl.u32 %v4247, 30
    %v4249 = vshll.u32 %v4248, 30
    %v4250 = vsub.s32 %v4246, %v4249
    %vm4251 = vcmp.lt.s32.totalorder %v4250, 0
    %v4252 = vsub.s32 0, %v4250
    %v4253 = vsel %vm4251, %v4252, %v4250
    %v4254 = vclz %v4253
    %v4255 = vsub.s32 %v4254, 2
    %vm4256 = vcmp.gt.s32.totalorder 0, %v4255
    %v4257 = vsel %vm4256, 0, %v4255
    %v4258 = vsub.s32 32, %v4257
    %v4259 = vshll.u32 %v4250, %v4257
    %v4260 = vshrl.u32 %v4242, %v4258
    %v4261 = vor.u32 %v4259, %v4260
    %v4262 = vsub.s32 4294967266, %v4257
    %v4263 = vadd.s32 %v4262, 127
    %v4264 = vshll.u32 %v4263, 23
    %v4265 = vor.u32 4788187, %v4264
    %v4266 = vand.u32 2147483647, %v4265
    %v4268 = vcvt.s32.f32 %v4261
    %v4269 = vmul.f32 %v4268, %v4266
    %v4270 = vxor.u32 %v4269, 2147483648
    %v4271 = vsel %vm4188, %v4270, %v4269
    %v4272 = vsub.s32 4, %v4248
    %v4273 = vsel %vm4188, %v4272, %v4248
    %v4274 = vsel %vm4187, %v680, %v4271
    %v4275 = vsel %vm4187, 0, %v4273
    %v4276 = vcosq.f32.pop %v4274
    %v4277 = vsinq.f32.pop %v4274
    %vm4278 = vweird.f32 %v680
    %v4279 = vadd.s32 %v4275, 3
    %v4280 = vand.u32 %v4279, 3
    %vm4281 = vcmp.lt.s32.totalorder %v4280, 2
    %vm4282 = vcmp.eq.s32.totalorder %v4280, 0
    %v4283 = vxor.u32 %v4277, 2147483648
    %v4284 = vsel %vm4282, %v4276, %v4283
    %vm4285 = vcmp.eq.s32.totalorder %v4280, 2
    %v4286 = vxor.u32 %v4276, 2147483648
    %v4287 = vsel %vm4285, %v4286, %v4277
    %v4288 = vsel %vm4281, %v4284, %v4287
    %v4289 = vsel %vm4278, nan, %v4288
    %v4290 = vand.u32 2147483647, %v681
    %vm4291 = vcmp.le.f32.partialorder %v4290, 0.7853982
    %vm4292 = vcmp.lt.s32.totalorder %v681, 0
    %v4293 = vand.u32 %v681, 2139095040
    %v4294 = vshrl.u32 %v4293, 23
    %v4295 = vsub.s32 %v4294, 127
    %v4296 = vand.u32 2147483647, %v681
    %v4297 = vand.u32 %v4296, 8388607
    %v4298 = vor.u32 %v4297, 8388608
    %v4299 = vsub.s32 0, %v4298
    %v4300 = vadd.s32 %v4295, 1
    %vm4301 = vcmp.gt.s32.totalorder %v4300, 0
    %v4302 = vsel %vm4301, %v4300, 0
    %v4303 = vshrl.u32 %v4302, 5
    %v4304 = vand.u32 %v4302, 31
    %v4305 = vsub.s32 32, %v4304
    %v4306 = vshrl.u32 683565275, %v4305
    %v4307 = vshll.u32 683565275, %v4304
    %v4308 = vshrl.u32 2475754826, %v4305
    %v4309 = vor.u32 %v4307, %v4308
    %v4310 = vshll.u32 2475754826, %v4304
    %v4311 = vshrl.u32 2131351028, %v4305
    %v4312 = vor.u32 %v4310, %v4311
    %v4313 = vshll.u32 2131351028, %v4304
    %v4314 = vshrl.u32 2102212464, %v4305
    %v4315 = vor.u32 %v4313, %v4314
    %v4316 = vshll.u32 2102212464, %v4304
    %v4317 = vshrl.u32 920167782, %v4305
    %v4318 = vor.u32 %v4316, %v4317
    %v4319 = vshll.u32 920167782, %v4304
    %v4320 = vshrl.u32 1326507024, %v4305
    %v4321 = vor.u32 %v4319, %v4320
    %vm4322 = vcmp.lt.s32.totalorder %v4303, 1
    %vm4323 = vcmp.lt.s32.totalorder %v4303, 2
    %vm4324 = vcmp.lt.s32.totalorder %v4303, 3
    %vm4325 = vcmp.lt.s32.totalorder %v4303, 4
    %v4326 = vsel %vm4322, %v4306, %v4309
    %v4327 = vsel %vm4325, %v4315, 2102212464
    %v4328 = vsel %vm4324, %v4312, %v4327
    %v4329 = vsel %vm4323, %v4326, %v4328
    %v4330 = vsel %vm4322, %v4309, %v4312
    %v4331 = vsel %vm4325, %v4318, 920167782
    %v4332 = vsel %vm4324, %v4315, %v4331
    %v4333 = vsel %vm4323, %v4330, %v4332
    %v4334 = vsel %vm4322, %v4312, %v4315
    %v4335 = vsel %vm4325, %v4321, 1326507024
    %v4336 = vsel %vm4324, %v4318, %v4335
    %v4337 = vsel %vm4323, %v4334, %v4336
    %v4338 = vshll.u32 %v4298, 8
    %v4339 = vmul.u32.u64.compose %v4338, %v4337
    %v4340 = vextract.low.u32 %v4339
    %v4341 = vextract.high.u32 %v4339
    %v4342 = vmul.u32.u64.compose %v4338, %v4333
    %v4343 = vextract.low.u32 %v4342
    %v4344 = vextract.high.u32 %v4342
    %v4345 = vmul.u32 %v4338, %v4329
    %v4346 = vadd.s32 %v4341, %v4343
    %vm4347 = vc.u32 %v4341, %v4343
    %v4348 = vadd.s32 %v4344, 1
    %v4349 = vsel %vm4347, %v4348, %v4344
    %v4350 = vadd.s32 %v4345, %v4349
    %v4351 = vadd.s32 %v4350, 536870912
    %v4352 = vshrl.u32 %v4351, 30
    %v4353 = vshll.u32 %v4352, 30
    %v4354 = vsub.s32 %v4350, %v4353
    %vm4355 = vcmp.lt.s32.totalorder %v4354, 0
    %v4356 = vsub.s32 0, %v4354
    %v4357 = vsel %vm4355, %v4356, %v4354
    %v4358 = vclz %v4357
    %v4359 = vsub.s32 %v4358, 2
    %vm4360 = vcmp.gt.s32.totalorder 0, %v4359
    %v4361 = vsel %vm4360, 0, %v4359
    %v4362 = vsub.s32 32, %v4361
    %v4363 = vshll.u32 %v4354, %v4361
    %v4364 = vshrl.u32 %v4346, %v4362
    %v4365 = vor.u32 %v4363, %v4364
    %v4366 = vsub.s32 4294967266, %v4361
    %v4367 = vadd.s32 %v4366, 127
    %v4368 = vshll.u32 %v4367, 23
    %v4369 = vor.u32 4788187, %v4368
    %v4370 = vand.u32 2147483647, %v4369
    %v4372 = vcvt.s32.f32 %v4365
    %v4373 = vmul.f32 %v4372, %v4370
    %v4374 = vxor.u32 %v4373, 2147483648
    %v4375 = vsel %vm4292, %v4374, %v4373
    %v4376 = vsub.s32 4, %v4352
    %v4377 = vsel %vm4292, %v4376, %v4352
    %v4378 = vsel %vm4291, %v681, %v4375
    %v4379 = vsel %vm4291, 0, %v4377
    %v4380 = vcosq.f32.pop %v4378
    %v4381 = vsinq.f32.pop %v4378
    %vm4382 = vweird.f32 %v681
    %v4383 = vadd.s32 %v4379, 3
    %v4384 = vand.u32 %v4383, 3
    %vm4385 = vcmp.lt.s32.totalorder %v4384, 2
    %vm4386 = vcmp.eq.s32.totalorder %v4384, 0
    %v4387 = vxor.u32 %v4381, 2147483648
    %v4388 = vsel %vm4386, %v4380, %v4387
    %vm4389 = vcmp.eq.s32.totalorder %v4384, 2
    %v4390 = vxor.u32 %v4380, 2147483648
    %v4391 = vsel %vm4389, %v4390, %v4381
    %v4392 = vsel %vm4385, %v4388, %v4391
    %v4393 = vsel %vm4382, nan, %v4392
    %v4394 = vmul.f32 %v634, %v2833
    %v4395 = vmul.f32 %v635, %v2937
    %v4396 = vmul.f32 %v636, %v3041
    %v4397 = vmul.f32 %v637, %v3145
    %v4398 = vmul.f32 %v638, %v3249
    %v4399 = vmul.f32 %v639, %v3353
    %v4400 = vmul.f32 %v640, %v3457
    %v4401 = vmul.f32 %v641, %v3561
    %v4402 = vmul.f32 %v642, %v3665
    %v4403 = vmul.f32 %v643, %v3769
    %v4404 = vmul.f32 %v644, %v3873
    %v4405 = vmul.f32 %v645, %v3977
    %v4406 = vmul.f32 %v646, %v4081
    %v4407 = vmul.f32 %v647, %v4185
    %v4408 = vmul.f32 %v648, %v4289
    %v4409 = vmul.f32 %v649, %v4393
    %v4410 = vmul.f32 %v4394, %v922
    %v4411 = vmul.f32 %v4395, %v923
    %v4412 = vmul.f32 %v4396, %v924
    %v4413 = vmul.f32 %v4397, %v925
    %v4414 = vmul.f32 %v4398, %v926
    %v4415 = vmul.f32 %v4399, %v927
    %v4416 = vmul.f32 %v4400, %v928
    %v4417 = vmul.f32 %v4401, %v929
    %v4418 = vmul.f32 %v4402, %v930
    %v4419 = vmul.f32 %v4403, %v931
    %v4420 = vmul.f32 %v4404, %v932
    %v4421 = vmul.f32 %v4405, %v933
    %v4422 = vmul.f32 %v4406, %v934
    %v4423 = vmul.f32 %v4407, %v935
    %v4424 = vmul.f32 %v4408, %v936
    %v4425 = vmul.f32 %v4409, %v937
    %v4426 = vsub.f32 %v2714, %v4410
    %v4427 = vsub.f32 %v2715, %v4411
    %v4428 = vsub.f32 %v2716, %v4412
    %v4429 = vsub.f32 %v2717, %v4413
    %v4430 = vsub.f32 %v2718, %v4414
    %v4431 = vsub.f32 %v2719, %v4415
    %v4432 = vsub.f32 %v2720, %v4416
    %v4433 = vsub.f32 %v2721, %v4417
    %v4434 = vsub.f32 %v2722, %v4418
    %v4435 = vsub.f32 %v2723, %v4419
    %v4436 = vsub.f32 %v2724, %v4420
    %v4437 = vsub.f32 %v2725, %v4421
    %v4438 = vsub.f32 %v2726, %v4422
    %v4439 = vsub.f32 %v2727, %v4423
    %v4440 = vsub.f32 %v2728, %v4424
    %v4441 = vsub.f32 %v2729, %v4425
    %v4442 = vmul.f32 %v960, %v4426
    %v4443 = vmul.f32 %v967, %v4427
    %v4444 = vmul.f32 %v974, %v4428
    %v4445 = vmul.f32 %v981, %v4429
    %v4446 = vmul.f32 %v988, %v4430
    %v4447 = vmul.f32 %v995, %v4431
    %v4448 = vmul.f32 %v1002, %v4432
    %v4449 = vmul.f32 %v1009, %v4433
    %v4450 = vmul.f32 %v1016, %v4434
    %v4451 = vmul.f32 %v1023, %v4435
    %v4452 = vmul.f32 %v1030, %v4436
    %v4453 = vmul.f32 %v1037, %v4437
    %v4454 = vmul.f32 %v1044, %v4438
    %v4455 = vmul.f32 %v1051, %v4439
    %v4456 = vmul.f32 %v1058, %v4440
    %v4457 = vmul.f32 %v1065, %v4441
    %vm4458 = vcmp.lt.f32.partialorder %v218, 64.0
    %vm4459 = vcmp.lt.f32.partialorder %v219, 64.0
    %vm4460 = vcmp.lt.f32.partialorder %v220, 64.0
    %vm4461 = vcmp.lt.f32.partialorder %v221, 64.0
    %vm4462 = vcmp.lt.f32.partialorder %v222, 64.0
    %vm4463 = vcmp.lt.f32.partialorder %v223, 64.0
    %vm4464 = vcmp.lt.f32.partialorder %v224, 64.0
    %vm4465 = vcmp.lt.f32.partialorder %v225, 64.0
    %vm4466 = vcmp.lt.f32.partialorder %v226, 64.0
    %vm4467 = vcmp.lt.f32.partialorder %v227, 64.0
    %vm4468 = vcmp.lt.f32.partialorder %v228, 64.0
    %vm4469 = vcmp.lt.f32.partialorder %v229, 64.0
    %vm4470 = vcmp.lt.f32.partialorder %v230, 64.0
    %vm4471 = vcmp.lt.f32.partialorder %v231, 64.0
    %vm4472 = vcmp.lt.f32.partialorder %v232, 64.0
    %vm4473 = vcmp.lt.f32.partialorder %v233, 64.0
    %v4474 = vsel %vm4458, %v570, %v4442
    %v4475 = vsel %vm4459, %v571, %v4443
    %v4476 = vsel %vm4460, %v572, %v4444
    %v4477 = vsel %vm4461, %v573, %v4445
    %v4478 = vsel %vm4462, %v574, %v4446
    %v4479 = vsel %vm4463, %v575, %v4447
    %v4480 = vsel %vm4464, %v576, %v4448
    %v4481 = vsel %vm4465, %v577, %v4449
    %v4482 = vsel %vm4466, %v578, %v4450
    %v4483 = vsel %vm4467, %v579, %v4451
    %v4484 = vsel %vm4468, %v580, %v4452
    %v4485 = vsel %vm4469, %v581, %v4453
    %v4486 = vsel %vm4470, %v582, %v4454
    %v4487 = vsel %vm4471, %v583, %v4455
    %v4488 = vsel %vm4472, %v584, %v4456
    %v4489 = vsel %vm4473, %v585, %v4457
    %v4490 = vmul.f32 %v4474, 0.15915494
    %v4491 = vmul.f32 %v4475, 0.15915494
    %v4492 = vmul.f32 %v4476, 0.15915494
    %v4493 = vmul.f32 %v4477, 0.15915494
    %v4494 = vmul.f32 %v4478, 0.15915494
    %v4495 = vmul.f32 %v4479, 0.15915494
    %v4496 = vmul.f32 %v4480, 0.15915494
    %v4497 = vmul.f32 %v4481, 0.15915494
    %v4498 = vmul.f32 %v4482, 0.15915494
    %v4499 = vmul.f32 %v4483, 0.15915494
    %v4500 = vmul.f32 %v4484, 0.15915494
    %v4501 = vmul.f32 %v4485, 0.15915494
    %v4502 = vmul.f32 %v4486, 0.15915494
    %v4503 = vmul.f32 %v4487, 0.15915494
    %v4504 = vmul.f32 %v4488, 0.15915494
    %v4505 = vmul.f32 %v4489, 0.15915494
    %4506 = vst [vmem:[#allocation2] sm:$0xff] %v4490
    %4507 = vst [vmem:[#allocation2 + $0x8] sm:$0xff] %v4491
    %4508 = vst [vmem:[#allocation2 + $0x10] sm:$0xff] %v4492
    %4509 = vst [vmem:[#allocation2 + $0x18] sm:$0xff] %v4493
    %4510 = vst [vmem:[#allocation2 + $0x20] sm:$0xff] %v4494
    %4511 = vst [vmem:[#allocation2 + $0x28] sm:$0xff] %v4495
    %4512 = vst [vmem:[#allocation2 + $0x30] sm:$0xff] %v4496
    %4513 = vst [vmem:[#allocation2 + $0x38] sm:$0xff] %v4497
    %4514 = vst [vmem:[#allocation2 + $0x40] sm:$0xff] %v4498
    %4515 = vst [vmem:[#allocation2 + $0x48] sm:$0xff] %v4499
    %4516 = vst [vmem:[#allocation2 + $0x50] sm:$0xff] %v4500
    %4517 = vst [vmem:[#allocation2 + $0x58] sm:$0xff] %v4501
    %4518 = vst [vmem:[#allocation2 + $0x60] sm:$0xff] %v4502
    %4519 = vst [vmem:[#allocation2 + $0x68] sm:$0xff] %v4503
    %4520 = vst [vmem:[#allocation2 + $0x70] sm:$0xff] %v4504
    %4521 = vst [vmem:[#allocation2 + $0x78] sm:$0xff] %v4505
    // Predicated region
    $region18: #{tpu_custom_call.1} parent=1 // pred_check
      _
    $region19: #{tpu_custom_call.1} parent=1 // pred_check_branch
      %4523 = sbr.rel (0) target = $region21
    $region20: #{tpu_custom_call.1} parent=1 // pred_region
      %s4525 = ssub.s32 2048, 2048
      %4526 = vsyncadd [#allocation3], %s4525
      %s4527 = sshll.u32 [#allocation2], 4
      %s4528 = int_to_ptr.vmem [resolvable:$true] %s4527
      %4533 = dma.vmem_to_hbm [thread:$0]  %s4528, 2048, %s4, [#allocation3], 256, 256, 16
    $region21: #{tpu_custom_call.1} parent=1 // pred_fallthru
      _
    // Predicated region
    $region22: #{tpu_custom_call.1} parent=1 // pred_check
      _
    $region23: #{tpu_custom_call.1} parent=1 // pred_check_branch
      %4535 = sbr.rel (0) target = $region25
    $region24: #{tpu_custom_call.1} parent=1 // pred_region
      %4536 = dma.done [#allocation3], 2048
    $region25: #{tpu_custom_call.1} parent=1 // pred_fallthru
      _
    %4537 = vsyncpa [#allocation3], 1

</llo_original>
